<compile_context>
chip_gen: v6e
topology: v6e:2x2x1
jax: 0.10.0
libtpu: 0.0.40
codegen_flags: <defaults>
</compile_context>

<pallas_src>
import functools

import jax
import jax.numpy as jnp
from jax.experimental import pallas as pl
from jax.experimental.pallas import tpu as pltpu


# -----------------------------------------------------------------------------
# Pallas kernel: one batch block (Nb elements) per grid step.
#   x_ref : (Cin, Nb, HW)      VMEM  channel-major input block (lanes = H*W)
#   w_ref : (K*K*Cin*Cout,)    SMEM  fused pyramid weights (flat scalar table)
#   b_ref : (Cout,)            SMEM  fused bias
#   o_ref : (Nb, Cout*HW)      VMEM  lane-dense output slab
#   xp_ref: (Cin, Nb, HW+2*S)  VMEM  zero-haloed flat input scratch
# -----------------------------------------------------------------------------
def pyramid_sum_kernel(x_ref, w_ref, b_ref, o_ref, xp_ref, *, K, W):
    Cin, Nb, HW = x_ref.shape
    Cout = b_ref.shape[0]
    P = (K - 1) // 2
    S = P * (W + 1)            # max |flat shift| of any tap

    # --- halo + fill: zero only the halo bands, overwrite the interior ------
    xp_ref[:, :, :S] = jnp.zeros((Cin, Nb, S), jnp.float32)
    xp_ref[:, :, S + HW:] = jnp.zeros((Cin, Nb, S), jnp.float32)
    xp_ref[:, :, S:S + HW] = x_ref[...]

    # --- per-kw column-validity masks (in-register, built once per step) ----
    # Column bleed of a flat shift (w + dw outside [0, W)) is killed by a
    # kw-dependent mask applied once per (kw, o) on the hoisted partial sum.
    col = jax.lax.broadcasted_iota(jnp.int32, (Nb, HW), 1) % W
    col_masks = {}
    for kw in range(K):
        dw = kw - P
        if dw == 0:
            continue                                   # all-ones mask: skip
        valid = ((col + dw) >= 0) & ((col + dw) < W)
        col_masks[kw] = valid.astype(jnp.float32)

    # --- accumulators: bias folded into the init (no separate epilogue) -----
    accs = [jnp.full((Nb, HW), b_ref[o], dtype=jnp.float32) for o in range(Cout)]

    # --- tap loop ------------------------------------------------------------
    # For tap (kh, kw) the shifted patch is a flat lane slice of the haloed
    # scratch; out-of-range rows read the zero halo, column bleed is removed
    # by the hoisted per-kw mask.  Channel contraction = Cin*Cout scalar
    # broadcast FMAs on the VPU (MXU would be almost entirely idle here).
    for kw in range(K):
        dw = kw - P
        parts = [jnp.zeros((Nb, HW), jnp.float32) for _ in range(Cout)]
        for kh in range(K):
            dh = kh - P
            start = S + dh * W + dw                    # static Python int
            for c in range(Cin):
                patch = xp_ref[c, :, start:start + HW]            # (Nb, HW)
                base = ((kh * K + kw) * Cin + c) * Cout
                for o in range(Cout):
                    parts[o] = parts[o] + w_ref[base + o] * patch
        if dw == 0:
            for o in range(Cout):
                accs[o] = accs[o] + parts[o]
        else:
            m = col_masks[kw]
            for o in range(Cout):
                accs[o] = accs[o] + m * parts[o]

    # --- single coalesced lane-dense output store (256-aligned concat) ------
    o_ref[...] = jnp.concatenate(accs, axis=-1).astype(o_ref.dtype)


def _pick_batch_block(n):
    # Fill the sublane axis with up to 8 batch elements per block.  For small
    # batches this folds everything into one grid step (best on 1-TC v5e/v6e,
    # equal wall on v7x since VALU issues per step are Nb-independent); for
    # N >= 16 multiple parallel blocks remain to feed both v7x TensorCores.
    if n <= 8:
        return n
    for nb in (8, 4, 2, 1):
        if n % nb == 0:
            return nb
    return 1


def pyramid_sum_pallas(x_cnh, w_flat, b_comb, *, K, W):
    """x_cnh: (Cin, N, H*W) channel-major input; w_flat: (K*K*Cin*Cout,);
    b_comb: (Cout,).  Returns (N, Cout*H*W)."""
    Cin, N, HW = x_cnh.shape
    Cout = b_comb.shape[0]
    P = (K - 1) // 2
    S = P * (W + 1)
    # Halo must cover the largest flat tap shift |dh*W + dw| <= P*W + P.
    assert S >= P * W + P, (S, P, W)

    Nb = _pick_batch_block(N)
    assert N % Nb == 0, (N, Nb)

    kernel = functools.partial(pyramid_sum_kernel, K=K, W=W)
    return pl.pallas_call(
        kernel,
        out_shape=jax.ShapeDtypeStruct((N, Cout * HW), x_cnh.dtype),
        grid_spec=pltpu.PrefetchScalarGridSpec(
            num_scalar_prefetch=0,
            grid=(N // Nb,),
            in_specs=[
                pl.BlockSpec((Cin, Nb, HW), lambda n: (0, n, 0)),
                pl.BlockSpec(memory_space=pltpu.MemorySpace.SMEM),
                pl.BlockSpec(memory_space=pltpu.MemorySpace.SMEM),
            ],
            out_specs=pl.BlockSpec((Nb, Cout * HW), lambda n: (n, 0)),
            scratch_shapes=[pltpu.VMEM((Cin, Nb, HW + 2 * S), jnp.float32)],
        ),
        compiler_params=pltpu.CompilerParams(
            dimension_semantics=("parallel",)),
    )(x_cnh, w_flat, b_comb)


# -----------------------------------------------------------------------------
# ResGen forward (need_decoder=False path): r = PyramidSum(Dr(fc)) ~ PyramidSum(fc)
# -----------------------------------------------------------------------------
def res_gen_forward(x_nchw, level_weights, level_biases):
    """x_nchw: (N, Cin, H, W); level_weights[i]: (Cout, Cin, 2i+1, 2i+1);
    level_biases[i]: (Cout,).  Returns (N, Cout, H, W)."""
    L = len(level_weights)
    K = 2 * L - 1
    P = L - 1
    Cout, Cin = level_weights[0].shape[0], level_weights[0].shape[1]
    N, _, H, W = x_nchw.shape
    HW = H * W

    # --- glue: fuse the per-level "same" convs into one K x K conv ---
    w_comb = jnp.zeros((K, K, Cin, Cout), jnp.float32)
    b_comb = jnp.zeros((Cout,), jnp.float32)
    for i, (w, b) in enumerate(zip(level_weights, level_biases)):
        k = 2 * i + 1
        off = P - i
        w_hwio = jnp.transpose(w, (2, 3, 1, 0))  # OIHW -> HWIO
        w_comb = w_comb.at[off:off + k, off:off + k].add(w_hwio)
        b_comb = b_comb + b
    # Flat scalar weight table (SMEM): index ((kh*K + kw)*Cin + c)*Cout + o.
    w_flat = w_comb.reshape(-1)

    # --- glue: channel-major lane-dense layout for the kernel (plumbing) ---
    x_cnh = jnp.transpose(x_nchw.reshape(N, Cin, HW), (1, 0, 2))  # (Cin, N, HW)
    out = pyramid_sum_pallas(x_cnh, w_flat, b_comb, K=K, W=W)     # (N, Cout*HW)
    return out.reshape(N, Cout, H, W)                             # free reshape


# -----------------------------------------------------------------------------
# Pure-JAX reference (mirrors the PyTorch PyramidSum forward exactly).
# -----------------------------------------------------------------------------
def ref_forward(x_nchw, level_weights, level_biases):
    out = jnp.zeros((x_nchw.shape[0], level_weights[0].shape[0],
                     x_nchw.shape[2], x_nchw.shape[3]), x_nchw.dtype)
    for i, (w, b) in enumerate(zip(level_weights, level_biases)):
        y = jax.lax.conv_general_dilated(
            x_nchw, w, window_strides=(1, 1),
            padding=[(i, i), (i, i)],
            dimension_numbers=("NCHW", "OIHW", "NCHW"))
        out = out + y + b[None, :, None, None]
    return out


if __name__ == "__main__":
    # Small shapes consistent with the module: NCHW input, 3 pyramid levels.
    N, Cin, H, W = 2, 4, 16, 16
    Cout = 3              # EffConv2d(out_channels=3, ...)
    kernel_levels = 3     # kernel sizes 1, 3, 5 with padding 0, 1, 2

    key = jax.random.PRNGKey(0)
    kx, *kws = jax.random.split(key, 1 + 2 * kernel_levels)
    x = jax.random.normal(kx, (N, Cin, H, W), jnp.float32)

    level_weights = []
    level_biases = []
    for i in range(kernel_levels):
        k = 2 * (i + 1) - 1
        kw_key, kb_key = kws[2 * i], kws[2 * i + 1]
        level_weights.append(
            0.1 * jax.random.normal(kw_key, (Cout, Cin, k, k), jnp.float32))
        level_biases.append(
            0.1 * jax.random.normal(kb_key, (Cout,), jnp.float32))

    out = res_gen_forward(x, level_weights, level_biases)
    out = jax.block_until_ready(out)

    ref = ref_forward(x, level_weights, level_biases)
    assert out.shape == (N, Cout, H, W), out.shape
    assert jnp.allclose(out, ref, atol=1e-4, rtol=1e-4), (
        float(jnp.max(jnp.abs(out - ref))))

    print("KERNEL_OK")
</pallas_src>

<mosaic_0001>
module attributes {stable_mosaic.version = 11 : i64} {
  func.func @pyramid_sum_kernel(%arg0: i32, %arg1: memref<4x2x256xf32, #tpu.memory_space<vmem>>, %arg2: memref<300xf32, #tpu.memory_space<smem>>, %arg3: memref<3xf32, #tpu.memory_space<smem>>, %arg4: memref<2x768xf32, #tpu.memory_space<vmem>>, %arg5: memref<4x2x324xf32, #tpu.memory_space<vmem>>) attributes {dimension_semantics = [#tpu.dimension_semantics<parallel>], iteration_bounds = array<i64: 1>, scalar_prefetch = 0 : i64, scratch_operands = 1 : i64, tpu.core_type = #tpu.core_type<tc>, window_params = [{transform_indices = @transform_0, window_bounds = array<i64: 4, 2, 256>}, {transform_indices = @transform_1, window_bounds = array<i64: 300>}, {transform_indices = @transform_2, window_bounds = array<i64: 3>}, {transform_indices = @transform_3, window_bounds = array<i64: 2, 768>}]} {
    %cst = arith.constant 0.000000e+00 : f32
    %0 = vector.broadcast %cst : f32 to vector<4x2x34xf32>
    %c0 = arith.constant 0 : index
    %c0_0 = arith.constant 0 : index
    %c0_1 = arith.constant 0 : index
    %1 = vector.load %arg5[%c0, %c0_0, %c0_1] : memref<4x2x324xf32, #tpu.memory_space<vmem>>, vector<4x2x34xf32>
    tpu.vector_store %arg5[%c0, %c0_0, %c0_1], %0 {strides = array<i32>} : memref<4x2x324xf32, #tpu.memory_space<vmem>>, vector<4x2x34xf32>,
    %cst_2 = arith.constant 0.000000e+00 : f32
    %2 = vector.broadcast %cst_2 : f32 to vector<4x2x34xf32>
    %c0_3 = arith.constant 0 : index
    %c0_4 = arith.constant 0 : index
    %c290 = arith.constant 290 : index
    %3 = vector.load %arg5[%c0_3, %c0_4, %c290] : memref<4x2x324xf32, #tpu.memory_space<vmem>>, vector<4x2x34xf32>
    tpu.vector_store %arg5[%c0_3, %c0_4, %c290], %2 {strides = array<i32>} : memref<4x2x324xf32, #tpu.memory_space<vmem>>, vector<4x2x34xf32>,
    %c0_5 = arith.constant 0 : index
    %c0_6 = arith.constant 0 : index
    %c0_7 = arith.constant 0 : index
    %4 = vector.load %arg1[%c0_5, %c0_6, %c0_7] : memref<4x2x256xf32, #tpu.memory_space<vmem>>, vector<4x2x256xf32>
    %c0_8 = arith.constant 0 : index
    %c0_9 = arith.constant 0 : index
    %c34 = arith.constant 34 : index
    %5 = vector.load %arg5[%c0_8, %c0_9, %c34] : memref<4x2x324xf32, #tpu.memory_space<vmem>>, vector<4x2x256xf32>
    tpu.vector_store %arg5[%c0_8, %c0_9, %c34], %4 {strides = array<i32>} : memref<4x2x324xf32, #tpu.memory_space<vmem>>, vector<4x2x256xf32>,
    %6 = tpu.iota {dimensions = array<i32: 1>} : vector<2x256xi32>
    %c16_i32 = arith.constant 16 : i32
    %c0_i32 = arith.constant 0 : i32
    %7 = arith.cmpi eq, %c16_i32, %c0_i32 : i32
    %c1_i32 = arith.constant 1 : i32
    %8 = arith.select %7, %c1_i32, %c16_i32 : i32
    %9 = vector.broadcast %8 : i32 to vector<2x256xi32>
    %10 = arith.remsi %6, %9 : vector<2x256xi32>
    %c0_i32_10 = arith.constant 0 : i32
    %11 = vector.broadcast %c0_i32_10 : i32 to vector<2x256xi32>
    %12 = arith.cmpi ne, %10, %11 : vector<2x256xi32>
    %c0_i32_11 = arith.constant 0 : i32
    %13 = vector.broadcast %c0_i32_11 : i32 to vector<2x256xi32>
    %14 = arith.cmpi slt, %10, %13 : vector<2x256xi32>
    %c0_i32_12 = arith.constant 0 : i32
    %15 = arith.cmpi slt, %8, %c0_i32_12 : i32
    %16 = vector.broadcast %15 : i1 to vector<2x256xi1>
    %17 = vector.broadcast %16 : vector<2x256xi1> to vector<2x256xi1>
    %18 = arith.xori %14, %17 : vector<2x256xi1>
    %19 = arith.andi %18, %12 : vector<2x256xi1>
    %20 = vector.broadcast %8 : i32 to vector<2x256xi32>
    %21 = arith.addi %10, %20 : vector<2x256xi32>
    %22 = arith.select %19, %21, %10 : vector<2x256xi1>, vector<2x256xi32>
    %c-2_i32 = arith.constant -2 : i32
    %23 = vector.broadcast %c-2_i32 : i32 to vector<2x256xi32>
    %24 = arith.addi %22, %23 : vector<2x256xi32>
    %c0_i32_13 = arith.constant 0 : i32
    %25 = vector.broadcast %c0_i32_13 : i32 to vector<2x256xi32>
    %26 = arith.cmpi sge, %24, %25 : vector<2x256xi32>
    %c-2_i32_14 = arith.constant -2 : i32
    %27 = vector.broadcast %c-2_i32_14 : i32 to vector<2x256xi32>
    %28 = arith.addi %22, %27 : vector<2x256xi32>
    %c16_i32_15 = arith.constant 16 : i32
    %29 = vector.broadcast %c16_i32_15 : i32 to vector<2x256xi32>
    %30 = arith.cmpi slt, %28, %29 : vector<2x256xi32>
    %31 = arith.andi %26, %30 : vector<2x256xi1>
    %32 = arith.extui %31 : vector<2x256xi1> to vector<2x256xi32>
    %33 = arith.sitofp %32 : vector<2x256xi32> to vector<2x256xf32>
    %c-1_i32 = arith.constant -1 : i32
    %34 = vector.broadcast %c-1_i32 : i32 to vector<2x256xi32>
    %35 = arith.addi %22, %34 : vector<2x256xi32>
    %c0_i32_16 = arith.constant 0 : i32
    %36 = vector.broadcast %c0_i32_16 : i32 to vector<2x256xi32>
    %37 = arith.cmpi sge, %35, %36 : vector<2x256xi32>
    %c-1_i32_17 = arith.constant -1 : i32
    %38 = vector.broadcast %c-1_i32_17 : i32 to vector<2x256xi32>
    %39 = arith.addi %22, %38 : vector<2x256xi32>
    %c16_i32_18 = arith.constant 16 : i32
    %40 = vector.broadcast %c16_i32_18 : i32 to vector<2x256xi32>
    %41 = arith.cmpi slt, %39, %40 : vector<2x256xi32>
    %42 = arith.andi %37, %41 : vector<2x256xi1>
    %43 = arith.extui %42 : vector<2x256xi1> to vector<2x256xi32>
    %44 = arith.sitofp %43 : vector<2x256xi32> to vector<2x256xf32>
    %c1_i32_19 = arith.constant 1 : i32
    %45 = vector.broadcast %c1_i32_19 : i32 to vector<2x256xi32>
    %46 = arith.addi %22, %45 : vector<2x256xi32>
    %c0_i32_20 = arith.constant 0 : i32
    %47 = vector.broadcast %c0_i32_20 : i32 to vector<2x256xi32>
    %48 = arith.cmpi sge, %46, %47 : vector<2x256xi32>
    %c1_i32_21 = arith.constant 1 : i32
    %49 = vector.broadcast %c1_i32_21 : i32 to vector<2x256xi32>
    %50 = arith.addi %22, %49 : vector<2x256xi32>
    %c16_i32_22 = arith.constant 16 : i32
    %51 = vector.broadcast %c16_i32_22 : i32 to vector<2x256xi32>
    %52 = arith.cmpi slt, %50, %51 : vector<2x256xi32>
    %53 = arith.andi %48, %52 : vector<2x256xi1>
    %54 = arith.extui %53 : vector<2x256xi1> to vector<2x256xi32>
    %55 = arith.sitofp %54 : vector<2x256xi32> to vector<2x256xf32>
    %c2_i32 = arith.constant 2 : i32
    %56 = vector.broadcast %c2_i32 : i32 to vector<2x256xi32>
    %57 = arith.addi %22, %56 : vector<2x256xi32>
    %c0_i32_23 = arith.constant 0 : i32
    %58 = vector.broadcast %c0_i32_23 : i32 to vector<2x256xi32>
    %59 = arith.cmpi sge, %57, %58 : vector<2x256xi32>
    %c2_i32_24 = arith.constant 2 : i32
    %60 = vector.broadcast %c2_i32_24 : i32 to vector<2x256xi32>
    %61 = arith.addi %22, %60 : vector<2x256xi32>
    %c16_i32_25 = arith.constant 16 : i32
    %62 = vector.broadcast %c16_i32_25 : i32 to vector<2x256xi32>
    %63 = arith.cmpi slt, %61, %62 : vector<2x256xi32>
    %64 = arith.andi %59, %63 : vector<2x256xi1>
    %65 = arith.extui %64 : vector<2x256xi1> to vector<2x256xi32>
    %66 = arith.sitofp %65 : vector<2x256xi32> to vector<2x256xf32>
    %c0_26 = arith.constant 0 : index
    %67 = memref.load %arg3[%c0_26] : memref<3xf32, #tpu.memory_space<smem>>
    %68 = vector.broadcast %67 : f32 to vector<2x256xf32>
    %c1 = arith.constant 1 : index
    %69 = memref.load %arg3[%c1] : memref<3xf32, #tpu.memory_space<smem>>
    %70 = vector.broadcast %69 : f32 to vector<2x256xf32>
    %c2 = arith.constant 2 : index
    %71 = memref.load %arg3[%c2] : memref<3xf32, #tpu.memory_space<smem>>
    %72 = vector.broadcast %71 : f32 to vector<2x256xf32>
    %cst_27 = arith.constant 0.000000e+00 : f32
    %73 = vector.broadcast %cst_27 : f32 to vector<2x256xf32>
    %cst_28 = arith.constant 0.000000e+00 : f32
    %74 = vector.broadcast %cst_28 : f32 to vector<2x256xf32>
    %cst_29 = arith.constant 0.000000e+00 : f32
    %75 = vector.broadcast %cst_29 : f32 to vector<2x256xf32>
    %c0_30 = arith.constant 0 : index
    %c0_31 = arith.constant 0 : index
    %c0_32 = arith.constant 0 : index
    %76 = vector.load %arg5[%c0_30, %c0_31, %c0_32] : memref<4x2x324xf32, #tpu.memory_space<vmem>>, vector<1x2x256xf32>
    %77 = vector.shape_cast %76 : vector<1x2x256xf32> to vector<2x256xf32>
    %c0_33 = arith.constant 0 : index
    %78 = memref.load %arg2[%c0_33] : memref<300xf32, #tpu.memory_space<smem>>
    %79 = vector.broadcast %78 : f32 to vector<2x256xf32>
    %80 = arith.mulf %79, %77 : vector<2x256xf32>
    %81 = arith.addf %73, %80 : vector<2x256xf32>
    %c1_34 = arith.constant 1 : index
    %82 = memref.load %arg2[%c1_34] : memref<300xf32, #tpu.memory_space<smem>>
    %83 = vector.broadcast %82 : f32 to vector<2x256xf32>
    %84 = arith.mulf %83, %77 : vector<2x256xf32>
    %85 = arith.addf %74, %84 : vector<2x256xf32>
    %c2_35 = arith.constant 2 : index
    %86 = memref.load %arg2[%c2_35] : memref<300xf32, #tpu.memory_space<smem>>
    %87 = vector.broadcast %86 : f32 to vector<2x256xf32>
    %88 = arith.mulf %87, %77 : vector<2x256xf32>
    %89 = arith.addf %75, %88 : vector<2x256xf32>
    %c1_36 = arith.constant 1 : index
    %c0_37 = arith.constant 0 : index
    %c0_38 = arith.constant 0 : index
    %90 = vector.load %arg5[%c1_36, %c0_37, %c0_38] : memref<4x2x324xf32, #tpu.memory_space<vmem>>, vector<1x2x256xf32>
    %91 = vector.shape_cast %90 : vector<1x2x256xf32> to vector<2x256xf32>
    %c3 = arith.constant 3 : index
    %92 = memref.load %arg2[%c3] : memref<300xf32, #tpu.memory_space<smem>>
    %93 = vector.broadcast %92 : f32 to vector<2x256xf32>
    %94 = arith.mulf %93, %91 : vector<2x256xf32>
    %95 = arith.addf %81, %94 : vector<2x256xf32>
    %c4 = arith.constant 4 : index
    %96 = memref.load %arg2[%c4] : memref<300xf32, #tpu.memory_space<smem>>
    %97 = vector.broadcast %96 : f32 to vector<2x256xf32>
    %98 = arith.mulf %97, %91 : vector<2x256xf32>
    %99 = arith.addf %85, %98 : vector<2x256xf32>
    %c5 = arith.constant 5 : index
    %100 = memref.load %arg2[%c5] : memref<300xf32, #tpu.memory_space<smem>>
    %101 = vector.broadcast %100 : f32 to vector<2x256xf32>
    %102 = arith.mulf %101, %91 : vector<2x256xf32>
    %103 = arith.addf %89, %102 : vector<2x256xf32>
    %c2_39 = arith.constant 2 : index
    %c0_40 = arith.constant 0 : index
    %c0_41 = arith.constant 0 : index
    %104 = vector.load %arg5[%c2_39, %c0_40, %c0_41] : memref<4x2x324xf32, #tpu.memory_space<vmem>>, vector<1x2x256xf32>
    %105 = vector.shape_cast %104 : vector<1x2x256xf32> to vector<2x256xf32>
    %c6 = arith.constant 6 : index
    %106 = memref.load %arg2[%c6] : memref<300xf32, #tpu.memory_space<smem>>
    %107 = vector.broadcast %106 : f32 to vector<2x256xf32>
    %108 = arith.mulf %107, %105 : vector<2x256xf32>
    %109 = arith.addf %95, %108 : vector<2x256xf32>
    %c7 = arith.constant 7 : index
    %110 = memref.load %arg2[%c7] : memref<300xf32, #tpu.memory_space<smem>>
    %111 = vector.broadcast %110 : f32 to vector<2x256xf32>
    %112 = arith.mulf %111, %105 : vector<2x256xf32>
    %113 = arith.addf %99, %112 : vector<2x256xf32>
    %c8 = arith.constant 8 : index
    %114 = memref.load %arg2[%c8] : memref<300xf32, #tpu.memory_space<smem>>
    %115 = vector.broadcast %114 : f32 to vector<2x256xf32>
    %116 = arith.mulf %115, %105 : vector<2x256xf32>
    %117 = arith.addf %103, %116 : vector<2x256xf32>
    %c3_42 = arith.constant 3 : index
    %c0_43 = arith.constant 0 : index
    %c0_44 = arith.constant 0 : index
    %118 = vector.load %arg5[%c3_42, %c0_43, %c0_44] : memref<4x2x324xf32, #tpu.memory_space<vmem>>, vector<1x2x256xf32>
    %119 = vector.shape_cast %118 : vector<1x2x256xf32> to vector<2x256xf32>
    %c9 = arith.constant 9 : index
    %120 = memref.load %arg2[%c9] : memref<300xf32, #tpu.memory_space<smem>>
    %121 = vector.broadcast %120 : f32 to vector<2x256xf32>
    %122 = arith.mulf %121, %119 : vector<2x256xf32>
    %123 = arith.addf %109, %122 : vector<2x256xf32>
    %c10 = arith.constant 10 : index
    %124 = memref.load %arg2[%c10] : memref<300xf32, #tpu.memory_space<smem>>
    %125 = vector.broadcast %124 : f32 to vector<2x256xf32>
    %126 = arith.mulf %125, %119 : vector<2x256xf32>
    %127 = arith.addf %113, %126 : vector<2x256xf32>
    %c11 = arith.constant 11 : index
    %128 = memref.load %arg2[%c11] : memref<300xf32, #tpu.memory_space<smem>>
    %129 = vector.broadcast %128 : f32 to vector<2x256xf32>
    %130 = arith.mulf %129, %119 : vector<2x256xf32>
    %131 = arith.addf %117, %130 : vector<2x256xf32>
    %c0_45 = arith.constant 0 : index
    %c0_46 = arith.constant 0 : index
    %c16 = arith.constant 16 : index
    %132 = vector.load %arg5[%c0_45, %c0_46, %c16] : memref<4x2x324xf32, #tpu.memory_space<vmem>>, vector<1x2x256xf32>
    %133 = vector.shape_cast %132 : vector<1x2x256xf32> to vector<2x256xf32>
    %c60 = arith.constant 60 : index
    %134 = memref.load %arg2[%c60] : memref<300xf32, #tpu.memory_space<smem>>
    %135 = vector.broadcast %134 : f32 to vector<2x256xf32>
    %136 = arith.mulf %135, %133 : vector<2x256xf32>
    %137 = arith.addf %123, %136 : vector<2x256xf32>
    %c61 = arith.constant 61 : index
    %138 = memref.load %arg2[%c61] : memref<300xf32, #tpu.memory_space<smem>>
    %139 = vector.broadcast %138 : f32 to vector<2x256xf32>
    %140 = arith.mulf %139, %133 : vector<2x256xf32>
    %141 = arith.addf %127, %140 : vector<2x256xf32>
    %c62 = arith.constant 62 : index
    %142 = memref.load %arg2[%c62] : memref<300xf32, #tpu.memory_space<smem>>
    %143 = vector.broadcast %142 : f32 to vector<2x256xf32>
    %144 = arith.mulf %143, %133 : vector<2x256xf32>
    %145 = arith.addf %131, %144 : vector<2x256xf32>
    %c1_47 = arith.constant 1 : index
    %c0_48 = arith.constant 0 : index
    %c16_49 = arith.constant 16 : index
    %146 = vector.load %arg5[%c1_47, %c0_48, %c16_49] : memref<4x2x324xf32, #tpu.memory_space<vmem>>, vector<1x2x256xf32>
    %147 = vector.shape_cast %146 : vector<1x2x256xf32> to vector<2x256xf32>
    %c63 = arith.constant 63 : index
    %148 = memref.load %arg2[%c63] : memref<300xf32, #tpu.memory_space<smem>>
    %149 = vector.broadcast %148 : f32 to vector<2x256xf32>
    %150 = arith.mulf %149, %147 : vector<2x256xf32>
    %151 = arith.addf %137, %150 : vector<2x256xf32>
    %c64 = arith.constant 64 : index
    %152 = memref.load %arg2[%c64] : memref<300xf32, #tpu.memory_space<smem>>
    %153 = vector.broadcast %152 : f32 to vector<2x256xf32>
    %154 = arith.mulf %153, %147 : vector<2x256xf32>
    %155 = arith.addf %141, %154 : vector<2x256xf32>
    %c65 = arith.constant 65 : index
    %156 = memref.load %arg2[%c65] : memref<300xf32, #tpu.memory_space<smem>>
    %157 = vector.broadcast %156 : f32 to vector<2x256xf32>
    %158 = arith.mulf %157, %147 : vector<2x256xf32>
    %159 = arith.addf %145, %158 : vector<2x256xf32>
    %c2_50 = arith.constant 2 : index
    %c0_51 = arith.constant 0 : index
    %c16_52 = arith.constant 16 : index
    %160 = vector.load %arg5[%c2_50, %c0_51, %c16_52] : memref<4x2x324xf32, #tpu.memory_space<vmem>>, vector<1x2x256xf32>
    %161 = vector.shape_cast %160 : vector<1x2x256xf32> to vector<2x256xf32>
    %c66 = arith.constant 66 : index
    %162 = memref.load %arg2[%c66] : memref<300xf32, #tpu.memory_space<smem>>
    %163 = vector.broadcast %162 : f32 to vector<2x256xf32>
    %164 = arith.mulf %163, %161 : vector<2x256xf32>
    %165 = arith.addf %151, %164 : vector<2x256xf32>
    %c67 = arith.constant 67 : index
    %166 = memref.load %arg2[%c67] : memref<300xf32, #tpu.memory_space<smem>>
    %167 = vector.broadcast %166 : f32 to vector<2x256xf32>
    %168 = arith.mulf %167, %161 : vector<2x256xf32>
    %169 = arith.addf %155, %168 : vector<2x256xf32>
    %c68 = arith.constant 68 : index
    %170 = memref.load %arg2[%c68] : memref<300xf32, #tpu.memory_space<smem>>
    %171 = vector.broadcast %170 : f32 to vector<2x256xf32>
    %172 = arith.mulf %171, %161 : vector<2x256xf32>
    %173 = arith.addf %159, %172 : vector<2x256xf32>
    %c3_53 = arith.constant 3 : index
    %c0_54 = arith.constant 0 : index
    %c16_55 = arith.constant 16 : index
    %174 = vector.load %arg5[%c3_53, %c0_54, %c16_55] : memref<4x2x324xf32, #tpu.memory_space<vmem>>, vector<1x2x256xf32>
    %175 = vector.shape_cast %174 : vector<1x2x256xf32> to vector<2x256xf32>
    %c69 = arith.constant 69 : index
    %176 = memref.load %arg2[%c69] : memref<300xf32, #tpu.memory_space<smem>>
    %177 = vector.broadcast %176 : f32 to vector<2x256xf32>
    %178 = arith.mulf %177, %175 : vector<2x256xf32>
    %179 = arith.addf %165, %178 : vector<2x256xf32>
    %c70 = arith.constant 70 : index
    %180 = memref.load %arg2[%c70] : memref<300xf32, #tpu.memory_space<smem>>
    %181 = vector.broadcast %180 : f32 to vector<2x256xf32>
    %182 = arith.mulf %181, %175 : vector<2x256xf32>
    %183 = arith.addf %169, %182 : vector<2x256xf32>
    %c71 = arith.constant 71 : index
    %184 = memref.load %arg2[%c71] : memref<300xf32, #tpu.memory_space<smem>>
    %185 = vector.broadcast %184 : f32 to vector<2x256xf32>
    %186 = arith.mulf %185, %175 : vector<2x256xf32>
    %187 = arith.addf %173, %186 : vector<2x256xf32>
    %c0_56 = arith.constant 0 : index
    %c0_57 = arith.constant 0 : index
    %c32 = arith.constant 32 : index
    %188 = vector.load %arg5[%c0_56, %c0_57, %c32] : memref<4x2x324xf32, #tpu.memory_space<vmem>>, vector<1x2x256xf32>
    %189 = vector.shape_cast %188 : vector<1x2x256xf32> to vector<2x256xf32>
    %c120 = arith.constant 120 : index
    %190 = memref.load %arg2[%c120] : memref<300xf32, #tpu.memory_space<smem>>
    %191 = vector.broadcast %190 : f32 to vector<2x256xf32>
    %192 = arith.mulf %191, %189 : vector<2x256xf32>
    %193 = arith.addf %179, %192 : vector<2x256xf32>
    %c121 = arith.constant 121 : index
    %194 = memref.load %arg2[%c121] : memref<300xf32, #tpu.memory_space<smem>>
    %195 = vector.broadcast %194 : f32 to vector<2x256xf32>
    %196 = arith.mulf %195, %189 : vector<2x256xf32>
    %197 = arith.addf %183, %196 : vector<2x256xf32>
    %c122 = arith.constant 122 : index
    %198 = memref.load %arg2[%c122] : memref<300xf32, #tpu.memory_space<smem>>
    %199 = vector.broadcast %198 : f32 to vector<2x256xf32>
    %200 = arith.mulf %199, %189 : vector<2x256xf32>
    %201 = arith.addf %187, %200 : vector<2x256xf32>
    %c1_58 = arith.constant 1 : index
    %c0_59 = arith.constant 0 : index
    %c32_60 = arith.constant 32 : index
    %202 = vector.load %arg5[%c1_58, %c0_59, %c32_60] : memref<4x2x324xf32, #tpu.memory_space<vmem>>, vector<1x2x256xf32>
    %203 = vector.shape_cast %202 : vector<1x2x256xf32> to vector<2x256xf32>
    %c123 = arith.constant 123 : index
    %204 = memref.load %arg2[%c123] : memref<300xf32, #tpu.memory_space<smem>>
    %205 = vector.broadcast %204 : f32 to vector<2x256xf32>
    %206 = arith.mulf %205, %203 : vector<2x256xf32>
    %207 = arith.addf %193, %206 : vector<2x256xf32>
    %c124 = arith.constant 124 : index
    %208 = memref.load %arg2[%c124] : memref<300xf32, #tpu.memory_space<smem>>
    %209 = vector.broadcast %208 : f32 to vector<2x256xf32>
    %210 = arith.mulf %209, %203 : vector<2x256xf32>
    %211 = arith.addf %197, %210 : vector<2x256xf32>
    %c125 = arith.constant 125 : index
    %212 = memref.load %arg2[%c125] : memref<300xf32, #tpu.memory_space<smem>>
    %213 = vector.broadcast %212 : f32 to vector<2x256xf32>
    %214 = arith.mulf %213, %203 : vector<2x256xf32>
    %215 = arith.addf %201, %214 : vector<2x256xf32>
    %c2_61 = arith.constant 2 : index
    %c0_62 = arith.constant 0 : index
    %c32_63 = arith.constant 32 : index
    %216 = vector.load %arg5[%c2_61, %c0_62, %c32_63] : memref<4x2x324xf32, #tpu.memory_space<vmem>>, vector<1x2x256xf32>
    %217 = vector.shape_cast %216 : vector<1x2x256xf32> to vector<2x256xf32>
    %c126 = arith.constant 126 : index
    %218 = memref.load %arg2[%c126] : memref<300xf32, #tpu.memory_space<smem>>
    %219 = vector.broadcast %218 : f32 to vector<2x256xf32>
    %220 = arith.mulf %219, %217 : vector<2x256xf32>
    %221 = arith.addf %207, %220 : vector<2x256xf32>
    %c127 = arith.constant 127 : index
    %222 = memref.load %arg2[%c127] : memref<300xf32, #tpu.memory_space<smem>>
    %223 = vector.broadcast %222 : f32 to vector<2x256xf32>
    %224 = arith.mulf %223, %217 : vector<2x256xf32>
    %225 = arith.addf %211, %224 : vector<2x256xf32>
    %c128 = arith.constant 128 : index
    %226 = memref.load %arg2[%c128] : memref<300xf32, #tpu.memory_space<smem>>
    %227 = vector.broadcast %226 : f32 to vector<2x256xf32>
    %228 = arith.mulf %227, %217 : vector<2x256xf32>
    %229 = arith.addf %215, %228 : vector<2x256xf32>
    %c3_64 = arith.constant 3 : index
    %c0_65 = arith.constant 0 : index
    %c32_66 = arith.constant 32 : index
    %230 = vector.load %arg5[%c3_64, %c0_65, %c32_66] : memref<4x2x324xf32, #tpu.memory_space<vmem>>, vector<1x2x256xf32>
    %231 = vector.shape_cast %230 : vector<1x2x256xf32> to vector<2x256xf32>
    %c129 = arith.constant 129 : index
    %232 = memref.load %arg2[%c129] : memref<300xf32, #tpu.memory_space<smem>>
    %233 = vector.broadcast %232 : f32 to vector<2x256xf32>
    %234 = arith.mulf %233, %231 : vector<2x256xf32>
    %235 = arith.addf %221, %234 : vector<2x256xf32>
    %c130 = arith.constant 130 : index
    %236 = memref.load %arg2[%c130] : memref<300xf32, #tpu.memory_space<smem>>
    %237 = vector.broadcast %236 : f32 to vector<2x256xf32>
    %238 = arith.mulf %237, %231 : vector<2x256xf32>
    %239 = arith.addf %225, %238 : vector<2x256xf32>
    %c131 = arith.constant 131 : index
    %240 = memref.load %arg2[%c131] : memref<300xf32, #tpu.memory_space<smem>>
    %241 = vector.broadcast %240 : f32 to vector<2x256xf32>
    %242 = arith.mulf %241, %231 : vector<2x256xf32>
    %243 = arith.addf %229, %242 : vector<2x256xf32>
    %c0_67 = arith.constant 0 : index
    %c0_68 = arith.constant 0 : index
    %c48 = arith.constant 48 : index
    %244 = vector.load %arg5[%c0_67, %c0_68, %c48] : memref<4x2x324xf32, #tpu.memory_space<vmem>>, vector<1x2x256xf32>
    %245 = vector.shape_cast %244 : vector<1x2x256xf32> to vector<2x256xf32>
    %c180 = arith.constant 180 : index
    %246 = memref.load %arg2[%c180] : memref<300xf32, #tpu.memory_space<smem>>
    %247 = vector.broadcast %246 : f32 to vector<2x256xf32>
    %248 = arith.mulf %247, %245 : vector<2x256xf32>
    %249 = arith.addf %235, %248 : vector<2x256xf32>
    %c181 = arith.constant 181 : index
    %250 = memref.load %arg2[%c181] : memref<300xf32, #tpu.memory_space<smem>>
    %251 = vector.broadcast %250 : f32 to vector<2x256xf32>
    %252 = arith.mulf %251, %245 : vector<2x256xf32>
    %253 = arith.addf %239, %252 : vector<2x256xf32>
    %c182 = arith.constant 182 : index
    %254 = memref.load %arg2[%c182] : memref<300xf32, #tpu.memory_space<smem>>
    %255 = vector.broadcast %254 : f32 to vector<2x256xf32>
    %256 = arith.mulf %255, %245 : vector<2x256xf32>
    %257 = arith.addf %243, %256 : vector<2x256xf32>
    %c1_69 = arith.constant 1 : index
    %c0_70 = arith.constant 0 : index
    %c48_71 = arith.constant 48 : index
    %258 = vector.load %arg5[%c1_69, %c0_70, %c48_71] : memref<4x2x324xf32, #tpu.memory_space<vmem>>, vector<1x2x256xf32>
    %259 = vector.shape_cast %258 : vector<1x2x256xf32> to vector<2x256xf32>
    %c183 = arith.constant 183 : index
    %260 = memref.load %arg2[%c183] : memref<300xf32, #tpu.memory_space<smem>>
    %261 = vector.broadcast %260 : f32 to vector<2x256xf32>
    %262 = arith.mulf %261, %259 : vector<2x256xf32>
    %263 = arith.addf %249, %262 : vector<2x256xf32>
    %c184 = arith.constant 184 : index
    %264 = memref.load %arg2[%c184] : memref<300xf32, #tpu.memory_space<smem>>
    %265 = vector.broadcast %264 : f32 to vector<2x256xf32>
    %266 = arith.mulf %265, %259 : vector<2x256xf32>
    %267 = arith.addf %253, %266 : vector<2x256xf32>
    %c185 = arith.constant 185 : index
    %268 = memref.load %arg2[%c185] : memref<300xf32, #tpu.memory_space<smem>>
    %269 = vector.broadcast %268 : f32 to vector<2x256xf32>
    %270 = arith.mulf %269, %259 : vector<2x256xf32>
    %271 = arith.addf %257, %270 : vector<2x256xf32>
    %c2_72 = arith.constant 2 : index
    %c0_73 = arith.constant 0 : index
    %c48_74 = arith.constant 48 : index
    %272 = vector.load %arg5[%c2_72, %c0_73, %c48_74] : memref<4x2x324xf32, #tpu.memory_space<vmem>>, vector<1x2x256xf32>
    %273 = vector.shape_cast %272 : vector<1x2x256xf32> to vector<2x256xf32>
    %c186 = arith.constant 186 : index
    %274 = memref.load %arg2[%c186] : memref<300xf32, #tpu.memory_space<smem>>
    %275 = vector.broadcast %274 : f32 to vector<2x256xf32>
    %276 = arith.mulf %275, %273 : vector<2x256xf32>
    %277 = arith.addf %263, %276 : vector<2x256xf32>
    %c187 = arith.constant 187 : index
    %278 = memref.load %arg2[%c187] : memref<300xf32, #tpu.memory_space<smem>>
    %279 = vector.broadcast %278 : f32 to vector<2x256xf32>
    %280 = arith.mulf %279, %273 : vector<2x256xf32>
    %281 = arith.addf %267, %280 : vector<2x256xf32>
    %c188 = arith.constant 188 : index
    %282 = memref.load %arg2[%c188] : memref<300xf32, #tpu.memory_space<smem>>
    %283 = vector.broadcast %282 : f32 to vector<2x256xf32>
    %284 = arith.mulf %283, %273 : vector<2x256xf32>
    %285 = arith.addf %271, %284 : vector<2x256xf32>
    %c3_75 = arith.constant 3 : index
    %c0_76 = arith.constant 0 : index
    %c48_77 = arith.constant 48 : index
    %286 = vector.load %arg5[%c3_75, %c0_76, %c48_77] : memref<4x2x324xf32, #tpu.memory_space<vmem>>, vector<1x2x256xf32>
    %287 = vector.shape_cast %286 : vector<1x2x256xf32> to vector<2x256xf32>
    %c189 = arith.constant 189 : index
    %288 = memref.load %arg2[%c189] : memref<300xf32, #tpu.memory_space<smem>>
    %289 = vector.broadcast %288 : f32 to vector<2x256xf32>
    %290 = arith.mulf %289, %287 : vector<2x256xf32>
    %291 = arith.addf %277, %290 : vector<2x256xf32>
    %c190 = arith.constant 190 : index
    %292 = memref.load %arg2[%c190] : memref<300xf32, #tpu.memory_space<smem>>
    %293 = vector.broadcast %292 : f32 to vector<2x256xf32>
    %294 = arith.mulf %293, %287 : vector<2x256xf32>
    %295 = arith.addf %281, %294 : vector<2x256xf32>
    %c191 = arith.constant 191 : index
    %296 = memref.load %arg2[%c191] : memref<300xf32, #tpu.memory_space<smem>>
    %297 = vector.broadcast %296 : f32 to vector<2x256xf32>
    %298 = arith.mulf %297, %287 : vector<2x256xf32>
    %299 = arith.addf %285, %298 : vector<2x256xf32>
    %c0_78 = arith.constant 0 : index
    %c0_79 = arith.constant 0 : index
    %c64_80 = arith.constant 64 : index
    %300 = vector.load %arg5[%c0_78, %c0_79, %c64_80] : memref<4x2x324xf32, #tpu.memory_space<vmem>>, vector<1x2x256xf32>
    %301 = vector.shape_cast %300 : vector<1x2x256xf32> to vector<2x256xf32>
    %c240 = arith.constant 240 : index
    %302 = memref.load %arg2[%c240] : memref<300xf32, #tpu.memory_space<smem>>
    %303 = vector.broadcast %302 : f32 to vector<2x256xf32>
    %304 = arith.mulf %303, %301 : vector<2x256xf32>
    %305 = arith.addf %291, %304 : vector<2x256xf32>
    %c241 = arith.constant 241 : index
    %306 = memref.load %arg2[%c241] : memref<300xf32, #tpu.memory_space<smem>>
    %307 = vector.broadcast %306 : f32 to vector<2x256xf32>
    %308 = arith.mulf %307, %301 : vector<2x256xf32>
    %309 = arith.addf %295, %308 : vector<2x256xf32>
    %c242 = arith.constant 242 : index
    %310 = memref.load %arg2[%c242] : memref<300xf32, #tpu.memory_space<smem>>
    %311 = vector.broadcast %310 : f32 to vector<2x256xf32>
    %312 = arith.mulf %311, %301 : vector<2x256xf32>
    %313 = arith.addf %299, %312 : vector<2x256xf32>
    %c1_81 = arith.constant 1 : index
    %c0_82 = arith.constant 0 : index
    %c64_83 = arith.constant 64 : index
    %314 = vector.load %arg5[%c1_81, %c0_82, %c64_83] : memref<4x2x324xf32, #tpu.memory_space<vmem>>, vector<1x2x256xf32>
    %315 = vector.shape_cast %314 : vector<1x2x256xf32> to vector<2x256xf32>
    %c243 = arith.constant 243 : index
    %316 = memref.load %arg2[%c243] : memref<300xf32, #tpu.memory_space<smem>>
    %317 = vector.broadcast %316 : f32 to vector<2x256xf32>
    %318 = arith.mulf %317, %315 : vector<2x256xf32>
    %319 = arith.addf %305, %318 : vector<2x256xf32>
    %c244 = arith.constant 244 : index
    %320 = memref.load %arg2[%c244] : memref<300xf32, #tpu.memory_space<smem>>
    %321 = vector.broadcast %320 : f32 to vector<2x256xf32>
    %322 = arith.mulf %321, %315 : vector<2x256xf32>
    %323 = arith.addf %309, %322 : vector<2x256xf32>
    %c245 = arith.constant 245 : index
    %324 = memref.load %arg2[%c245] : memref<300xf32, #tpu.memory_space<smem>>
    %325 = vector.broadcast %324 : f32 to vector<2x256xf32>
    %326 = arith.mulf %325, %315 : vector<2x256xf32>
    %327 = arith.addf %313, %326 : vector<2x256xf32>
    %c2_84 = arith.constant 2 : index
    %c0_85 = arith.constant 0 : index
    %c64_86 = arith.constant 64 : index
    %328 = vector.load %arg5[%c2_84, %c0_85, %c64_86] : memref<4x2x324xf32, #tpu.memory_space<vmem>>, vector<1x2x256xf32>
    %329 = vector.shape_cast %328 : vector<1x2x256xf32> to vector<2x256xf32>
    %c246 = arith.constant 246 : index
    %330 = memref.load %arg2[%c246] : memref<300xf32, #tpu.memory_space<smem>>
    %331 = vector.broadcast %330 : f32 to vector<2x256xf32>
    %332 = arith.mulf %331, %329 : vector<2x256xf32>
    %333 = arith.addf %319, %332 : vector<2x256xf32>
    %c247 = arith.constant 247 : index
    %334 = memref.load %arg2[%c247] : memref<300xf32, #tpu.memory_space<smem>>
    %335 = vector.broadcast %334 : f32 to vector<2x256xf32>
    %336 = arith.mulf %335, %329 : vector<2x256xf32>
    %337 = arith.addf %323, %336 : vector<2x256xf32>
    %c248 = arith.constant 248 : index
    %338 = memref.load %arg2[%c248] : memref<300xf32, #tpu.memory_space<smem>>
    %339 = vector.broadcast %338 : f32 to vector<2x256xf32>
    %340 = arith.mulf %339, %329 : vector<2x256xf32>
    %341 = arith.addf %327, %340 : vector<2x256xf32>
    %c3_87 = arith.constant 3 : index
    %c0_88 = arith.constant 0 : index
    %c64_89 = arith.constant 64 : index
    %342 = vector.load %arg5[%c3_87, %c0_88, %c64_89] : memref<4x2x324xf32, #tpu.memory_space<vmem>>, vector<1x2x256xf32>
    %343 = vector.shape_cast %342 : vector<1x2x256xf32> to vector<2x256xf32>
    %c249 = arith.constant 249 : index
    %344 = memref.load %arg2[%c249] : memref<300xf32, #tpu.memory_space<smem>>
    %345 = vector.broadcast %344 : f32 to vector<2x256xf32>
    %346 = arith.mulf %345, %343 : vector<2x256xf32>
    %347 = arith.addf %333, %346 : vector<2x256xf32>
    %c250 = arith.constant 250 : index
    %348 = memref.load %arg2[%c250] : memref<300xf32, #tpu.memory_space<smem>>
    %349 = vector.broadcast %348 : f32 to vector<2x256xf32>
    %350 = arith.mulf %349, %343 : vector<2x256xf32>
    %351 = arith.addf %337, %350 : vector<2x256xf32>
    %c251 = arith.constant 251 : index
    %352 = memref.load %arg2[%c251] : memref<300xf32, #tpu.memory_space<smem>>
    %353 = vector.broadcast %352 : f32 to vector<2x256xf32>
    %354 = arith.mulf %353, %343 : vector<2x256xf32>
    %355 = arith.addf %341, %354 : vector<2x256xf32>
    %356 = arith.mulf %33, %347 : vector<2x256xf32>
    %357 = arith.addf %68, %356 : vector<2x256xf32>
    %358 = arith.mulf %33, %351 : vector<2x256xf32>
    %359 = arith.addf %70, %358 : vector<2x256xf32>
    %360 = arith.mulf %33, %355 : vector<2x256xf32>
    %361 = arith.addf %72, %360 : vector<2x256xf32>
    %cst_90 = arith.constant 0.000000e+00 : f32
    %362 = vector.broadcast %cst_90 : f32 to vector<2x256xf32>
    %cst_91 = arith.constant 0.000000e+00 : f32
    %363 = vector.broadcast %cst_91 : f32 to vector<2x256xf32>
    %cst_92 = arith.constant 0.000000e+00 : f32
    %364 = vector.broadcast %cst_92 : f32 to vector<2x256xf32>
    %c0_93 = arith.constant 0 : index
    %c0_94 = arith.constant 0 : index
    %c1_95 = arith.constant 1 : index
    %365 = vector.load %arg5[%c0_93, %c0_94, %c1_95] : memref<4x2x324xf32, #tpu.memory_space<vmem>>, vector<1x2x256xf32>
    %366 = vector.shape_cast %365 : vector<1x2x256xf32> to vector<2x256xf32>
    %c12 = arith.constant 12 : index
    %367 = memref.load %arg2[%c12] : memref<300xf32, #tpu.memory_space<smem>>
    %368 = vector.broadcast %367 : f32 to vector<2x256xf32>
    %369 = arith.mulf %368, %366 : vector<2x256xf32>
    %370 = arith.addf %362, %369 : vector<2x256xf32>
    %c13 = arith.constant 13 : index
    %371 = memref.load %arg2[%c13] : memref<300xf32, #tpu.memory_space<smem>>
    %372 = vector.broadcast %371 : f32 to vector<2x256xf32>
    %373 = arith.mulf %372, %366 : vector<2x256xf32>
    %374 = arith.addf %363, %373 : vector<2x256xf32>
    %c14 = arith.constant 14 : index
    %375 = memref.load %arg2[%c14] : memref<300xf32, #tpu.memory_space<smem>>
    %376 = vector.broadcast %375 : f32 to vector<2x256xf32>
    %377 = arith.mulf %376, %366 : vector<2x256xf32>
    %378 = arith.addf %364, %377 : vector<2x256xf32>
    %c1_96 = arith.constant 1 : index
    %c0_97 = arith.constant 0 : index
    %c1_98 = arith.constant 1 : index
    %379 = vector.load %arg5[%c1_96, %c0_97, %c1_98] : memref<4x2x324xf32, #tpu.memory_space<vmem>>, vector<1x2x256xf32>
    %380 = vector.shape_cast %379 : vector<1x2x256xf32> to vector<2x256xf32>
    %c15 = arith.constant 15 : index
    %381 = memref.load %arg2[%c15] : memref<300xf32, #tpu.memory_space<smem>>
    %382 = vector.broadcast %381 : f32 to vector<2x256xf32>
    %383 = arith.mulf %382, %380 : vector<2x256xf32>
    %384 = arith.addf %370, %383 : vector<2x256xf32>
    %c16_99 = arith.constant 16 : index
    %385 = memref.load %arg2[%c16_99] : memref<300xf32, #tpu.memory_space<smem>>
    %386 = vector.broadcast %385 : f32 to vector<2x256xf32>
    %387 = arith.mulf %386, %380 : vector<2x256xf32>
    %388 = arith.addf %374, %387 : vector<2x256xf32>
    %c17 = arith.constant 17 : index
    %389 = memref.load %arg2[%c17] : memref<300xf32, #tpu.memory_space<smem>>
    %390 = vector.broadcast %389 : f32 to vector<2x256xf32>
    %391 = arith.mulf %390, %380 : vector<2x256xf32>
    %392 = arith.addf %378, %391 : vector<2x256xf32>
    %c2_100 = arith.constant 2 : index
    %c0_101 = arith.constant 0 : index
    %c1_102 = arith.constant 1 : index
    %393 = vector.load %arg5[%c2_100, %c0_101, %c1_102] : memref<4x2x324xf32, #tpu.memory_space<vmem>>, vector<1x2x256xf32>
    %394 = vector.shape_cast %393 : vector<1x2x256xf32> to vector<2x256xf32>
    %c18 = arith.constant 18 : index
    %395 = memref.load %arg2[%c18] : memref<300xf32, #tpu.memory_space<smem>>
    %396 = vector.broadcast %395 : f32 to vector<2x256xf32>
    %397 = arith.mulf %396, %394 : vector<2x256xf32>
    %398 = arith.addf %384, %397 : vector<2x256xf32>
    %c19 = arith.constant 19 : index
    %399 = memref.load %arg2[%c19] : memref<300xf32, #tpu.memory_space<smem>>
    %400 = vector.broadcast %399 : f32 to vector<2x256xf32>
    %401 = arith.mulf %400, %394 : vector<2x256xf32>
    %402 = arith.addf %388, %401 : vector<2x256xf32>
    %c20 = arith.constant 20 : index
    %403 = memref.load %arg2[%c20] : memref<300xf32, #tpu.memory_space<smem>>
    %404 = vector.broadcast %403 : f32 to vector<2x256xf32>
    %405 = arith.mulf %404, %394 : vector<2x256xf32>
    %406 = arith.addf %392, %405 : vector<2x256xf32>
    %c3_103 = arith.constant 3 : index
    %c0_104 = arith.constant 0 : index
    %c1_105 = arith.constant 1 : index
    %407 = vector.load %arg5[%c3_103, %c0_104, %c1_105] : memref<4x2x324xf32, #tpu.memory_space<vmem>>, vector<1x2x256xf32>
    %408 = vector.shape_cast %407 : vector<1x2x256xf32> to vector<2x256xf32>
    %c21 = arith.constant 21 : index
    %409 = memref.load %arg2[%c21] : memref<300xf32, #tpu.memory_space<smem>>
    %410 = vector.broadcast %409 : f32 to vector<2x256xf32>
    %411 = arith.mulf %410, %408 : vector<2x256xf32>
    %412 = arith.addf %398, %411 : vector<2x256xf32>
    %c22 = arith.constant 22 : index
    %413 = memref.load %arg2[%c22] : memref<300xf32, #tpu.memory_space<smem>>
    %414 = vector.broadcast %413 : f32 to vector<2x256xf32>
    %415 = arith.mulf %414, %408 : vector<2x256xf32>
    %416 = arith.addf %402, %415 : vector<2x256xf32>
    %c23 = arith.constant 23 : index
    %417 = memref.load %arg2[%c23] : memref<300xf32, #tpu.memory_space<smem>>
    %418 = vector.broadcast %417 : f32 to vector<2x256xf32>
    %419 = arith.mulf %418, %408 : vector<2x256xf32>
    %420 = arith.addf %406, %419 : vector<2x256xf32>
    %c0_106 = arith.constant 0 : index
    %c0_107 = arith.constant 0 : index
    %c17_108 = arith.constant 17 : index
    %421 = vector.load %arg5[%c0_106, %c0_107, %c17_108] : memref<4x2x324xf32, #tpu.memory_space<vmem>>, vector<1x2x256xf32>
    %422 = vector.shape_cast %421 : vector<1x2x256xf32> to vector<2x256xf32>
    %c72 = arith.constant 72 : index
    %423 = memref.load %arg2[%c72] : memref<300xf32, #tpu.memory_space<smem>>
    %424 = vector.broadcast %423 : f32 to vector<2x256xf32>
    %425 = arith.mulf %424, %422 : vector<2x256xf32>
    %426 = arith.addf %412, %425 : vector<2x256xf32>
    %c73 = arith.constant 73 : index
    %427 = memref.load %arg2[%c73] : memref<300xf32, #tpu.memory_space<smem>>
    %428 = vector.broadcast %427 : f32 to vector<2x256xf32>
    %429 = arith.mulf %428, %422 : vector<2x256xf32>
    %430 = arith.addf %416, %429 : vector<2x256xf32>
    %c74 = arith.constant 74 : index
    %431 = memref.load %arg2[%c74] : memref<300xf32, #tpu.memory_space<smem>>
    %432 = vector.broadcast %431 : f32 to vector<2x256xf32>
    %433 = arith.mulf %432, %422 : vector<2x256xf32>
    %434 = arith.addf %420, %433 : vector<2x256xf32>
    %c1_109 = arith.constant 1 : index
    %c0_110 = arith.constant 0 : index
    %c17_111 = arith.constant 17 : index
    %435 = vector.load %arg5[%c1_109, %c0_110, %c17_111] : memref<4x2x324xf32, #tpu.memory_space<vmem>>, vector<1x2x256xf32>
    %436 = vector.shape_cast %435 : vector<1x2x256xf32> to vector<2x256xf32>
    %c75 = arith.constant 75 : index
    %437 = memref.load %arg2[%c75] : memref<300xf32, #tpu.memory_space<smem>>
    %438 = vector.broadcast %437 : f32 to vector<2x256xf32>
    %439 = arith.mulf %438, %436 : vector<2x256xf32>
    %440 = arith.addf %426, %439 : vector<2x256xf32>
    %c76 = arith.constant 76 : index
    %441 = memref.load %arg2[%c76] : memref<300xf32, #tpu.memory_space<smem>>
    %442 = vector.broadcast %441 : f32 to vector<2x256xf32>
    %443 = arith.mulf %442, %436 : vector<2x256xf32>
    %444 = arith.addf %430, %443 : vector<2x256xf32>
    %c77 = arith.constant 77 : index
    %445 = memref.load %arg2[%c77] : memref<300xf32, #tpu.memory_space<smem>>
    %446 = vector.broadcast %445 : f32 to vector<2x256xf32>
    %447 = arith.mulf %446, %436 : vector<2x256xf32>
    %448 = arith.addf %434, %447 : vector<2x256xf32>
    %c2_112 = arith.constant 2 : index
    %c0_113 = arith.constant 0 : index
    %c17_114 = arith.constant 17 : index
    %449 = vector.load %arg5[%c2_112, %c0_113, %c17_114] : memref<4x2x324xf32, #tpu.memory_space<vmem>>, vector<1x2x256xf32>
    %450 = vector.shape_cast %449 : vector<1x2x256xf32> to vector<2x256xf32>
    %c78 = arith.constant 78 : index
    %451 = memref.load %arg2[%c78] : memref<300xf32, #tpu.memory_space<smem>>
    %452 = vector.broadcast %451 : f32 to vector<2x256xf32>
    %453 = arith.mulf %452, %450 : vector<2x256xf32>
    %454 = arith.addf %440, %453 : vector<2x256xf32>
    %c79 = arith.constant 79 : index
    %455 = memref.load %arg2[%c79] : memref<300xf32, #tpu.memory_space<smem>>
    %456 = vector.broadcast %455 : f32 to vector<2x256xf32>
    %457 = arith.mulf %456, %450 : vector<2x256xf32>
    %458 = arith.addf %444, %457 : vector<2x256xf32>
    %c80 = arith.constant 80 : index
    %459 = memref.load %arg2[%c80] : memref<300xf32, #tpu.memory_space<smem>>
    %460 = vector.broadcast %459 : f32 to vector<2x256xf32>
    %461 = arith.mulf %460, %450 : vector<2x256xf32>
    %462 = arith.addf %448, %461 : vector<2x256xf32>
    %c3_115 = arith.constant 3 : index
    %c0_116 = arith.constant 0 : index
    %c17_117 = arith.constant 17 : index
    %463 = vector.load %arg5[%c3_115, %c0_116, %c17_117] : memref<4x2x324xf32, #tpu.memory_space<vmem>>, vector<1x2x256xf32>
    %464 = vector.shape_cast %463 : vector<1x2x256xf32> to vector<2x256xf32>
    %c81 = arith.constant 81 : index
    %465 = memref.load %arg2[%c81] : memref<300xf32, #tpu.memory_space<smem>>
    %466 = vector.broadcast %465 : f32 to vector<2x256xf32>
    %467 = arith.mulf %466, %464 : vector<2x256xf32>
    %468 = arith.addf %454, %467 : vector<2x256xf32>
    %c82 = arith.constant 82 : index
    %469 = memref.load %arg2[%c82] : memref<300xf32, #tpu.memory_space<smem>>
    %470 = vector.broadcast %469 : f32 to vector<2x256xf32>
    %471 = arith.mulf %470, %464 : vector<2x256xf32>
    %472 = arith.addf %458, %471 : vector<2x256xf32>
    %c83 = arith.constant 83 : index
    %473 = memref.load %arg2[%c83] : memref<300xf32, #tpu.memory_space<smem>>
    %474 = vector.broadcast %473 : f32 to vector<2x256xf32>
    %475 = arith.mulf %474, %464 : vector<2x256xf32>
    %476 = arith.addf %462, %475 : vector<2x256xf32>
    %c0_118 = arith.constant 0 : index
    %c0_119 = arith.constant 0 : index
    %c33 = arith.constant 33 : index
    %477 = vector.load %arg5[%c0_118, %c0_119, %c33] : memref<4x2x324xf32, #tpu.memory_space<vmem>>, vector<1x2x256xf32>
    %478 = vector.shape_cast %477 : vector<1x2x256xf32> to vector<2x256xf32>
    %c132 = arith.constant 132 : index
    %479 = memref.load %arg2[%c132] : memref<300xf32, #tpu.memory_space<smem>>
    %480 = vector.broadcast %479 : f32 to vector<2x256xf32>
    %481 = arith.mulf %480, %478 : vector<2x256xf32>
    %482 = arith.addf %468, %481 : vector<2x256xf32>
    %c133 = arith.constant 133 : index
    %483 = memref.load %arg2[%c133] : memref<300xf32, #tpu.memory_space<smem>>
    %484 = vector.broadcast %483 : f32 to vector<2x256xf32>
    %485 = arith.mulf %484, %478 : vector<2x256xf32>
    %486 = arith.addf %472, %485 : vector<2x256xf32>
    %c134 = arith.constant 134 : index
    %487 = memref.load %arg2[%c134] : memref<300xf32, #tpu.memory_space<smem>>
    %488 = vector.broadcast %487 : f32 to vector<2x256xf32>
    %489 = arith.mulf %488, %478 : vector<2x256xf32>
    %490 = arith.addf %476, %489 : vector<2x256xf32>
    %c1_120 = arith.constant 1 : index
    %c0_121 = arith.constant 0 : index
    %c33_122 = arith.constant 33 : index
    %491 = vector.load %arg5[%c1_120, %c0_121, %c33_122] : memref<4x2x324xf32, #tpu.memory_space<vmem>>, vector<1x2x256xf32>
    %492 = vector.shape_cast %491 : vector<1x2x256xf32> to vector<2x256xf32>
    %c135 = arith.constant 135 : index
    %493 = memref.load %arg2[%c135] : memref<300xf32, #tpu.memory_space<smem>>
    %494 = vector.broadcast %493 : f32 to vector<2x256xf32>
    %495 = arith.mulf %494, %492 : vector<2x256xf32>
    %496 = arith.addf %482, %495 : vector<2x256xf32>
    %c136 = arith.constant 136 : index
    %497 = memref.load %arg2[%c136] : memref<300xf32, #tpu.memory_space<smem>>
    %498 = vector.broadcast %497 : f32 to vector<2x256xf32>
    %499 = arith.mulf %498, %492 : vector<2x256xf32>
    %500 = arith.addf %486, %499 : vector<2x256xf32>
    %c137 = arith.constant 137 : index
    %501 = memref.load %arg2[%c137] : memref<300xf32, #tpu.memory_space<smem>>
    %502 = vector.broadcast %501 : f32 to vector<2x256xf32>
    %503 = arith.mulf %502, %492 : vector<2x256xf32>
    %504 = arith.addf %490, %503 : vector<2x256xf32>
    %c2_123 = arith.constant 2 : index
    %c0_124 = arith.constant 0 : index
    %c33_125 = arith.constant 33 : index
    %505 = vector.load %arg5[%c2_123, %c0_124, %c33_125] : memref<4x2x324xf32, #tpu.memory_space<vmem>>, vector<1x2x256xf32>
    %506 = vector.shape_cast %505 : vector<1x2x256xf32> to vector<2x256xf32>
    %c138 = arith.constant 138 : index
    %507 = memref.load %arg2[%c138] : memref<300xf32, #tpu.memory_space<smem>>
    %508 = vector.broadcast %507 : f32 to vector<2x256xf32>
    %509 = arith.mulf %508, %506 : vector<2x256xf32>
    %510 = arith.addf %496, %509 : vector<2x256xf32>
    %c139 = arith.constant 139 : index
    %511 = memref.load %arg2[%c139] : memref<300xf32, #tpu.memory_space<smem>>
    %512 = vector.broadcast %511 : f32 to vector<2x256xf32>
    %513 = arith.mulf %512, %506 : vector<2x256xf32>
    %514 = arith.addf %500, %513 : vector<2x256xf32>
    %c140 = arith.constant 140 : index
    %515 = memref.load %arg2[%c140] : memref<300xf32, #tpu.memory_space<smem>>
    %516 = vector.broadcast %515 : f32 to vector<2x256xf32>
    %517 = arith.mulf %516, %506 : vector<2x256xf32>
    %518 = arith.addf %504, %517 : vector<2x256xf32>
    %c3_126 = arith.constant 3 : index
    %c0_127 = arith.constant 0 : index
    %c33_128 = arith.constant 33 : index
    %519 = vector.load %arg5[%c3_126, %c0_127, %c33_128] : memref<4x2x324xf32, #tpu.memory_space<vmem>>, vector<1x2x256xf32>
    %520 = vector.shape_cast %519 : vector<1x2x256xf32> to vector<2x256xf32>
    %c141 = arith.constant 141 : index
    %521 = memref.load %arg2[%c141] : memref<300xf32, #tpu.memory_space<smem>>
    %522 = vector.broadcast %521 : f32 to vector<2x256xf32>
    %523 = arith.mulf %522, %520 : vector<2x256xf32>
    %524 = arith.addf %510, %523 : vector<2x256xf32>
    %c142 = arith.constant 142 : index
    %525 = memref.load %arg2[%c142] : memref<300xf32, #tpu.memory_space<smem>>
    %526 = vector.broadcast %525 : f32 to vector<2x256xf32>
    %527 = arith.mulf %526, %520 : vector<2x256xf32>
    %528 = arith.addf %514, %527 : vector<2x256xf32>
    %c143 = arith.constant 143 : index
    %529 = memref.load %arg2[%c143] : memref<300xf32, #tpu.memory_space<smem>>
    %530 = vector.broadcast %529 : f32 to vector<2x256xf32>
    %531 = arith.mulf %530, %520 : vector<2x256xf32>
    %532 = arith.addf %518, %531 : vector<2x256xf32>
    %c0_129 = arith.constant 0 : index
    %c0_130 = arith.constant 0 : index
    %c49 = arith.constant 49 : index
    %533 = vector.load %arg5[%c0_129, %c0_130, %c49] : memref<4x2x324xf32, #tpu.memory_space<vmem>>, vector<1x2x256xf32>
    %534 = vector.shape_cast %533 : vector<1x2x256xf32> to vector<2x256xf32>
    %c192 = arith.constant 192 : index
    %535 = memref.load %arg2[%c192] : memref<300xf32, #tpu.memory_space<smem>>
    %536 = vector.broadcast %535 : f32 to vector<2x256xf32>
    %537 = arith.mulf %536, %534 : vector<2x256xf32>
    %538 = arith.addf %524, %537 : vector<2x256xf32>
    %c193 = arith.constant 193 : index
    %539 = memref.load %arg2[%c193] : memref<300xf32, #tpu.memory_space<smem>>
    %540 = vector.broadcast %539 : f32 to vector<2x256xf32>
    %541 = arith.mulf %540, %534 : vector<2x256xf32>
    %542 = arith.addf %528, %541 : vector<2x256xf32>
    %c194 = arith.constant 194 : index
    %543 = memref.load %arg2[%c194] : memref<300xf32, #tpu.memory_space<smem>>
    %544 = vector.broadcast %543 : f32 to vector<2x256xf32>
    %545 = arith.mulf %544, %534 : vector<2x256xf32>
    %546 = arith.addf %532, %545 : vector<2x256xf32>
    %c1_131 = arith.constant 1 : index
    %c0_132 = arith.constant 0 : index
    %c49_133 = arith.constant 49 : index
    %547 = vector.load %arg5[%c1_131, %c0_132, %c49_133] : memref<4x2x324xf32, #tpu.memory_space<vmem>>, vector<1x2x256xf32>
    %548 = vector.shape_cast %547 : vector<1x2x256xf32> to vector<2x256xf32>
    %c195 = arith.constant 195 : index
    %549 = memref.load %arg2[%c195] : memref<300xf32, #tpu.memory_space<smem>>
    %550 = vector.broadcast %549 : f32 to vector<2x256xf32>
    %551 = arith.mulf %550, %548 : vector<2x256xf32>
    %552 = arith.addf %538, %551 : vector<2x256xf32>
    %c196 = arith.constant 196 : index
    %553 = memref.load %arg2[%c196] : memref<300xf32, #tpu.memory_space<smem>>
    %554 = vector.broadcast %553 : f32 to vector<2x256xf32>
    %555 = arith.mulf %554, %548 : vector<2x256xf32>
    %556 = arith.addf %542, %555 : vector<2x256xf32>
    %c197 = arith.constant 197 : index
    %557 = memref.load %arg2[%c197] : memref<300xf32, #tpu.memory_space<smem>>
    %558 = vector.broadcast %557 : f32 to vector<2x256xf32>
    %559 = arith.mulf %558, %548 : vector<2x256xf32>
    %560 = arith.addf %546, %559 : vector<2x256xf32>
    %c2_134 = arith.constant 2 : index
    %c0_135 = arith.constant 0 : index
    %c49_136 = arith.constant 49 : index
    %561 = vector.load %arg5[%c2_134, %c0_135, %c49_136] : memref<4x2x324xf32, #tpu.memory_space<vmem>>, vector<1x2x256xf32>
    %562 = vector.shape_cast %561 : vector<1x2x256xf32> to vector<2x256xf32>
    %c198 = arith.constant 198 : index
    %563 = memref.load %arg2[%c198] : memref<300xf32, #tpu.memory_space<smem>>
    %564 = vector.broadcast %563 : f32 to vector<2x256xf32>
    %565 = arith.mulf %564, %562 : vector<2x256xf32>
    %566 = arith.addf %552, %565 : vector<2x256xf32>
    %c199 = arith.constant 199 : index
    %567 = memref.load %arg2[%c199] : memref<300xf32, #tpu.memory_space<smem>>
    %568 = vector.broadcast %567 : f32 to vector<2x256xf32>
    %569 = arith.mulf %568, %562 : vector<2x256xf32>
    %570 = arith.addf %556, %569 : vector<2x256xf32>
    %c200 = arith.constant 200 : index
    %571 = memref.load %arg2[%c200] : memref<300xf32, #tpu.memory_space<smem>>
    %572 = vector.broadcast %571 : f32 to vector<2x256xf32>
    %573 = arith.mulf %572, %562 : vector<2x256xf32>
    %574 = arith.addf %560, %573 : vector<2x256xf32>
    %c3_137 = arith.constant 3 : index
    %c0_138 = arith.constant 0 : index
    %c49_139 = arith.constant 49 : index
    %575 = vector.load %arg5[%c3_137, %c0_138, %c49_139] : memref<4x2x324xf32, #tpu.memory_space<vmem>>, vector<1x2x256xf32>
    %576 = vector.shape_cast %575 : vector<1x2x256xf32> to vector<2x256xf32>
    %c201 = arith.constant 201 : index
    %577 = memref.load %arg2[%c201] : memref<300xf32, #tpu.memory_space<smem>>
    %578 = vector.broadcast %577 : f32 to vector<2x256xf32>
    %579 = arith.mulf %578, %576 : vector<2x256xf32>
    %580 = arith.addf %566, %579 : vector<2x256xf32>
    %c202 = arith.constant 202 : index
    %581 = memref.load %arg2[%c202] : memref<300xf32, #tpu.memory_space<smem>>
    %582 = vector.broadcast %581 : f32 to vector<2x256xf32>
    %583 = arith.mulf %582, %576 : vector<2x256xf32>
    %584 = arith.addf %570, %583 : vector<2x256xf32>
    %c203 = arith.constant 203 : index
    %585 = memref.load %arg2[%c203] : memref<300xf32, #tpu.memory_space<smem>>
    %586 = vector.broadcast %585 : f32 to vector<2x256xf32>
    %587 = arith.mulf %586, %576 : vector<2x256xf32>
    %588 = arith.addf %574, %587 : vector<2x256xf32>
    %c0_140 = arith.constant 0 : index
    %c0_141 = arith.constant 0 : index
    %c65_142 = arith.constant 65 : index
    %589 = vector.load %arg5[%c0_140, %c0_141, %c65_142] : memref<4x2x324xf32, #tpu.memory_space<vmem>>, vector<1x2x256xf32>
    %590 = vector.shape_cast %589 : vector<1x2x256xf32> to vector<2x256xf32>
    %c252 = arith.constant 252 : index
    %591 = memref.load %arg2[%c252] : memref<300xf32, #tpu.memory_space<smem>>
    %592 = vector.broadcast %591 : f32 to vector<2x256xf32>
    %593 = arith.mulf %592, %590 : vector<2x256xf32>
    %594 = arith.addf %580, %593 : vector<2x256xf32>
    %c253 = arith.constant 253 : index
    %595 = memref.load %arg2[%c253] : memref<300xf32, #tpu.memory_space<smem>>
    %596 = vector.broadcast %595 : f32 to vector<2x256xf32>
    %597 = arith.mulf %596, %590 : vector<2x256xf32>
    %598 = arith.addf %584, %597 : vector<2x256xf32>
    %c254 = arith.constant 254 : index
    %599 = memref.load %arg2[%c254] : memref<300xf32, #tpu.memory_space<smem>>
    %600 = vector.broadcast %599 : f32 to vector<2x256xf32>
    %601 = arith.mulf %600, %590 : vector<2x256xf32>
    %602 = arith.addf %588, %601 : vector<2x256xf32>
    %c1_143 = arith.constant 1 : index
    %c0_144 = arith.constant 0 : index
    %c65_145 = arith.constant 65 : index
    %603 = vector.load %arg5[%c1_143, %c0_144, %c65_145] : memref<4x2x324xf32, #tpu.memory_space<vmem>>, vector<1x2x256xf32>
    %604 = vector.shape_cast %603 : vector<1x2x256xf32> to vector<2x256xf32>
    %c255 = arith.constant 255 : index
    %605 = memref.load %arg2[%c255] : memref<300xf32, #tpu.memory_space<smem>>
    %606 = vector.broadcast %605 : f32 to vector<2x256xf32>
    %607 = arith.mulf %606, %604 : vector<2x256xf32>
    %608 = arith.addf %594, %607 : vector<2x256xf32>
    %c256 = arith.constant 256 : index
    %609 = memref.load %arg2[%c256] : memref<300xf32, #tpu.memory_space<smem>>
    %610 = vector.broadcast %609 : f32 to vector<2x256xf32>
    %611 = arith.mulf %610, %604 : vector<2x256xf32>
    %612 = arith.addf %598, %611 : vector<2x256xf32>
    %c257 = arith.constant 257 : index
    %613 = memref.load %arg2[%c257] : memref<300xf32, #tpu.memory_space<smem>>
    %614 = vector.broadcast %613 : f32 to vector<2x256xf32>
    %615 = arith.mulf %614, %604 : vector<2x256xf32>
    %616 = arith.addf %602, %615 : vector<2x256xf32>
    %c2_146 = arith.constant 2 : index
    %c0_147 = arith.constant 0 : index
    %c65_148 = arith.constant 65 : index
    %617 = vector.load %arg5[%c2_146, %c0_147, %c65_148] : memref<4x2x324xf32, #tpu.memory_space<vmem>>, vector<1x2x256xf32>
    %618 = vector.shape_cast %617 : vector<1x2x256xf32> to vector<2x256xf32>
    %c258 = arith.constant 258 : index
    %619 = memref.load %arg2[%c258] : memref<300xf32, #tpu.memory_space<smem>>
    %620 = vector.broadcast %619 : f32 to vector<2x256xf32>
    %621 = arith.mulf %620, %618 : vector<2x256xf32>
    %622 = arith.addf %608, %621 : vector<2x256xf32>
    %c259 = arith.constant 259 : index
    %623 = memref.load %arg2[%c259] : memref<300xf32, #tpu.memory_space<smem>>
    %624 = vector.broadcast %623 : f32 to vector<2x256xf32>
    %625 = arith.mulf %624, %618 : vector<2x256xf32>
    %626 = arith.addf %612, %625 : vector<2x256xf32>
    %c260 = arith.constant 260 : index
    %627 = memref.load %arg2[%c260] : memref<300xf32, #tpu.memory_space<smem>>
    %628 = vector.broadcast %627 : f32 to vector<2x256xf32>
    %629 = arith.mulf %628, %618 : vector<2x256xf32>
    %630 = arith.addf %616, %629 : vector<2x256xf32>
    %c3_149 = arith.constant 3 : index
    %c0_150 = arith.constant 0 : index
    %c65_151 = arith.constant 65 : index
    %631 = vector.load %arg5[%c3_149, %c0_150, %c65_151] : memref<4x2x324xf32, #tpu.memory_space<vmem>>, vector<1x2x256xf32>
    %632 = vector.shape_cast %631 : vector<1x2x256xf32> to vector<2x256xf32>
    %c261 = arith.constant 261 : index
    %633 = memref.load %arg2[%c261] : memref<300xf32, #tpu.memory_space<smem>>
    %634 = vector.broadcast %633 : f32 to vector<2x256xf32>
    %635 = arith.mulf %634, %632 : vector<2x256xf32>
    %636 = arith.addf %622, %635 : vector<2x256xf32>
    %c262 = arith.constant 262 : index
    %637 = memref.load %arg2[%c262] : memref<300xf32, #tpu.memory_space<smem>>
    %638 = vector.broadcast %637 : f32 to vector<2x256xf32>
    %639 = arith.mulf %638, %632 : vector<2x256xf32>
    %640 = arith.addf %626, %639 : vector<2x256xf32>
    %c263 = arith.constant 263 : index
    %641 = memref.load %arg2[%c263] : memref<300xf32, #tpu.memory_space<smem>>
    %642 = vector.broadcast %641 : f32 to vector<2x256xf32>
    %643 = arith.mulf %642, %632 : vector<2x256xf32>
    %644 = arith.addf %630, %643 : vector<2x256xf32>
    %645 = arith.mulf %44, %636 : vector<2x256xf32>
    %646 = arith.addf %357, %645 : vector<2x256xf32>
    %647 = arith.mulf %44, %640 : vector<2x256xf32>
    %648 = arith.addf %359, %647 : vector<2x256xf32>
    %649 = arith.mulf %44, %644 : vector<2x256xf32>
    %650 = arith.addf %361, %649 : vector<2x256xf32>
    %cst_152 = arith.constant 0.000000e+00 : f32
    %651 = vector.broadcast %cst_152 : f32 to vector<2x256xf32>
    %cst_153 = arith.constant 0.000000e+00 : f32
    %652 = vector.broadcast %cst_153 : f32 to vector<2x256xf32>
    %cst_154 = arith.constant 0.000000e+00 : f32
    %653 = vector.broadcast %cst_154 : f32 to vector<2x256xf32>
    %c0_155 = arith.constant 0 : index
    %c0_156 = arith.constant 0 : index
    %c2_157 = arith.constant 2 : index
    %654 = vector.load %arg5[%c0_155, %c0_156, %c2_157] : memref<4x2x324xf32, #tpu.memory_space<vmem>>, vector<1x2x256xf32>
    %655 = vector.shape_cast %654 : vector<1x2x256xf32> to vector<2x256xf32>
    %c24 = arith.constant 24 : index
    %656 = memref.load %arg2[%c24] : memref<300xf32, #tpu.memory_space<smem>>
    %657 = vector.broadcast %656 : f32 to vector<2x256xf32>
    %658 = arith.mulf %657, %655 : vector<2x256xf32>
    %659 = arith.addf %651, %658 : vector<2x256xf32>
    %c25 = arith.constant 25 : index
    %660 = memref.load %arg2[%c25] : memref<300xf32, #tpu.memory_space<smem>>
    %661 = vector.broadcast %660 : f32 to vector<2x256xf32>
    %662 = arith.mulf %661, %655 : vector<2x256xf32>
    %663 = arith.addf %652, %662 : vector<2x256xf32>
    %c26 = arith.constant 26 : index
    %664 = memref.load %arg2[%c26] : memref<300xf32, #tpu.memory_space<smem>>
    %665 = vector.broadcast %664 : f32 to vector<2x256xf32>
    %666 = arith.mulf %665, %655 : vector<2x256xf32>
    %667 = arith.addf %653, %666 : vector<2x256xf32>
    %c1_158 = arith.constant 1 : index
    %c0_159 = arith.constant 0 : index
    %c2_160 = arith.constant 2 : index
    %668 = vector.load %arg5[%c1_158, %c0_159, %c2_160] : memref<4x2x324xf32, #tpu.memory_space<vmem>>, vector<1x2x256xf32>
    %669 = vector.shape_cast %668 : vector<1x2x256xf32> to vector<2x256xf32>
    %c27 = arith.constant 27 : index
    %670 = memref.load %arg2[%c27] : memref<300xf32, #tpu.memory_space<smem>>
    %671 = vector.broadcast %670 : f32 to vector<2x256xf32>
    %672 = arith.mulf %671, %669 : vector<2x256xf32>
    %673 = arith.addf %659, %672 : vector<2x256xf32>
    %c28 = arith.constant 28 : index
    %674 = memref.load %arg2[%c28] : memref<300xf32, #tpu.memory_space<smem>>
    %675 = vector.broadcast %674 : f32 to vector<2x256xf32>
    %676 = arith.mulf %675, %669 : vector<2x256xf32>
    %677 = arith.addf %663, %676 : vector<2x256xf32>
    %c29 = arith.constant 29 : index
    %678 = memref.load %arg2[%c29] : memref<300xf32, #tpu.memory_space<smem>>
    %679 = vector.broadcast %678 : f32 to vector<2x256xf32>
    %680 = arith.mulf %679, %669 : vector<2x256xf32>
    %681 = arith.addf %667, %680 : vector<2x256xf32>
    %c2_161 = arith.constant 2 : index
    %c0_162 = arith.constant 0 : index
    %c2_163 = arith.constant 2 : index
    %682 = vector.load %arg5[%c2_161, %c0_162, %c2_163] : memref<4x2x324xf32, #tpu.memory_space<vmem>>, vector<1x2x256xf32>
    %683 = vector.shape_cast %682 : vector<1x2x256xf32> to vector<2x256xf32>
    %c30 = arith.constant 30 : index
    %684 = memref.load %arg2[%c30] : memref<300xf32, #tpu.memory_space<smem>>
    %685 = vector.broadcast %684 : f32 to vector<2x256xf32>
    %686 = arith.mulf %685, %683 : vector<2x256xf32>
    %687 = arith.addf %673, %686 : vector<2x256xf32>
    %c31 = arith.constant 31 : index
    %688 = memref.load %arg2[%c31] : memref<300xf32, #tpu.memory_space<smem>>
    %689 = vector.broadcast %688 : f32 to vector<2x256xf32>
    %690 = arith.mulf %689, %683 : vector<2x256xf32>
    %691 = arith.addf %677, %690 : vector<2x256xf32>
    %c32_164 = arith.constant 32 : index
    %692 = memref.load %arg2[%c32_164] : memref<300xf32, #tpu.memory_space<smem>>
    %693 = vector.broadcast %692 : f32 to vector<2x256xf32>
    %694 = arith.mulf %693, %683 : vector<2x256xf32>
    %695 = arith.addf %681, %694 : vector<2x256xf32>
    %c3_165 = arith.constant 3 : index
    %c0_166 = arith.constant 0 : index
    %c2_167 = arith.constant 2 : index
    %696 = vector.load %arg5[%c3_165, %c0_166, %c2_167] : memref<4x2x324xf32, #tpu.memory_space<vmem>>, vector<1x2x256xf32>
    %697 = vector.shape_cast %696 : vector<1x2x256xf32> to vector<2x256xf32>
    %c33_168 = arith.constant 33 : index
    %698 = memref.load %arg2[%c33_168] : memref<300xf32, #tpu.memory_space<smem>>
    %699 = vector.broadcast %698 : f32 to vector<2x256xf32>
    %700 = arith.mulf %699, %697 : vector<2x256xf32>
    %701 = arith.addf %687, %700 : vector<2x256xf32>
    %c34_169 = arith.constant 34 : index
    %702 = memref.load %arg2[%c34_169] : memref<300xf32, #tpu.memory_space<smem>>
    %703 = vector.broadcast %702 : f32 to vector<2x256xf32>
    %704 = arith.mulf %703, %697 : vector<2x256xf32>
    %705 = arith.addf %691, %704 : vector<2x256xf32>
    %c35 = arith.constant 35 : index
    %706 = memref.load %arg2[%c35] : memref<300xf32, #tpu.memory_space<smem>>
    %707 = vector.broadcast %706 : f32 to vector<2x256xf32>
    %708 = arith.mulf %707, %697 : vector<2x256xf32>
    %709 = arith.addf %695, %708 : vector<2x256xf32>
    %c0_170 = arith.constant 0 : index
    %c0_171 = arith.constant 0 : index
    %c18_172 = arith.constant 18 : index
    %710 = vector.load %arg5[%c0_170, %c0_171, %c18_172] : memref<4x2x324xf32, #tpu.memory_space<vmem>>, vector<1x2x256xf32>
    %711 = vector.shape_cast %710 : vector<1x2x256xf32> to vector<2x256xf32>
    %c84 = arith.constant 84 : index
    %712 = memref.load %arg2[%c84] : memref<300xf32, #tpu.memory_space<smem>>
    %713 = vector.broadcast %712 : f32 to vector<2x256xf32>
    %714 = arith.mulf %713, %711 : vector<2x256xf32>
    %715 = arith.addf %701, %714 : vector<2x256xf32>
    %c85 = arith.constant 85 : index
    %716 = memref.load %arg2[%c85] : memref<300xf32, #tpu.memory_space<smem>>
    %717 = vector.broadcast %716 : f32 to vector<2x256xf32>
    %718 = arith.mulf %717, %711 : vector<2x256xf32>
    %719 = arith.addf %705, %718 : vector<2x256xf32>
    %c86 = arith.constant 86 : index
    %720 = memref.load %arg2[%c86] : memref<300xf32, #tpu.memory_space<smem>>
    %721 = vector.broadcast %720 : f32 to vector<2x256xf32>
    %722 = arith.mulf %721, %711 : vector<2x256xf32>
    %723 = arith.addf %709, %722 : vector<2x256xf32>
    %c1_173 = arith.constant 1 : index
    %c0_174 = arith.constant 0 : index
    %c18_175 = arith.constant 18 : index
    %724 = vector.load %arg5[%c1_173, %c0_174, %c18_175] : memref<4x2x324xf32, #tpu.memory_space<vmem>>, vector<1x2x256xf32>
    %725 = vector.shape_cast %724 : vector<1x2x256xf32> to vector<2x256xf32>
    %c87 = arith.constant 87 : index
    %726 = memref.load %arg2[%c87] : memref<300xf32, #tpu.memory_space<smem>>
    %727 = vector.broadcast %726 : f32 to vector<2x256xf32>
    %728 = arith.mulf %727, %725 : vector<2x256xf32>
    %729 = arith.addf %715, %728 : vector<2x256xf32>
    %c88 = arith.constant 88 : index
    %730 = memref.load %arg2[%c88] : memref<300xf32, #tpu.memory_space<smem>>
    %731 = vector.broadcast %730 : f32 to vector<2x256xf32>
    %732 = arith.mulf %731, %725 : vector<2x256xf32>
    %733 = arith.addf %719, %732 : vector<2x256xf32>
    %c89 = arith.constant 89 : index
    %734 = memref.load %arg2[%c89] : memref<300xf32, #tpu.memory_space<smem>>
    %735 = vector.broadcast %734 : f32 to vector<2x256xf32>
    %736 = arith.mulf %735, %725 : vector<2x256xf32>
    %737 = arith.addf %723, %736 : vector<2x256xf32>
    %c2_176 = arith.constant 2 : index
    %c0_177 = arith.constant 0 : index
    %c18_178 = arith.constant 18 : index
    %738 = vector.load %arg5[%c2_176, %c0_177, %c18_178] : memref<4x2x324xf32, #tpu.memory_space<vmem>>, vector<1x2x256xf32>
    %739 = vector.shape_cast %738 : vector<1x2x256xf32> to vector<2x256xf32>
    %c90 = arith.constant 90 : index
    %740 = memref.load %arg2[%c90] : memref<300xf32, #tpu.memory_space<smem>>
    %741 = vector.broadcast %740 : f32 to vector<2x256xf32>
    %742 = arith.mulf %741, %739 : vector<2x256xf32>
    %743 = arith.addf %729, %742 : vector<2x256xf32>
    %c91 = arith.constant 91 : index
    %744 = memref.load %arg2[%c91] : memref<300xf32, #tpu.memory_space<smem>>
    %745 = vector.broadcast %744 : f32 to vector<2x256xf32>
    %746 = arith.mulf %745, %739 : vector<2x256xf32>
    %747 = arith.addf %733, %746 : vector<2x256xf32>
    %c92 = arith.constant 92 : index
    %748 = memref.load %arg2[%c92] : memref<300xf32, #tpu.memory_space<smem>>
    %749 = vector.broadcast %748 : f32 to vector<2x256xf32>
    %750 = arith.mulf %749, %739 : vector<2x256xf32>
    %751 = arith.addf %737, %750 : vector<2x256xf32>
    %c3_179 = arith.constant 3 : index
    %c0_180 = arith.constant 0 : index
    %c18_181 = arith.constant 18 : index
    %752 = vector.load %arg5[%c3_179, %c0_180, %c18_181] : memref<4x2x324xf32, #tpu.memory_space<vmem>>, vector<1x2x256xf32>
    %753 = vector.shape_cast %752 : vector<1x2x256xf32> to vector<2x256xf32>
    %c93 = arith.constant 93 : index
    %754 = memref.load %arg2[%c93] : memref<300xf32, #tpu.memory_space<smem>>
    %755 = vector.broadcast %754 : f32 to vector<2x256xf32>
    %756 = arith.mulf %755, %753 : vector<2x256xf32>
    %757 = arith.addf %743, %756 : vector<2x256xf32>
    %c94 = arith.constant 94 : index
    %758 = memref.load %arg2[%c94] : memref<300xf32, #tpu.memory_space<smem>>
    %759 = vector.broadcast %758 : f32 to vector<2x256xf32>
    %760 = arith.mulf %759, %753 : vector<2x256xf32>
    %761 = arith.addf %747, %760 : vector<2x256xf32>
    %c95 = arith.constant 95 : index
    %762 = memref.load %arg2[%c95] : memref<300xf32, #tpu.memory_space<smem>>
    %763 = vector.broadcast %762 : f32 to vector<2x256xf32>
    %764 = arith.mulf %763, %753 : vector<2x256xf32>
    %765 = arith.addf %751, %764 : vector<2x256xf32>
    %c0_182 = arith.constant 0 : index
    %c0_183 = arith.constant 0 : index
    %c34_184 = arith.constant 34 : index
    %766 = vector.load %arg5[%c0_182, %c0_183, %c34_184] : memref<4x2x324xf32, #tpu.memory_space<vmem>>, vector<1x2x256xf32>
    %767 = vector.shape_cast %766 : vector<1x2x256xf32> to vector<2x256xf32>
    %c144 = arith.constant 144 : index
    %768 = memref.load %arg2[%c144] : memref<300xf32, #tpu.memory_space<smem>>
    %769 = vector.broadcast %768 : f32 to vector<2x256xf32>
    %770 = arith.mulf %769, %767 : vector<2x256xf32>
    %771 = arith.addf %757, %770 : vector<2x256xf32>
    %c145 = arith.constant 145 : index
    %772 = memref.load %arg2[%c145] : memref<300xf32, #tpu.memory_space<smem>>
    %773 = vector.broadcast %772 : f32 to vector<2x256xf32>
    %774 = arith.mulf %773, %767 : vector<2x256xf32>
    %775 = arith.addf %761, %774 : vector<2x256xf32>
    %c146 = arith.constant 146 : index
    %776 = memref.load %arg2[%c146] : memref<300xf32, #tpu.memory_space<smem>>
    %777 = vector.broadcast %776 : f32 to vector<2x256xf32>
    %778 = arith.mulf %777, %767 : vector<2x256xf32>
    %779 = arith.addf %765, %778 : vector<2x256xf32>
    %c1_185 = arith.constant 1 : index
    %c0_186 = arith.constant 0 : index
    %c34_187 = arith.constant 34 : index
    %780 = vector.load %arg5[%c1_185, %c0_186, %c34_187] : memref<4x2x324xf32, #tpu.memory_space<vmem>>, vector<1x2x256xf32>
    %781 = vector.shape_cast %780 : vector<1x2x256xf32> to vector<2x256xf32>
    %c147 = arith.constant 147 : index
    %782 = memref.load %arg2[%c147] : memref<300xf32, #tpu.memory_space<smem>>
    %783 = vector.broadcast %782 : f32 to vector<2x256xf32>
    %784 = arith.mulf %783, %781 : vector<2x256xf32>
    %785 = arith.addf %771, %784 : vector<2x256xf32>
    %c148 = arith.constant 148 : index
    %786 = memref.load %arg2[%c148] : memref<300xf32, #tpu.memory_space<smem>>
    %787 = vector.broadcast %786 : f32 to vector<2x256xf32>
    %788 = arith.mulf %787, %781 : vector<2x256xf32>
    %789 = arith.addf %775, %788 : vector<2x256xf32>
    %c149 = arith.constant 149 : index
    %790 = memref.load %arg2[%c149] : memref<300xf32, #tpu.memory_space<smem>>
    %791 = vector.broadcast %790 : f32 to vector<2x256xf32>
    %792 = arith.mulf %791, %781 : vector<2x256xf32>
    %793 = arith.addf %779, %792 : vector<2x256xf32>
    %c2_188 = arith.constant 2 : index
    %c0_189 = arith.constant 0 : index
    %c34_190 = arith.constant 34 : index
    %794 = vector.load %arg5[%c2_188, %c0_189, %c34_190] : memref<4x2x324xf32, #tpu.memory_space<vmem>>, vector<1x2x256xf32>
    %795 = vector.shape_cast %794 : vector<1x2x256xf32> to vector<2x256xf32>
    %c150 = arith.constant 150 : index
    %796 = memref.load %arg2[%c150] : memref<300xf32, #tpu.memory_space<smem>>
    %797 = vector.broadcast %796 : f32 to vector<2x256xf32>
    %798 = arith.mulf %797, %795 : vector<2x256xf32>
    %799 = arith.addf %785, %798 : vector<2x256xf32>
    %c151 = arith.constant 151 : index
    %800 = memref.load %arg2[%c151] : memref<300xf32, #tpu.memory_space<smem>>
    %801 = vector.broadcast %800 : f32 to vector<2x256xf32>
    %802 = arith.mulf %801, %795 : vector<2x256xf32>
    %803 = arith.addf %789, %802 : vector<2x256xf32>
    %c152 = arith.constant 152 : index
    %804 = memref.load %arg2[%c152] : memref<300xf32, #tpu.memory_space<smem>>
    %805 = vector.broadcast %804 : f32 to vector<2x256xf32>
    %806 = arith.mulf %805, %795 : vector<2x256xf32>
    %807 = arith.addf %793, %806 : vector<2x256xf32>
    %c3_191 = arith.constant 3 : index
    %c0_192 = arith.constant 0 : index
    %c34_193 = arith.constant 34 : index
    %808 = vector.load %arg5[%c3_191, %c0_192, %c34_193] : memref<4x2x324xf32, #tpu.memory_space<vmem>>, vector<1x2x256xf32>
    %809 = vector.shape_cast %808 : vector<1x2x256xf32> to vector<2x256xf32>
    %c153 = arith.constant 153 : index
    %810 = memref.load %arg2[%c153] : memref<300xf32, #tpu.memory_space<smem>>
    %811 = vector.broadcast %810 : f32 to vector<2x256xf32>
    %812 = arith.mulf %811, %809 : vector<2x256xf32>
    %813 = arith.addf %799, %812 : vector<2x256xf32>
    %c154 = arith.constant 154 : index
    %814 = memref.load %arg2[%c154] : memref<300xf32, #tpu.memory_space<smem>>
    %815 = vector.broadcast %814 : f32 to vector<2x256xf32>
    %816 = arith.mulf %815, %809 : vector<2x256xf32>
    %817 = arith.addf %803, %816 : vector<2x256xf32>
    %c155 = arith.constant 155 : index
    %818 = memref.load %arg2[%c155] : memref<300xf32, #tpu.memory_space<smem>>
    %819 = vector.broadcast %818 : f32 to vector<2x256xf32>
    %820 = arith.mulf %819, %809 : vector<2x256xf32>
    %821 = arith.addf %807, %820 : vector<2x256xf32>
    %c0_194 = arith.constant 0 : index
    %c0_195 = arith.constant 0 : index
    %c50 = arith.constant 50 : index
    %822 = vector.load %arg5[%c0_194, %c0_195, %c50] : memref<4x2x324xf32, #tpu.memory_space<vmem>>, vector<1x2x256xf32>
    %823 = vector.shape_cast %822 : vector<1x2x256xf32> to vector<2x256xf32>
    %c204 = arith.constant 204 : index
    %824 = memref.load %arg2[%c204] : memref<300xf32, #tpu.memory_space<smem>>
    %825 = vector.broadcast %824 : f32 to vector<2x256xf32>
    %826 = arith.mulf %825, %823 : vector<2x256xf32>
    %827 = arith.addf %813, %826 : vector<2x256xf32>
    %c205 = arith.constant 205 : index
    %828 = memref.load %arg2[%c205] : memref<300xf32, #tpu.memory_space<smem>>
    %829 = vector.broadcast %828 : f32 to vector<2x256xf32>
    %830 = arith.mulf %829, %823 : vector<2x256xf32>
    %831 = arith.addf %817, %830 : vector<2x256xf32>
    %c206 = arith.constant 206 : index
    %832 = memref.load %arg2[%c206] : memref<300xf32, #tpu.memory_space<smem>>
    %833 = vector.broadcast %832 : f32 to vector<2x256xf32>
    %834 = arith.mulf %833, %823 : vector<2x256xf32>
    %835 = arith.addf %821, %834 : vector<2x256xf32>
    %c1_196 = arith.constant 1 : index
    %c0_197 = arith.constant 0 : index
    %c50_198 = arith.constant 50 : index
    %836 = vector.load %arg5[%c1_196, %c0_197, %c50_198] : memref<4x2x324xf32, #tpu.memory_space<vmem>>, vector<1x2x256xf32>
    %837 = vector.shape_cast %836 : vector<1x2x256xf32> to vector<2x256xf32>
    %c207 = arith.constant 207 : index
    %838 = memref.load %arg2[%c207] : memref<300xf32, #tpu.memory_space<smem>>
    %839 = vector.broadcast %838 : f32 to vector<2x256xf32>
    %840 = arith.mulf %839, %837 : vector<2x256xf32>
    %841 = arith.addf %827, %840 : vector<2x256xf32>
    %c208 = arith.constant 208 : index
    %842 = memref.load %arg2[%c208] : memref<300xf32, #tpu.memory_space<smem>>
    %843 = vector.broadcast %842 : f32 to vector<2x256xf32>
    %844 = arith.mulf %843, %837 : vector<2x256xf32>
    %845 = arith.addf %831, %844 : vector<2x256xf32>
    %c209 = arith.constant 209 : index
    %846 = memref.load %arg2[%c209] : memref<300xf32, #tpu.memory_space<smem>>
    %847 = vector.broadcast %846 : f32 to vector<2x256xf32>
    %848 = arith.mulf %847, %837 : vector<2x256xf32>
    %849 = arith.addf %835, %848 : vector<2x256xf32>
    %c2_199 = arith.constant 2 : index
    %c0_200 = arith.constant 0 : index
    %c50_201 = arith.constant 50 : index
    %850 = vector.load %arg5[%c2_199, %c0_200, %c50_201] : memref<4x2x324xf32, #tpu.memory_space<vmem>>, vector<1x2x256xf32>
    %851 = vector.shape_cast %850 : vector<1x2x256xf32> to vector<2x256xf32>
    %c210 = arith.constant 210 : index
    %852 = memref.load %arg2[%c210] : memref<300xf32, #tpu.memory_space<smem>>
    %853 = vector.broadcast %852 : f32 to vector<2x256xf32>
    %854 = arith.mulf %853, %851 : vector<2x256xf32>
    %855 = arith.addf %841, %854 : vector<2x256xf32>
    %c211 = arith.constant 211 : index
    %856 = memref.load %arg2[%c211] : memref<300xf32, #tpu.memory_space<smem>>
    %857 = vector.broadcast %856 : f32 to vector<2x256xf32>
    %858 = arith.mulf %857, %851 : vector<2x256xf32>
    %859 = arith.addf %845, %858 : vector<2x256xf32>
    %c212 = arith.constant 212 : index
    %860 = memref.load %arg2[%c212] : memref<300xf32, #tpu.memory_space<smem>>
    %861 = vector.broadcast %860 : f32 to vector<2x256xf32>
    %862 = arith.mulf %861, %851 : vector<2x256xf32>
    %863 = arith.addf %849, %862 : vector<2x256xf32>
    %c3_202 = arith.constant 3 : index
    %c0_203 = arith.constant 0 : index
    %c50_204 = arith.constant 50 : index
    %864 = vector.load %arg5[%c3_202, %c0_203, %c50_204] : memref<4x2x324xf32, #tpu.memory_space<vmem>>, vector<1x2x256xf32>
    %865 = vector.shape_cast %864 : vector<1x2x256xf32> to vector<2x256xf32>
    %c213 = arith.constant 213 : index
    %866 = memref.load %arg2[%c213] : memref<300xf32, #tpu.memory_space<smem>>
    %867 = vector.broadcast %866 : f32 to vector<2x256xf32>
    %868 = arith.mulf %867, %865 : vector<2x256xf32>
    %869 = arith.addf %855, %868 : vector<2x256xf32>
    %c214 = arith.constant 214 : index
    %870 = memref.load %arg2[%c214] : memref<300xf32, #tpu.memory_space<smem>>
    %871 = vector.broadcast %870 : f32 to vector<2x256xf32>
    %872 = arith.mulf %871, %865 : vector<2x256xf32>
    %873 = arith.addf %859, %872 : vector<2x256xf32>
    %c215 = arith.constant 215 : index
    %874 = memref.load %arg2[%c215] : memref<300xf32, #tpu.memory_space<smem>>
    %875 = vector.broadcast %874 : f32 to vector<2x256xf32>
    %876 = arith.mulf %875, %865 : vector<2x256xf32>
    %877 = arith.addf %863, %876 : vector<2x256xf32>
    %c0_205 = arith.constant 0 : index
    %c0_206 = arith.constant 0 : index
    %c66_207 = arith.constant 66 : index
    %878 = vector.load %arg5[%c0_205, %c0_206, %c66_207] : memref<4x2x324xf32, #tpu.memory_space<vmem>>, vector<1x2x256xf32>
    %879 = vector.shape_cast %878 : vector<1x2x256xf32> to vector<2x256xf32>
    %c264 = arith.constant 264 : index
    %880 = memref.load %arg2[%c264] : memref<300xf32, #tpu.memory_space<smem>>
    %881 = vector.broadcast %880 : f32 to vector<2x256xf32>
    %882 = arith.mulf %881, %879 : vector<2x256xf32>
    %883 = arith.addf %869, %882 : vector<2x256xf32>
    %c265 = arith.constant 265 : index
    %884 = memref.load %arg2[%c265] : memref<300xf32, #tpu.memory_space<smem>>
    %885 = vector.broadcast %884 : f32 to vector<2x256xf32>
    %886 = arith.mulf %885, %879 : vector<2x256xf32>
    %887 = arith.addf %873, %886 : vector<2x256xf32>
    %c266 = arith.constant 266 : index
    %888 = memref.load %arg2[%c266] : memref<300xf32, #tpu.memory_space<smem>>
    %889 = vector.broadcast %888 : f32 to vector<2x256xf32>
    %890 = arith.mulf %889, %879 : vector<2x256xf32>
    %891 = arith.addf %877, %890 : vector<2x256xf32>
    %c1_208 = arith.constant 1 : index
    %c0_209 = arith.constant 0 : index
    %c66_210 = arith.constant 66 : index
    %892 = vector.load %arg5[%c1_208, %c0_209, %c66_210] : memref<4x2x324xf32, #tpu.memory_space<vmem>>, vector<1x2x256xf32>
    %893 = vector.shape_cast %892 : vector<1x2x256xf32> to vector<2x256xf32>
    %c267 = arith.constant 267 : index
    %894 = memref.load %arg2[%c267] : memref<300xf32, #tpu.memory_space<smem>>
    %895 = vector.broadcast %894 : f32 to vector<2x256xf32>
    %896 = arith.mulf %895, %893 : vector<2x256xf32>
    %897 = arith.addf %883, %896 : vector<2x256xf32>
    %c268 = arith.constant 268 : index
    %898 = memref.load %arg2[%c268] : memref<300xf32, #tpu.memory_space<smem>>
    %899 = vector.broadcast %898 : f32 to vector<2x256xf32>
    %900 = arith.mulf %899, %893 : vector<2x256xf32>
    %901 = arith.addf %887, %900 : vector<2x256xf32>
    %c269 = arith.constant 269 : index
    %902 = memref.load %arg2[%c269] : memref<300xf32, #tpu.memory_space<smem>>
    %903 = vector.broadcast %902 : f32 to vector<2x256xf32>
    %904 = arith.mulf %903, %893 : vector<2x256xf32>
    %905 = arith.addf %891, %904 : vector<2x256xf32>
    %c2_211 = arith.constant 2 : index
    %c0_212 = arith.constant 0 : index
    %c66_213 = arith.constant 66 : index
    %906 = vector.load %arg5[%c2_211, %c0_212, %c66_213] : memref<4x2x324xf32, #tpu.memory_space<vmem>>, vector<1x2x256xf32>
    %907 = vector.shape_cast %906 : vector<1x2x256xf32> to vector<2x256xf32>
    %c270 = arith.constant 270 : index
    %908 = memref.load %arg2[%c270] : memref<300xf32, #tpu.memory_space<smem>>
    %909 = vector.broadcast %908 : f32 to vector<2x256xf32>
    %910 = arith.mulf %909, %907 : vector<2x256xf32>
    %911 = arith.addf %897, %910 : vector<2x256xf32>
    %c271 = arith.constant 271 : index
    %912 = memref.load %arg2[%c271] : memref<300xf32, #tpu.memory_space<smem>>
    %913 = vector.broadcast %912 : f32 to vector<2x256xf32>
    %914 = arith.mulf %913, %907 : vector<2x256xf32>
    %915 = arith.addf %901, %914 : vector<2x256xf32>
    %c272 = arith.constant 272 : index
    %916 = memref.load %arg2[%c272] : memref<300xf32, #tpu.memory_space<smem>>
    %917 = vector.broadcast %916 : f32 to vector<2x256xf32>
    %918 = arith.mulf %917, %907 : vector<2x256xf32>
    %919 = arith.addf %905, %918 : vector<2x256xf32>
    %c3_214 = arith.constant 3 : index
    %c0_215 = arith.constant 0 : index
    %c66_216 = arith.constant 66 : index
    %920 = vector.load %arg5[%c3_214, %c0_215, %c66_216] : memref<4x2x324xf32, #tpu.memory_space<vmem>>, vector<1x2x256xf32>
    %921 = vector.shape_cast %920 : vector<1x2x256xf32> to vector<2x256xf32>
    %c273 = arith.constant 273 : index
    %922 = memref.load %arg2[%c273] : memref<300xf32, #tpu.memory_space<smem>>
    %923 = vector.broadcast %922 : f32 to vector<2x256xf32>
    %924 = arith.mulf %923, %921 : vector<2x256xf32>
    %925 = arith.addf %911, %924 : vector<2x256xf32>
    %c274 = arith.constant 274 : index
    %926 = memref.load %arg2[%c274] : memref<300xf32, #tpu.memory_space<smem>>
    %927 = vector.broadcast %926 : f32 to vector<2x256xf32>
    %928 = arith.mulf %927, %921 : vector<2x256xf32>
    %929 = arith.addf %915, %928 : vector<2x256xf32>
    %c275 = arith.constant 275 : index
    %930 = memref.load %arg2[%c275] : memref<300xf32, #tpu.memory_space<smem>>
    %931 = vector.broadcast %930 : f32 to vector<2x256xf32>
    %932 = arith.mulf %931, %921 : vector<2x256xf32>
    %933 = arith.addf %919, %932 : vector<2x256xf32>
    %934 = arith.addf %646, %925 : vector<2x256xf32>
    %935 = arith.addf %648, %929 : vector<2x256xf32>
    %936 = arith.addf %650, %933 : vector<2x256xf32>
    %cst_217 = arith.constant 0.000000e+00 : f32
    %937 = vector.broadcast %cst_217 : f32 to vector<2x256xf32>
    %cst_218 = arith.constant 0.000000e+00 : f32
    %938 = vector.broadcast %cst_218 : f32 to vector<2x256xf32>
    %cst_219 = arith.constant 0.000000e+00 : f32
    %939 = vector.broadcast %cst_219 : f32 to vector<2x256xf32>
    %c0_220 = arith.constant 0 : index
    %c0_221 = arith.constant 0 : index
    %c3_222 = arith.constant 3 : index
    %940 = vector.load %arg5[%c0_220, %c0_221, %c3_222] : memref<4x2x324xf32, #tpu.memory_space<vmem>>, vector<1x2x256xf32>
    %941 = vector.shape_cast %940 : vector<1x2x256xf32> to vector<2x256xf32>
    %c36 = arith.constant 36 : index
    %942 = memref.load %arg2[%c36] : memref<300xf32, #tpu.memory_space<smem>>
    %943 = vector.broadcast %942 : f32 to vector<2x256xf32>
    %944 = arith.mulf %943, %941 : vector<2x256xf32>
    %945 = arith.addf %937, %944 : vector<2x256xf32>
    %c37 = arith.constant 37 : index
    %946 = memref.load %arg2[%c37] : memref<300xf32, #tpu.memory_space<smem>>
    %947 = vector.broadcast %946 : f32 to vector<2x256xf32>
    %948 = arith.mulf %947, %941 : vector<2x256xf32>
    %949 = arith.addf %938, %948 : vector<2x256xf32>
    %c38 = arith.constant 38 : index
    %950 = memref.load %arg2[%c38] : memref<300xf32, #tpu.memory_space<smem>>
    %951 = vector.broadcast %950 : f32 to vector<2x256xf32>
    %952 = arith.mulf %951, %941 : vector<2x256xf32>
    %953 = arith.addf %939, %952 : vector<2x256xf32>
    %c1_223 = arith.constant 1 : index
    %c0_224 = arith.constant 0 : index
    %c3_225 = arith.constant 3 : index
    %954 = vector.load %arg5[%c1_223, %c0_224, %c3_225] : memref<4x2x324xf32, #tpu.memory_space<vmem>>, vector<1x2x256xf32>
    %955 = vector.shape_cast %954 : vector<1x2x256xf32> to vector<2x256xf32>
    %c39 = arith.constant 39 : index
    %956 = memref.load %arg2[%c39] : memref<300xf32, #tpu.memory_space<smem>>
    %957 = vector.broadcast %956 : f32 to vector<2x256xf32>
    %958 = arith.mulf %957, %955 : vector<2x256xf32>
    %959 = arith.addf %945, %958 : vector<2x256xf32>
    %c40 = arith.constant 40 : index
    %960 = memref.load %arg2[%c40] : memref<300xf32, #tpu.memory_space<smem>>
    %961 = vector.broadcast %960 : f32 to vector<2x256xf32>
    %962 = arith.mulf %961, %955 : vector<2x256xf32>
    %963 = arith.addf %949, %962 : vector<2x256xf32>
    %c41 = arith.constant 41 : index
    %964 = memref.load %arg2[%c41] : memref<300xf32, #tpu.memory_space<smem>>
    %965 = vector.broadcast %964 : f32 to vector<2x256xf32>
    %966 = arith.mulf %965, %955 : vector<2x256xf32>
    %967 = arith.addf %953, %966 : vector<2x256xf32>
    %c2_226 = arith.constant 2 : index
    %c0_227 = arith.constant 0 : index
    %c3_228 = arith.constant 3 : index
    %968 = vector.load %arg5[%c2_226, %c0_227, %c3_228] : memref<4x2x324xf32, #tpu.memory_space<vmem>>, vector<1x2x256xf32>
    %969 = vector.shape_cast %968 : vector<1x2x256xf32> to vector<2x256xf32>
    %c42 = arith.constant 42 : index
    %970 = memref.load %arg2[%c42] : memref<300xf32, #tpu.memory_space<smem>>
    %971 = vector.broadcast %970 : f32 to vector<2x256xf32>
    %972 = arith.mulf %971, %969 : vector<2x256xf32>
    %973 = arith.addf %959, %972 : vector<2x256xf32>
    %c43 = arith.constant 43 : index
    %974 = memref.load %arg2[%c43] : memref<300xf32, #tpu.memory_space<smem>>
    %975 = vector.broadcast %974 : f32 to vector<2x256xf32>
    %976 = arith.mulf %975, %969 : vector<2x256xf32>
    %977 = arith.addf %963, %976 : vector<2x256xf32>
    %c44 = arith.constant 44 : index
    %978 = memref.load %arg2[%c44] : memref<300xf32, #tpu.memory_space<smem>>
    %979 = vector.broadcast %978 : f32 to vector<2x256xf32>
    %980 = arith.mulf %979, %969 : vector<2x256xf32>
    %981 = arith.addf %967, %980 : vector<2x256xf32>
    %c3_229 = arith.constant 3 : index
    %c0_230 = arith.constant 0 : index
    %c3_231 = arith.constant 3 : index
    %982 = vector.load %arg5[%c3_229, %c0_230, %c3_231] : memref<4x2x324xf32, #tpu.memory_space<vmem>>, vector<1x2x256xf32>
    %983 = vector.shape_cast %982 : vector<1x2x256xf32> to vector<2x256xf32>
    %c45 = arith.constant 45 : index
    %984 = memref.load %arg2[%c45] : memref<300xf32, #tpu.memory_space<smem>>
    %985 = vector.broadcast %984 : f32 to vector<2x256xf32>
    %986 = arith.mulf %985, %983 : vector<2x256xf32>
    %987 = arith.addf %973, %986 : vector<2x256xf32>
    %c46 = arith.constant 46 : index
    %988 = memref.load %arg2[%c46] : memref<300xf32, #tpu.memory_space<smem>>
    %989 = vector.broadcast %988 : f32 to vector<2x256xf32>
    %990 = arith.mulf %989, %983 : vector<2x256xf32>
    %991 = arith.addf %977, %990 : vector<2x256xf32>
    %c47 = arith.constant 47 : index
    %992 = memref.load %arg2[%c47] : memref<300xf32, #tpu.memory_space<smem>>
    %993 = vector.broadcast %992 : f32 to vector<2x256xf32>
    %994 = arith.mulf %993, %983 : vector<2x256xf32>
    %995 = arith.addf %981, %994 : vector<2x256xf32>
    %c0_232 = arith.constant 0 : index
    %c0_233 = arith.constant 0 : index
    %c19_234 = arith.constant 19 : index
    %996 = vector.load %arg5[%c0_232, %c0_233, %c19_234] : memref<4x2x324xf32, #tpu.memory_space<vmem>>, vector<1x2x256xf32>
    %997 = vector.shape_cast %996 : vector<1x2x256xf32> to vector<2x256xf32>
    %c96 = arith.constant 96 : index
    %998 = memref.load %arg2[%c96] : memref<300xf32, #tpu.memory_space<smem>>
    %999 = vector.broadcast %998 : f32 to vector<2x256xf32>
    %1000 = arith.mulf %999, %997 : vector<2x256xf32>
    %1001 = arith.addf %987, %1000 : vector<2x256xf32>
    %c97 = arith.constant 97 : index
    %1002 = memref.load %arg2[%c97] : memref<300xf32, #tpu.memory_space<smem>>
    %1003 = vector.broadcast %1002 : f32 to vector<2x256xf32>
    %1004 = arith.mulf %1003, %997 : vector<2x256xf32>
    %1005 = arith.addf %991, %1004 : vector<2x256xf32>
    %c98 = arith.constant 98 : index
    %1006 = memref.load %arg2[%c98] : memref<300xf32, #tpu.memory_space<smem>>
    %1007 = vector.broadcast %1006 : f32 to vector<2x256xf32>
    %1008 = arith.mulf %1007, %997 : vector<2x256xf32>
    %1009 = arith.addf %995, %1008 : vector<2x256xf32>
    %c1_235 = arith.constant 1 : index
    %c0_236 = arith.constant 0 : index
    %c19_237 = arith.constant 19 : index
    %1010 = vector.load %arg5[%c1_235, %c0_236, %c19_237] : memref<4x2x324xf32, #tpu.memory_space<vmem>>, vector<1x2x256xf32>
    %1011 = vector.shape_cast %1010 : vector<1x2x256xf32> to vector<2x256xf32>
    %c99 = arith.constant 99 : index
    %1012 = memref.load %arg2[%c99] : memref<300xf32, #tpu.memory_space<smem>>
    %1013 = vector.broadcast %1012 : f32 to vector<2x256xf32>
    %1014 = arith.mulf %1013, %1011 : vector<2x256xf32>
    %1015 = arith.addf %1001, %1014 : vector<2x256xf32>
    %c100 = arith.constant 100 : index
    %1016 = memref.load %arg2[%c100] : memref<300xf32, #tpu.memory_space<smem>>
    %1017 = vector.broadcast %1016 : f32 to vector<2x256xf32>
    %1018 = arith.mulf %1017, %1011 : vector<2x256xf32>
    %1019 = arith.addf %1005, %1018 : vector<2x256xf32>
    %c101 = arith.constant 101 : index
    %1020 = memref.load %arg2[%c101] : memref<300xf32, #tpu.memory_space<smem>>
    %1021 = vector.broadcast %1020 : f32 to vector<2x256xf32>
    %1022 = arith.mulf %1021, %1011 : vector<2x256xf32>
    %1023 = arith.addf %1009, %1022 : vector<2x256xf32>
    %c2_238 = arith.constant 2 : index
    %c0_239 = arith.constant 0 : index
    %c19_240 = arith.constant 19 : index
    %1024 = vector.load %arg5[%c2_238, %c0_239, %c19_240] : memref<4x2x324xf32, #tpu.memory_space<vmem>>, vector<1x2x256xf32>
    %1025 = vector.shape_cast %1024 : vector<1x2x256xf32> to vector<2x256xf32>
    %c102 = arith.constant 102 : index
    %1026 = memref.load %arg2[%c102] : memref<300xf32, #tpu.memory_space<smem>>
    %1027 = vector.broadcast %1026 : f32 to vector<2x256xf32>
    %1028 = arith.mulf %1027, %1025 : vector<2x256xf32>
    %1029 = arith.addf %1015, %1028 : vector<2x256xf32>
    %c103 = arith.constant 103 : index
    %1030 = memref.load %arg2[%c103] : memref<300xf32, #tpu.memory_space<smem>>
    %1031 = vector.broadcast %1030 : f32 to vector<2x256xf32>
    %1032 = arith.mulf %1031, %1025 : vector<2x256xf32>
    %1033 = arith.addf %1019, %1032 : vector<2x256xf32>
    %c104 = arith.constant 104 : index
    %1034 = memref.load %arg2[%c104] : memref<300xf32, #tpu.memory_space<smem>>
    %1035 = vector.broadcast %1034 : f32 to vector<2x256xf32>
    %1036 = arith.mulf %1035, %1025 : vector<2x256xf32>
    %1037 = arith.addf %1023, %1036 : vector<2x256xf32>
    %c3_241 = arith.constant 3 : index
    %c0_242 = arith.constant 0 : index
    %c19_243 = arith.constant 19 : index
    %1038 = vector.load %arg5[%c3_241, %c0_242, %c19_243] : memref<4x2x324xf32, #tpu.memory_space<vmem>>, vector<1x2x256xf32>
    %1039 = vector.shape_cast %1038 : vector<1x2x256xf32> to vector<2x256xf32>
    %c105 = arith.constant 105 : index
    %1040 = memref.load %arg2[%c105] : memref<300xf32, #tpu.memory_space<smem>>
    %1041 = vector.broadcast %1040 : f32 to vector<2x256xf32>
    %1042 = arith.mulf %1041, %1039 : vector<2x256xf32>
    %1043 = arith.addf %1029, %1042 : vector<2x256xf32>
    %c106 = arith.constant 106 : index
    %1044 = memref.load %arg2[%c106] : memref<300xf32, #tpu.memory_space<smem>>
    %1045 = vector.broadcast %1044 : f32 to vector<2x256xf32>
    %1046 = arith.mulf %1045, %1039 : vector<2x256xf32>
    %1047 = arith.addf %1033, %1046 : vector<2x256xf32>
    %c107 = arith.constant 107 : index
    %1048 = memref.load %arg2[%c107] : memref<300xf32, #tpu.memory_space<smem>>
    %1049 = vector.broadcast %1048 : f32 to vector<2x256xf32>
    %1050 = arith.mulf %1049, %1039 : vector<2x256xf32>
    %1051 = arith.addf %1037, %1050 : vector<2x256xf32>
    %c0_244 = arith.constant 0 : index
    %c0_245 = arith.constant 0 : index
    %c35_246 = arith.constant 35 : index
    %1052 = vector.load %arg5[%c0_244, %c0_245, %c35_246] : memref<4x2x324xf32, #tpu.memory_space<vmem>>, vector<1x2x256xf32>
    %1053 = vector.shape_cast %1052 : vector<1x2x256xf32> to vector<2x256xf32>
    %c156 = arith.constant 156 : index
    %1054 = memref.load %arg2[%c156] : memref<300xf32, #tpu.memory_space<smem>>
    %1055 = vector.broadcast %1054 : f32 to vector<2x256xf32>
    %1056 = arith.mulf %1055, %1053 : vector<2x256xf32>
    %1057 = arith.addf %1043, %1056 : vector<2x256xf32>
    %c157 = arith.constant 157 : index
    %1058 = memref.load %arg2[%c157] : memref<300xf32, #tpu.memory_space<smem>>
    %1059 = vector.broadcast %1058 : f32 to vector<2x256xf32>
    %1060 = arith.mulf %1059, %1053 : vector<2x256xf32>
    %1061 = arith.addf %1047, %1060 : vector<2x256xf32>
    %c158 = arith.constant 158 : index
    %1062 = memref.load %arg2[%c158] : memref<300xf32, #tpu.memory_space<smem>>
    %1063 = vector.broadcast %1062 : f32 to vector<2x256xf32>
    %1064 = arith.mulf %1063, %1053 : vector<2x256xf32>
    %1065 = arith.addf %1051, %1064 : vector<2x256xf32>
    %c1_247 = arith.constant 1 : index
    %c0_248 = arith.constant 0 : index
    %c35_249 = arith.constant 35 : index
    %1066 = vector.load %arg5[%c1_247, %c0_248, %c35_249] : memref<4x2x324xf32, #tpu.memory_space<vmem>>, vector<1x2x256xf32>
    %1067 = vector.shape_cast %1066 : vector<1x2x256xf32> to vector<2x256xf32>
    %c159 = arith.constant 159 : index
    %1068 = memref.load %arg2[%c159] : memref<300xf32, #tpu.memory_space<smem>>
    %1069 = vector.broadcast %1068 : f32 to vector<2x256xf32>
    %1070 = arith.mulf %1069, %1067 : vector<2x256xf32>
    %1071 = arith.addf %1057, %1070 : vector<2x256xf32>
    %c160 = arith.constant 160 : index
    %1072 = memref.load %arg2[%c160] : memref<300xf32, #tpu.memory_space<smem>>
    %1073 = vector.broadcast %1072 : f32 to vector<2x256xf32>
    %1074 = arith.mulf %1073, %1067 : vector<2x256xf32>
    %1075 = arith.addf %1061, %1074 : vector<2x256xf32>
    %c161 = arith.constant 161 : index
    %1076 = memref.load %arg2[%c161] : memref<300xf32, #tpu.memory_space<smem>>
    %1077 = vector.broadcast %1076 : f32 to vector<2x256xf32>
    %1078 = arith.mulf %1077, %1067 : vector<2x256xf32>
    %1079 = arith.addf %1065, %1078 : vector<2x256xf32>
    %c2_250 = arith.constant 2 : index
    %c0_251 = arith.constant 0 : index
    %c35_252 = arith.constant 35 : index
    %1080 = vector.load %arg5[%c2_250, %c0_251, %c35_252] : memref<4x2x324xf32, #tpu.memory_space<vmem>>, vector<1x2x256xf32>
    %1081 = vector.shape_cast %1080 : vector<1x2x256xf32> to vector<2x256xf32>
    %c162 = arith.constant 162 : index
    %1082 = memref.load %arg2[%c162] : memref<300xf32, #tpu.memory_space<smem>>
    %1083 = vector.broadcast %1082 : f32 to vector<2x256xf32>
    %1084 = arith.mulf %1083, %1081 : vector<2x256xf32>
    %1085 = arith.addf %1071, %1084 : vector<2x256xf32>
    %c163 = arith.constant 163 : index
    %1086 = memref.load %arg2[%c163] : memref<300xf32, #tpu.memory_space<smem>>
    %1087 = vector.broadcast %1086 : f32 to vector<2x256xf32>
    %1088 = arith.mulf %1087, %1081 : vector<2x256xf32>
    %1089 = arith.addf %1075, %1088 : vector<2x256xf32>
    %c164 = arith.constant 164 : index
    %1090 = memref.load %arg2[%c164] : memref<300xf32, #tpu.memory_space<smem>>
    %1091 = vector.broadcast %1090 : f32 to vector<2x256xf32>
    %1092 = arith.mulf %1091, %1081 : vector<2x256xf32>
    %1093 = arith.addf %1079, %1092 : vector<2x256xf32>
    %c3_253 = arith.constant 3 : index
    %c0_254 = arith.constant 0 : index
    %c35_255 = arith.constant 35 : index
    %1094 = vector.load %arg5[%c3_253, %c0_254, %c35_255] : memref<4x2x324xf32, #tpu.memory_space<vmem>>, vector<1x2x256xf32>
    %1095 = vector.shape_cast %1094 : vector<1x2x256xf32> to vector<2x256xf32>
    %c165 = arith.constant 165 : index
    %1096 = memref.load %arg2[%c165] : memref<300xf32, #tpu.memory_space<smem>>
    %1097 = vector.broadcast %1096 : f32 to vector<2x256xf32>
    %1098 = arith.mulf %1097, %1095 : vector<2x256xf32>
    %1099 = arith.addf %1085, %1098 : vector<2x256xf32>
    %c166 = arith.constant 166 : index
    %1100 = memref.load %arg2[%c166] : memref<300xf32, #tpu.memory_space<smem>>
    %1101 = vector.broadcast %1100 : f32 to vector<2x256xf32>
    %1102 = arith.mulf %1101, %1095 : vector<2x256xf32>
    %1103 = arith.addf %1089, %1102 : vector<2x256xf32>
    %c167 = arith.constant 167 : index
    %1104 = memref.load %arg2[%c167] : memref<300xf32, #tpu.memory_space<smem>>
    %1105 = vector.broadcast %1104 : f32 to vector<2x256xf32>
    %1106 = arith.mulf %1105, %1095 : vector<2x256xf32>
    %1107 = arith.addf %1093, %1106 : vector<2x256xf32>
    %c0_256 = arith.constant 0 : index
    %c0_257 = arith.constant 0 : index
    %c51 = arith.constant 51 : index
    %1108 = vector.load %arg5[%c0_256, %c0_257, %c51] : memref<4x2x324xf32, #tpu.memory_space<vmem>>, vector<1x2x256xf32>
    %1109 = vector.shape_cast %1108 : vector<1x2x256xf32> to vector<2x256xf32>
    %c216 = arith.constant 216 : index
    %1110 = memref.load %arg2[%c216] : memref<300xf32, #tpu.memory_space<smem>>
    %1111 = vector.broadcast %1110 : f32 to vector<2x256xf32>
    %1112 = arith.mulf %1111, %1109 : vector<2x256xf32>
    %1113 = arith.addf %1099, %1112 : vector<2x256xf32>
    %c217 = arith.constant 217 : index
    %1114 = memref.load %arg2[%c217] : memref<300xf32, #tpu.memory_space<smem>>
    %1115 = vector.broadcast %1114 : f32 to vector<2x256xf32>
    %1116 = arith.mulf %1115, %1109 : vector<2x256xf32>
    %1117 = arith.addf %1103, %1116 : vector<2x256xf32>
    %c218 = arith.constant 218 : index
    %1118 = memref.load %arg2[%c218] : memref<300xf32, #tpu.memory_space<smem>>
    %1119 = vector.broadcast %1118 : f32 to vector<2x256xf32>
    %1120 = arith.mulf %1119, %1109 : vector<2x256xf32>
    %1121 = arith.addf %1107, %1120 : vector<2x256xf32>
    %c1_258 = arith.constant 1 : index
    %c0_259 = arith.constant 0 : index
    %c51_260 = arith.constant 51 : index
    %1122 = vector.load %arg5[%c1_258, %c0_259, %c51_260] : memref<4x2x324xf32, #tpu.memory_space<vmem>>, vector<1x2x256xf32>
    %1123 = vector.shape_cast %1122 : vector<1x2x256xf32> to vector<2x256xf32>
    %c219 = arith.constant 219 : index
    %1124 = memref.load %arg2[%c219] : memref<300xf32, #tpu.memory_space<smem>>
    %1125 = vector.broadcast %1124 : f32 to vector<2x256xf32>
    %1126 = arith.mulf %1125, %1123 : vector<2x256xf32>
    %1127 = arith.addf %1113, %1126 : vector<2x256xf32>
    %c220 = arith.constant 220 : index
    %1128 = memref.load %arg2[%c220] : memref<300xf32, #tpu.memory_space<smem>>
    %1129 = vector.broadcast %1128 : f32 to vector<2x256xf32>
    %1130 = arith.mulf %1129, %1123 : vector<2x256xf32>
    %1131 = arith.addf %1117, %1130 : vector<2x256xf32>
    %c221 = arith.constant 221 : index
    %1132 = memref.load %arg2[%c221] : memref<300xf32, #tpu.memory_space<smem>>
    %1133 = vector.broadcast %1132 : f32 to vector<2x256xf32>
    %1134 = arith.mulf %1133, %1123 : vector<2x256xf32>
    %1135 = arith.addf %1121, %1134 : vector<2x256xf32>
    %c2_261 = arith.constant 2 : index
    %c0_262 = arith.constant 0 : index
    %c51_263 = arith.constant 51 : index
    %1136 = vector.load %arg5[%c2_261, %c0_262, %c51_263] : memref<4x2x324xf32, #tpu.memory_space<vmem>>, vector<1x2x256xf32>
    %1137 = vector.shape_cast %1136 : vector<1x2x256xf32> to vector<2x256xf32>
    %c222 = arith.constant 222 : index
    %1138 = memref.load %arg2[%c222] : memref<300xf32, #tpu.memory_space<smem>>
    %1139 = vector.broadcast %1138 : f32 to vector<2x256xf32>
    %1140 = arith.mulf %1139, %1137 : vector<2x256xf32>
    %1141 = arith.addf %1127, %1140 : vector<2x256xf32>
    %c223 = arith.constant 223 : index
    %1142 = memref.load %arg2[%c223] : memref<300xf32, #tpu.memory_space<smem>>
    %1143 = vector.broadcast %1142 : f32 to vector<2x256xf32>
    %1144 = arith.mulf %1143, %1137 : vector<2x256xf32>
    %1145 = arith.addf %1131, %1144 : vector<2x256xf32>
    %c224 = arith.constant 224 : index
    %1146 = memref.load %arg2[%c224] : memref<300xf32, #tpu.memory_space<smem>>
    %1147 = vector.broadcast %1146 : f32 to vector<2x256xf32>
    %1148 = arith.mulf %1147, %1137 : vector<2x256xf32>
    %1149 = arith.addf %1135, %1148 : vector<2x256xf32>
    %c3_264 = arith.constant 3 : index
    %c0_265 = arith.constant 0 : index
    %c51_266 = arith.constant 51 : index
    %1150 = vector.load %arg5[%c3_264, %c0_265, %c51_266] : memref<4x2x324xf32, #tpu.memory_space<vmem>>, vector<1x2x256xf32>
    %1151 = vector.shape_cast %1150 : vector<1x2x256xf32> to vector<2x256xf32>
    %c225 = arith.constant 225 : index
    %1152 = memref.load %arg2[%c225] : memref<300xf32, #tpu.memory_space<smem>>
    %1153 = vector.broadcast %1152 : f32 to vector<2x256xf32>
    %1154 = arith.mulf %1153, %1151 : vector<2x256xf32>
    %1155 = arith.addf %1141, %1154 : vector<2x256xf32>
    %c226 = arith.constant 226 : index
    %1156 = memref.load %arg2[%c226] : memref<300xf32, #tpu.memory_space<smem>>
    %1157 = vector.broadcast %1156 : f32 to vector<2x256xf32>
    %1158 = arith.mulf %1157, %1151 : vector<2x256xf32>
    %1159 = arith.addf %1145, %1158 : vector<2x256xf32>
    %c227 = arith.constant 227 : index
    %1160 = memref.load %arg2[%c227] : memref<300xf32, #tpu.memory_space<smem>>
    %1161 = vector.broadcast %1160 : f32 to vector<2x256xf32>
    %1162 = arith.mulf %1161, %1151 : vector<2x256xf32>
    %1163 = arith.addf %1149, %1162 : vector<2x256xf32>
    %c0_267 = arith.constant 0 : index
    %c0_268 = arith.constant 0 : index
    %c67_269 = arith.constant 67 : index
    %1164 = vector.load %arg5[%c0_267, %c0_268, %c67_269] : memref<4x2x324xf32, #tpu.memory_space<vmem>>, vector<1x2x256xf32>
    %1165 = vector.shape_cast %1164 : vector<1x2x256xf32> to vector<2x256xf32>
    %c276 = arith.constant 276 : index
    %1166 = memref.load %arg2[%c276] : memref<300xf32, #tpu.memory_space<smem>>
    %1167 = vector.broadcast %1166 : f32 to vector<2x256xf32>
    %1168 = arith.mulf %1167, %1165 : vector<2x256xf32>
    %1169 = arith.addf %1155, %1168 : vector<2x256xf32>
    %c277 = arith.constant 277 : index
    %1170 = memref.load %arg2[%c277] : memref<300xf32, #tpu.memory_space<smem>>
    %1171 = vector.broadcast %1170 : f32 to vector<2x256xf32>
    %1172 = arith.mulf %1171, %1165 : vector<2x256xf32>
    %1173 = arith.addf %1159, %1172 : vector<2x256xf32>
    %c278 = arith.constant 278 : index
    %1174 = memref.load %arg2[%c278] : memref<300xf32, #tpu.memory_space<smem>>
    %1175 = vector.broadcast %1174 : f32 to vector<2x256xf32>
    %1176 = arith.mulf %1175, %1165 : vector<2x256xf32>
    %1177 = arith.addf %1163, %1176 : vector<2x256xf32>
    %c1_270 = arith.constant 1 : index
    %c0_271 = arith.constant 0 : index
    %c67_272 = arith.constant 67 : index
    %1178 = vector.load %arg5[%c1_270, %c0_271, %c67_272] : memref<4x2x324xf32, #tpu.memory_space<vmem>>, vector<1x2x256xf32>
    %1179 = vector.shape_cast %1178 : vector<1x2x256xf32> to vector<2x256xf32>
    %c279 = arith.constant 279 : index
    %1180 = memref.load %arg2[%c279] : memref<300xf32, #tpu.memory_space<smem>>
    %1181 = vector.broadcast %1180 : f32 to vector<2x256xf32>
    %1182 = arith.mulf %1181, %1179 : vector<2x256xf32>
    %1183 = arith.addf %1169, %1182 : vector<2x256xf32>
    %c280 = arith.constant 280 : index
    %1184 = memref.load %arg2[%c280] : memref<300xf32, #tpu.memory_space<smem>>
    %1185 = vector.broadcast %1184 : f32 to vector<2x256xf32>
    %1186 = arith.mulf %1185, %1179 : vector<2x256xf32>
    %1187 = arith.addf %1173, %1186 : vector<2x256xf32>
    %c281 = arith.constant 281 : index
    %1188 = memref.load %arg2[%c281] : memref<300xf32, #tpu.memory_space<smem>>
    %1189 = vector.broadcast %1188 : f32 to vector<2x256xf32>
    %1190 = arith.mulf %1189, %1179 : vector<2x256xf32>
    %1191 = arith.addf %1177, %1190 : vector<2x256xf32>
    %c2_273 = arith.constant 2 : index
    %c0_274 = arith.constant 0 : index
    %c67_275 = arith.constant 67 : index
    %1192 = vector.load %arg5[%c2_273, %c0_274, %c67_275] : memref<4x2x324xf32, #tpu.memory_space<vmem>>, vector<1x2x256xf32>
    %1193 = vector.shape_cast %1192 : vector<1x2x256xf32> to vector<2x256xf32>
    %c282 = arith.constant 282 : index
    %1194 = memref.load %arg2[%c282] : memref<300xf32, #tpu.memory_space<smem>>
    %1195 = vector.broadcast %1194 : f32 to vector<2x256xf32>
    %1196 = arith.mulf %1195, %1193 : vector<2x256xf32>
    %1197 = arith.addf %1183, %1196 : vector<2x256xf32>
    %c283 = arith.constant 283 : index
    %1198 = memref.load %arg2[%c283] : memref<300xf32, #tpu.memory_space<smem>>
    %1199 = vector.broadcast %1198 : f32 to vector<2x256xf32>
    %1200 = arith.mulf %1199, %1193 : vector<2x256xf32>
    %1201 = arith.addf %1187, %1200 : vector<2x256xf32>
    %c284 = arith.constant 284 : index
    %1202 = memref.load %arg2[%c284] : memref<300xf32, #tpu.memory_space<smem>>
    %1203 = vector.broadcast %1202 : f32 to vector<2x256xf32>
    %1204 = arith.mulf %1203, %1193 : vector<2x256xf32>
    %1205 = arith.addf %1191, %1204 : vector<2x256xf32>
    %c3_276 = arith.constant 3 : index
    %c0_277 = arith.constant 0 : index
    %c67_278 = arith.constant 67 : index
    %1206 = vector.load %arg5[%c3_276, %c0_277, %c67_278] : memref<4x2x324xf32, #tpu.memory_space<vmem>>, vector<1x2x256xf32>
    %1207 = vector.shape_cast %1206 : vector<1x2x256xf32> to vector<2x256xf32>
    %c285 = arith.constant 285 : index
    %1208 = memref.load %arg2[%c285] : memref<300xf32, #tpu.memory_space<smem>>
    %1209 = vector.broadcast %1208 : f32 to vector<2x256xf32>
    %1210 = arith.mulf %1209, %1207 : vector<2x256xf32>
    %1211 = arith.addf %1197, %1210 : vector<2x256xf32>
    %c286 = arith.constant 286 : index
    %1212 = memref.load %arg2[%c286] : memref<300xf32, #tpu.memory_space<smem>>
    %1213 = vector.broadcast %1212 : f32 to vector<2x256xf32>
    %1214 = arith.mulf %1213, %1207 : vector<2x256xf32>
    %1215 = arith.addf %1201, %1214 : vector<2x256xf32>
    %c287 = arith.constant 287 : index
    %1216 = memref.load %arg2[%c287] : memref<300xf32, #tpu.memory_space<smem>>
    %1217 = vector.broadcast %1216 : f32 to vector<2x256xf32>
    %1218 = arith.mulf %1217, %1207 : vector<2x256xf32>
    %1219 = arith.addf %1205, %1218 : vector<2x256xf32>
    %1220 = arith.mulf %55, %1211 : vector<2x256xf32>
    %1221 = arith.addf %934, %1220 : vector<2x256xf32>
    %1222 = arith.mulf %55, %1215 : vector<2x256xf32>
    %1223 = arith.addf %935, %1222 : vector<2x256xf32>
    %1224 = arith.mulf %55, %1219 : vector<2x256xf32>
    %1225 = arith.addf %936, %1224 : vector<2x256xf32>
    %cst_279 = arith.constant 0.000000e+00 : f32
    %1226 = vector.broadcast %cst_279 : f32 to vector<2x256xf32>
    %cst_280 = arith.constant 0.000000e+00 : f32
    %1227 = vector.broadcast %cst_280 : f32 to vector<2x256xf32>
    %cst_281 = arith.constant 0.000000e+00 : f32
    %1228 = vector.broadcast %cst_281 : f32 to vector<2x256xf32>
    %c0_282 = arith.constant 0 : index
    %c0_283 = arith.constant 0 : index
    %c4_284 = arith.constant 4 : index
    %1229 = vector.load %arg5[%c0_282, %c0_283, %c4_284] : memref<4x2x324xf32, #tpu.memory_space<vmem>>, vector<1x2x256xf32>
    %1230 = vector.shape_cast %1229 : vector<1x2x256xf32> to vector<2x256xf32>
    %c48_285 = arith.constant 48 : index
    %1231 = memref.load %arg2[%c48_285] : memref<300xf32, #tpu.memory_space<smem>>
    %1232 = vector.broadcast %1231 : f32 to vector<2x256xf32>
    %1233 = arith.mulf %1232, %1230 : vector<2x256xf32>
    %1234 = arith.addf %1226, %1233 : vector<2x256xf32>
    %c49_286 = arith.constant 49 : index
    %1235 = memref.load %arg2[%c49_286] : memref<300xf32, #tpu.memory_space<smem>>
    %1236 = vector.broadcast %1235 : f32 to vector<2x256xf32>
    %1237 = arith.mulf %1236, %1230 : vector<2x256xf32>
    %1238 = arith.addf %1227, %1237 : vector<2x256xf32>
    %c50_287 = arith.constant 50 : index
    %1239 = memref.load %arg2[%c50_287] : memref<300xf32, #tpu.memory_space<smem>>
    %1240 = vector.broadcast %1239 : f32 to vector<2x256xf32>
    %1241 = arith.mulf %1240, %1230 : vector<2x256xf32>
    %1242 = arith.addf %1228, %1241 : vector<2x256xf32>
    %c1_288 = arith.constant 1 : index
    %c0_289 = arith.constant 0 : index
    %c4_290 = arith.constant 4 : index
    %1243 = vector.load %arg5[%c1_288, %c0_289, %c4_290] : memref<4x2x324xf32, #tpu.memory_space<vmem>>, vector<1x2x256xf32>
    %1244 = vector.shape_cast %1243 : vector<1x2x256xf32> to vector<2x256xf32>
    %c51_291 = arith.constant 51 : index
    %1245 = memref.load %arg2[%c51_291] : memref<300xf32, #tpu.memory_space<smem>>
    %1246 = vector.broadcast %1245 : f32 to vector<2x256xf32>
    %1247 = arith.mulf %1246, %1244 : vector<2x256xf32>
    %1248 = arith.addf %1234, %1247 : vector<2x256xf32>
    %c52 = arith.constant 52 : index
    %1249 = memref.load %arg2[%c52] : memref<300xf32, #tpu.memory_space<smem>>
    %1250 = vector.broadcast %1249 : f32 to vector<2x256xf32>
    %1251 = arith.mulf %1250, %1244 : vector<2x256xf32>
    %1252 = arith.addf %1238, %1251 : vector<2x256xf32>
    %c53 = arith.constant 53 : index
    %1253 = memref.load %arg2[%c53] : memref<300xf32, #tpu.memory_space<smem>>
    %1254 = vector.broadcast %1253 : f32 to vector<2x256xf32>
    %1255 = arith.mulf %1254, %1244 : vector<2x256xf32>
    %1256 = arith.addf %1242, %1255 : vector<2x256xf32>
    %c2_292 = arith.constant 2 : index
    %c0_293 = arith.constant 0 : index
    %c4_294 = arith.constant 4 : index
    %1257 = vector.load %arg5[%c2_292, %c0_293, %c4_294] : memref<4x2x324xf32, #tpu.memory_space<vmem>>, vector<1x2x256xf32>
    %1258 = vector.shape_cast %1257 : vector<1x2x256xf32> to vector<2x256xf32>
    %c54 = arith.constant 54 : index
    %1259 = memref.load %arg2[%c54] : memref<300xf32, #tpu.memory_space<smem>>
    %1260 = vector.broadcast %1259 : f32 to vector<2x256xf32>
    %1261 = arith.mulf %1260, %1258 : vector<2x256xf32>
    %1262 = arith.addf %1248, %1261 : vector<2x256xf32>
    %c55 = arith.constant 55 : index
    %1263 = memref.load %arg2[%c55] : memref<300xf32, #tpu.memory_space<smem>>
    %1264 = vector.broadcast %1263 : f32 to vector<2x256xf32>
    %1265 = arith.mulf %1264, %1258 : vector<2x256xf32>
    %1266 = arith.addf %1252, %1265 : vector<2x256xf32>
    %c56 = arith.constant 56 : index
    %1267 = memref.load %arg2[%c56] : memref<300xf32, #tpu.memory_space<smem>>
    %1268 = vector.broadcast %1267 : f32 to vector<2x256xf32>
    %1269 = arith.mulf %1268, %1258 : vector<2x256xf32>
    %1270 = arith.addf %1256, %1269 : vector<2x256xf32>
    %c3_295 = arith.constant 3 : index
    %c0_296 = arith.constant 0 : index
    %c4_297 = arith.constant 4 : index
    %1271 = vector.load %arg5[%c3_295, %c0_296, %c4_297] : memref<4x2x324xf32, #tpu.memory_space<vmem>>, vector<1x2x256xf32>
    %1272 = vector.shape_cast %1271 : vector<1x2x256xf32> to vector<2x256xf32>
    %c57 = arith.constant 57 : index
    %1273 = memref.load %arg2[%c57] : memref<300xf32, #tpu.memory_space<smem>>
    %1274 = vector.broadcast %1273 : f32 to vector<2x256xf32>
    %1275 = arith.mulf %1274, %1272 : vector<2x256xf32>
    %1276 = arith.addf %1262, %1275 : vector<2x256xf32>
    %c58 = arith.constant 58 : index
    %1277 = memref.load %arg2[%c58] : memref<300xf32, #tpu.memory_space<smem>>
    %1278 = vector.broadcast %1277 : f32 to vector<2x256xf32>
    %1279 = arith.mulf %1278, %1272 : vector<2x256xf32>
    %1280 = arith.addf %1266, %1279 : vector<2x256xf32>
    %c59 = arith.constant 59 : index
    %1281 = memref.load %arg2[%c59] : memref<300xf32, #tpu.memory_space<smem>>
    %1282 = vector.broadcast %1281 : f32 to vector<2x256xf32>
    %1283 = arith.mulf %1282, %1272 : vector<2x256xf32>
    %1284 = arith.addf %1270, %1283 : vector<2x256xf32>
    %c0_298 = arith.constant 0 : index
    %c0_299 = arith.constant 0 : index
    %c20_300 = arith.constant 20 : index
    %1285 = vector.load %arg5[%c0_298, %c0_299, %c20_300] : memref<4x2x324xf32, #tpu.memory_space<vmem>>, vector<1x2x256xf32>
    %1286 = vector.shape_cast %1285 : vector<1x2x256xf32> to vector<2x256xf32>
    %c108 = arith.constant 108 : index
    %1287 = memref.load %arg2[%c108] : memref<300xf32, #tpu.memory_space<smem>>
    %1288 = vector.broadcast %1287 : f32 to vector<2x256xf32>
    %1289 = arith.mulf %1288, %1286 : vector<2x256xf32>
    %1290 = arith.addf %1276, %1289 : vector<2x256xf32>
    %c109 = arith.constant 109 : index
    %1291 = memref.load %arg2[%c109] : memref<300xf32, #tpu.memory_space<smem>>
    %1292 = vector.broadcast %1291 : f32 to vector<2x256xf32>
    %1293 = arith.mulf %1292, %1286 : vector<2x256xf32>
    %1294 = arith.addf %1280, %1293 : vector<2x256xf32>
    %c110 = arith.constant 110 : index
    %1295 = memref.load %arg2[%c110] : memref<300xf32, #tpu.memory_space<smem>>
    %1296 = vector.broadcast %1295 : f32 to vector<2x256xf32>
    %1297 = arith.mulf %1296, %1286 : vector<2x256xf32>
    %1298 = arith.addf %1284, %1297 : vector<2x256xf32>
    %c1_301 = arith.constant 1 : index
    %c0_302 = arith.constant 0 : index
    %c20_303 = arith.constant 20 : index
    %1299 = vector.load %arg5[%c1_301, %c0_302, %c20_303] : memref<4x2x324xf32, #tpu.memory_space<vmem>>, vector<1x2x256xf32>
    %1300 = vector.shape_cast %1299 : vector<1x2x256xf32> to vector<2x256xf32>
    %c111 = arith.constant 111 : index
    %1301 = memref.load %arg2[%c111] : memref<300xf32, #tpu.memory_space<smem>>
    %1302 = vector.broadcast %1301 : f32 to vector<2x256xf32>
    %1303 = arith.mulf %1302, %1300 : vector<2x256xf32>
    %1304 = arith.addf %1290, %1303 : vector<2x256xf32>
    %c112 = arith.constant 112 : index
    %1305 = memref.load %arg2[%c112] : memref<300xf32, #tpu.memory_space<smem>>
    %1306 = vector.broadcast %1305 : f32 to vector<2x256xf32>
    %1307 = arith.mulf %1306, %1300 : vector<2x256xf32>
    %1308 = arith.addf %1294, %1307 : vector<2x256xf32>
    %c113 = arith.constant 113 : index
    %1309 = memref.load %arg2[%c113] : memref<300xf32, #tpu.memory_space<smem>>
    %1310 = vector.broadcast %1309 : f32 to vector<2x256xf32>
    %1311 = arith.mulf %1310, %1300 : vector<2x256xf32>
    %1312 = arith.addf %1298, %1311 : vector<2x256xf32>
    %c2_304 = arith.constant 2 : index
    %c0_305 = arith.constant 0 : index
    %c20_306 = arith.constant 20 : index
    %1313 = vector.load %arg5[%c2_304, %c0_305, %c20_306] : memref<4x2x324xf32, #tpu.memory_space<vmem>>, vector<1x2x256xf32>
    %1314 = vector.shape_cast %1313 : vector<1x2x256xf32> to vector<2x256xf32>
    %c114 = arith.constant 114 : index
    %1315 = memref.load %arg2[%c114] : memref<300xf32, #tpu.memory_space<smem>>
    %1316 = vector.broadcast %1315 : f32 to vector<2x256xf32>
    %1317 = arith.mulf %1316, %1314 : vector<2x256xf32>
    %1318 = arith.addf %1304, %1317 : vector<2x256xf32>
    %c115 = arith.constant 115 : index
    %1319 = memref.load %arg2[%c115] : memref<300xf32, #tpu.memory_space<smem>>
    %1320 = vector.broadcast %1319 : f32 to vector<2x256xf32>
    %1321 = arith.mulf %1320, %1314 : vector<2x256xf32>
    %1322 = arith.addf %1308, %1321 : vector<2x256xf32>
    %c116 = arith.constant 116 : index
    %1323 = memref.load %arg2[%c116] : memref<300xf32, #tpu.memory_space<smem>>
    %1324 = vector.broadcast %1323 : f32 to vector<2x256xf32>
    %1325 = arith.mulf %1324, %1314 : vector<2x256xf32>
    %1326 = arith.addf %1312, %1325 : vector<2x256xf32>
    %c3_307 = arith.constant 3 : index
    %c0_308 = arith.constant 0 : index
    %c20_309 = arith.constant 20 : index
    %1327 = vector.load %arg5[%c3_307, %c0_308, %c20_309] : memref<4x2x324xf32, #tpu.memory_space<vmem>>, vector<1x2x256xf32>
    %1328 = vector.shape_cast %1327 : vector<1x2x256xf32> to vector<2x256xf32>
    %c117 = arith.constant 117 : index
    %1329 = memref.load %arg2[%c117] : memref<300xf32, #tpu.memory_space<smem>>
    %1330 = vector.broadcast %1329 : f32 to vector<2x256xf32>
    %1331 = arith.mulf %1330, %1328 : vector<2x256xf32>
    %1332 = arith.addf %1318, %1331 : vector<2x256xf32>
    %c118 = arith.constant 118 : index
    %1333 = memref.load %arg2[%c118] : memref<300xf32, #tpu.memory_space<smem>>
    %1334 = vector.broadcast %1333 : f32 to vector<2x256xf32>
    %1335 = arith.mulf %1334, %1328 : vector<2x256xf32>
    %1336 = arith.addf %1322, %1335 : vector<2x256xf32>
    %c119 = arith.constant 119 : index
    %1337 = memref.load %arg2[%c119] : memref<300xf32, #tpu.memory_space<smem>>
    %1338 = vector.broadcast %1337 : f32 to vector<2x256xf32>
    %1339 = arith.mulf %1338, %1328 : vector<2x256xf32>
    %1340 = arith.addf %1326, %1339 : vector<2x256xf32>
    %c0_310 = arith.constant 0 : index
    %c0_311 = arith.constant 0 : index
    %c36_312 = arith.constant 36 : index
    %1341 = vector.load %arg5[%c0_310, %c0_311, %c36_312] : memref<4x2x324xf32, #tpu.memory_space<vmem>>, vector<1x2x256xf32>
    %1342 = vector.shape_cast %1341 : vector<1x2x256xf32> to vector<2x256xf32>
    %c168 = arith.constant 168 : index
    %1343 = memref.load %arg2[%c168] : memref<300xf32, #tpu.memory_space<smem>>
    %1344 = vector.broadcast %1343 : f32 to vector<2x256xf32>
    %1345 = arith.mulf %1344, %1342 : vector<2x256xf32>
    %1346 = arith.addf %1332, %1345 : vector<2x256xf32>
    %c169 = arith.constant 169 : index
    %1347 = memref.load %arg2[%c169] : memref<300xf32, #tpu.memory_space<smem>>
    %1348 = vector.broadcast %1347 : f32 to vector<2x256xf32>
    %1349 = arith.mulf %1348, %1342 : vector<2x256xf32>
    %1350 = arith.addf %1336, %1349 : vector<2x256xf32>
    %c170 = arith.constant 170 : index
    %1351 = memref.load %arg2[%c170] : memref<300xf32, #tpu.memory_space<smem>>
    %1352 = vector.broadcast %1351 : f32 to vector<2x256xf32>
    %1353 = arith.mulf %1352, %1342 : vector<2x256xf32>
    %1354 = arith.addf %1340, %1353 : vector<2x256xf32>
    %c1_313 = arith.constant 1 : index
    %c0_314 = arith.constant 0 : index
    %c36_315 = arith.constant 36 : index
    %1355 = vector.load %arg5[%c1_313, %c0_314, %c36_315] : memref<4x2x324xf32, #tpu.memory_space<vmem>>, vector<1x2x256xf32>
    %1356 = vector.shape_cast %1355 : vector<1x2x256xf32> to vector<2x256xf32>
    %c171 = arith.constant 171 : index
    %1357 = memref.load %arg2[%c171] : memref<300xf32, #tpu.memory_space<smem>>
    %1358 = vector.broadcast %1357 : f32 to vector<2x256xf32>
    %1359 = arith.mulf %1358, %1356 : vector<2x256xf32>
    %1360 = arith.addf %1346, %1359 : vector<2x256xf32>
    %c172 = arith.constant 172 : index
    %1361 = memref.load %arg2[%c172] : memref<300xf32, #tpu.memory_space<smem>>
    %1362 = vector.broadcast %1361 : f32 to vector<2x256xf32>
    %1363 = arith.mulf %1362, %1356 : vector<2x256xf32>
    %1364 = arith.addf %1350, %1363 : vector<2x256xf32>
    %c173 = arith.constant 173 : index
    %1365 = memref.load %arg2[%c173] : memref<300xf32, #tpu.memory_space<smem>>
    %1366 = vector.broadcast %1365 : f32 to vector<2x256xf32>
    %1367 = arith.mulf %1366, %1356 : vector<2x256xf32>
    %1368 = arith.addf %1354, %1367 : vector<2x256xf32>
    %c2_316 = arith.constant 2 : index
    %c0_317 = arith.constant 0 : index
    %c36_318 = arith.constant 36 : index
    %1369 = vector.load %arg5[%c2_316, %c0_317, %c36_318] : memref<4x2x324xf32, #tpu.memory_space<vmem>>, vector<1x2x256xf32>
    %1370 = vector.shape_cast %1369 : vector<1x2x256xf32> to vector<2x256xf32>
    %c174 = arith.constant 174 : index
    %1371 = memref.load %arg2[%c174] : memref<300xf32, #tpu.memory_space<smem>>
    %1372 = vector.broadcast %1371 : f32 to vector<2x256xf32>
    %1373 = arith.mulf %1372, %1370 : vector<2x256xf32>
    %1374 = arith.addf %1360, %1373 : vector<2x256xf32>
    %c175 = arith.constant 175 : index
    %1375 = memref.load %arg2[%c175] : memref<300xf32, #tpu.memory_space<smem>>
    %1376 = vector.broadcast %1375 : f32 to vector<2x256xf32>
    %1377 = arith.mulf %1376, %1370 : vector<2x256xf32>
    %1378 = arith.addf %1364, %1377 : vector<2x256xf32>
    %c176 = arith.constant 176 : index
    %1379 = memref.load %arg2[%c176] : memref<300xf32, #tpu.memory_space<smem>>
    %1380 = vector.broadcast %1379 : f32 to vector<2x256xf32>
    %1381 = arith.mulf %1380, %1370 : vector<2x256xf32>
    %1382 = arith.addf %1368, %1381 : vector<2x256xf32>
    %c3_319 = arith.constant 3 : index
    %c0_320 = arith.constant 0 : index
    %c36_321 = arith.constant 36 : index
    %1383 = vector.load %arg5[%c3_319, %c0_320, %c36_321] : memref<4x2x324xf32, #tpu.memory_space<vmem>>, vector<1x2x256xf32>
    %1384 = vector.shape_cast %1383 : vector<1x2x256xf32> to vector<2x256xf32>
    %c177 = arith.constant 177 : index
    %1385 = memref.load %arg2[%c177] : memref<300xf32, #tpu.memory_space<smem>>
    %1386 = vector.broadcast %1385 : f32 to vector<2x256xf32>
    %1387 = arith.mulf %1386, %1384 : vector<2x256xf32>
    %1388 = arith.addf %1374, %1387 : vector<2x256xf32>
    %c178 = arith.constant 178 : index
    %1389 = memref.load %arg2[%c178] : memref<300xf32, #tpu.memory_space<smem>>
    %1390 = vector.broadcast %1389 : f32 to vector<2x256xf32>
    %1391 = arith.mulf %1390, %1384 : vector<2x256xf32>
    %1392 = arith.addf %1378, %1391 : vector<2x256xf32>
    %c179 = arith.constant 179 : index
    %1393 = memref.load %arg2[%c179] : memref<300xf32, #tpu.memory_space<smem>>
    %1394 = vector.broadcast %1393 : f32 to vector<2x256xf32>
    %1395 = arith.mulf %1394, %1384 : vector<2x256xf32>
    %1396 = arith.addf %1382, %1395 : vector<2x256xf32>
    %c0_322 = arith.constant 0 : index
    %c0_323 = arith.constant 0 : index
    %c52_324 = arith.constant 52 : index
    %1397 = vector.load %arg5[%c0_322, %c0_323, %c52_324] : memref<4x2x324xf32, #tpu.memory_space<vmem>>, vector<1x2x256xf32>
    %1398 = vector.shape_cast %1397 : vector<1x2x256xf32> to vector<2x256xf32>
    %c228 = arith.constant 228 : index
    %1399 = memref.load %arg2[%c228] : memref<300xf32, #tpu.memory_space<smem>>
    %1400 = vector.broadcast %1399 : f32 to vector<2x256xf32>
    %1401 = arith.mulf %1400, %1398 : vector<2x256xf32>
    %1402 = arith.addf %1388, %1401 : vector<2x256xf32>
    %c229 = arith.constant 229 : index
    %1403 = memref.load %arg2[%c229] : memref<300xf32, #tpu.memory_space<smem>>
    %1404 = vector.broadcast %1403 : f32 to vector<2x256xf32>
    %1405 = arith.mulf %1404, %1398 : vector<2x256xf32>
    %1406 = arith.addf %1392, %1405 : vector<2x256xf32>
    %c230 = arith.constant 230 : index
    %1407 = memref.load %arg2[%c230] : memref<300xf32, #tpu.memory_space<smem>>
    %1408 = vector.broadcast %1407 : f32 to vector<2x256xf32>
    %1409 = arith.mulf %1408, %1398 : vector<2x256xf32>
    %1410 = arith.addf %1396, %1409 : vector<2x256xf32>
    %c1_325 = arith.constant 1 : index
    %c0_326 = arith.constant 0 : index
    %c52_327 = arith.constant 52 : index
    %1411 = vector.load %arg5[%c1_325, %c0_326, %c52_327] : memref<4x2x324xf32, #tpu.memory_space<vmem>>, vector<1x2x256xf32>
    %1412 = vector.shape_cast %1411 : vector<1x2x256xf32> to vector<2x256xf32>
    %c231 = arith.constant 231 : index
    %1413 = memref.load %arg2[%c231] : memref<300xf32, #tpu.memory_space<smem>>
    %1414 = vector.broadcast %1413 : f32 to vector<2x256xf32>
    %1415 = arith.mulf %1414, %1412 : vector<2x256xf32>
    %1416 = arith.addf %1402, %1415 : vector<2x256xf32>
    %c232 = arith.constant 232 : index
    %1417 = memref.load %arg2[%c232] : memref<300xf32, #tpu.memory_space<smem>>
    %1418 = vector.broadcast %1417 : f32 to vector<2x256xf32>
    %1419 = arith.mulf %1418, %1412 : vector<2x256xf32>
    %1420 = arith.addf %1406, %1419 : vector<2x256xf32>
    %c233 = arith.constant 233 : index
    %1421 = memref.load %arg2[%c233] : memref<300xf32, #tpu.memory_space<smem>>
    %1422 = vector.broadcast %1421 : f32 to vector<2x256xf32>
    %1423 = arith.mulf %1422, %1412 : vector<2x256xf32>
    %1424 = arith.addf %1410, %1423 : vector<2x256xf32>
    %c2_328 = arith.constant 2 : index
    %c0_329 = arith.constant 0 : index
    %c52_330 = arith.constant 52 : index
    %1425 = vector.load %arg5[%c2_328, %c0_329, %c52_330] : memref<4x2x324xf32, #tpu.memory_space<vmem>>, vector<1x2x256xf32>
    %1426 = vector.shape_cast %1425 : vector<1x2x256xf32> to vector<2x256xf32>
    %c234 = arith.constant 234 : index
    %1427 = memref.load %arg2[%c234] : memref<300xf32, #tpu.memory_space<smem>>
    %1428 = vector.broadcast %1427 : f32 to vector<2x256xf32>
    %1429 = arith.mulf %1428, %1426 : vector<2x256xf32>
    %1430 = arith.addf %1416, %1429 : vector<2x256xf32>
    %c235 = arith.constant 235 : index
    %1431 = memref.load %arg2[%c235] : memref<300xf32, #tpu.memory_space<smem>>
    %1432 = vector.broadcast %1431 : f32 to vector<2x256xf32>
    %1433 = arith.mulf %1432, %1426 : vector<2x256xf32>
    %1434 = arith.addf %1420, %1433 : vector<2x256xf32>
    %c236 = arith.constant 236 : index
    %1435 = memref.load %arg2[%c236] : memref<300xf32, #tpu.memory_space<smem>>
    %1436 = vector.broadcast %1435 : f32 to vector<2x256xf32>
    %1437 = arith.mulf %1436, %1426 : vector<2x256xf32>
    %1438 = arith.addf %1424, %1437 : vector<2x256xf32>
    %c3_331 = arith.constant 3 : index
    %c0_332 = arith.constant 0 : index
    %c52_333 = arith.constant 52 : index
    %1439 = vector.load %arg5[%c3_331, %c0_332, %c52_333] : memref<4x2x324xf32, #tpu.memory_space<vmem>>, vector<1x2x256xf32>
    %1440 = vector.shape_cast %1439 : vector<1x2x256xf32> to vector<2x256xf32>
    %c237 = arith.constant 237 : index
    %1441 = memref.load %arg2[%c237] : memref<300xf32, #tpu.memory_space<smem>>
    %1442 = vector.broadcast %1441 : f32 to vector<2x256xf32>
    %1443 = arith.mulf %1442, %1440 : vector<2x256xf32>
    %1444 = arith.addf %1430, %1443 : vector<2x256xf32>
    %c238 = arith.constant 238 : index
    %1445 = memref.load %arg2[%c238] : memref<300xf32, #tpu.memory_space<smem>>
    %1446 = vector.broadcast %1445 : f32 to vector<2x256xf32>
    %1447 = arith.mulf %1446, %1440 : vector<2x256xf32>
    %1448 = arith.addf %1434, %1447 : vector<2x256xf32>
    %c239 = arith.constant 239 : index
    %1449 = memref.load %arg2[%c239] : memref<300xf32, #tpu.memory_space<smem>>
    %1450 = vector.broadcast %1449 : f32 to vector<2x256xf32>
    %1451 = arith.mulf %1450, %1440 : vector<2x256xf32>
    %1452 = arith.addf %1438, %1451 : vector<2x256xf32>
    %c0_334 = arith.constant 0 : index
    %c0_335 = arith.constant 0 : index
    %c68_336 = arith.constant 68 : index
    %1453 = vector.load %arg5[%c0_334, %c0_335, %c68_336] : memref<4x2x324xf32, #tpu.memory_space<vmem>>, vector<1x2x256xf32>
    %1454 = vector.shape_cast %1453 : vector<1x2x256xf32> to vector<2x256xf32>
    %c288 = arith.constant 288 : index
    %1455 = memref.load %arg2[%c288] : memref<300xf32, #tpu.memory_space<smem>>
    %1456 = vector.broadcast %1455 : f32 to vector<2x256xf32>
    %1457 = arith.mulf %1456, %1454 : vector<2x256xf32>
    %1458 = arith.addf %1444, %1457 : vector<2x256xf32>
    %c289 = arith.constant 289 : index
    %1459 = memref.load %arg2[%c289] : memref<300xf32, #tpu.memory_space<smem>>
    %1460 = vector.broadcast %1459 : f32 to vector<2x256xf32>
    %1461 = arith.mulf %1460, %1454 : vector<2x256xf32>
    %1462 = arith.addf %1448, %1461 : vector<2x256xf32>
    %c290_337 = arith.constant 290 : index
    %1463 = memref.load %arg2[%c290_337] : memref<300xf32, #tpu.memory_space<smem>>
    %1464 = vector.broadcast %1463 : f32 to vector<2x256xf32>
    %1465 = arith.mulf %1464, %1454 : vector<2x256xf32>
    %1466 = arith.addf %1452, %1465 : vector<2x256xf32>
    %c1_338 = arith.constant 1 : index
    %c0_339 = arith.constant 0 : index
    %c68_340 = arith.constant 68 : index
    %1467 = vector.load %arg5[%c1_338, %c0_339, %c68_340] : memref<4x2x324xf32, #tpu.memory_space<vmem>>, vector<1x2x256xf32>
    %1468 = vector.shape_cast %1467 : vector<1x2x256xf32> to vector<2x256xf32>
    %c291 = arith.constant 291 : index
    %1469 = memref.load %arg2[%c291] : memref<300xf32, #tpu.memory_space<smem>>
    %1470 = vector.broadcast %1469 : f32 to vector<2x256xf32>
    %1471 = arith.mulf %1470, %1468 : vector<2x256xf32>
    %1472 = arith.addf %1458, %1471 : vector<2x256xf32>
    %c292 = arith.constant 292 : index
    %1473 = memref.load %arg2[%c292] : memref<300xf32, #tpu.memory_space<smem>>
    %1474 = vector.broadcast %1473 : f32 to vector<2x256xf32>
    %1475 = arith.mulf %1474, %1468 : vector<2x256xf32>
    %1476 = arith.addf %1462, %1475 : vector<2x256xf32>
    %c293 = arith.constant 293 : index
    %1477 = memref.load %arg2[%c293] : memref<300xf32, #tpu.memory_space<smem>>
    %1478 = vector.broadcast %1477 : f32 to vector<2x256xf32>
    %1479 = arith.mulf %1478, %1468 : vector<2x256xf32>
    %1480 = arith.addf %1466, %1479 : vector<2x256xf32>
    %c2_341 = arith.constant 2 : index
    %c0_342 = arith.constant 0 : index
    %c68_343 = arith.constant 68 : index
    %1481 = vector.load %arg5[%c2_341, %c0_342, %c68_343] : memref<4x2x324xf32, #tpu.memory_space<vmem>>, vector<1x2x256xf32>
    %1482 = vector.shape_cast %1481 : vector<1x2x256xf32> to vector<2x256xf32>
    %c294 = arith.constant 294 : index
    %1483 = memref.load %arg2[%c294] : memref<300xf32, #tpu.memory_space<smem>>
    %1484 = vector.broadcast %1483 : f32 to vector<2x256xf32>
    %1485 = arith.mulf %1484, %1482 : vector<2x256xf32>
    %1486 = arith.addf %1472, %1485 : vector<2x256xf32>
    %c295 = arith.constant 295 : index
    %1487 = memref.load %arg2[%c295] : memref<300xf32, #tpu.memory_space<smem>>
    %1488 = vector.broadcast %1487 : f32 to vector<2x256xf32>
    %1489 = arith.mulf %1488, %1482 : vector<2x256xf32>
    %1490 = arith.addf %1476, %1489 : vector<2x256xf32>
    %c296 = arith.constant 296 : index
    %1491 = memref.load %arg2[%c296] : memref<300xf32, #tpu.memory_space<smem>>
    %1492 = vector.broadcast %1491 : f32 to vector<2x256xf32>
    %1493 = arith.mulf %1492, %1482 : vector<2x256xf32>
    %1494 = arith.addf %1480, %1493 : vector<2x256xf32>
    %c3_344 = arith.constant 3 : index
    %c0_345 = arith.constant 0 : index
    %c68_346 = arith.constant 68 : index
    %1495 = vector.load %arg5[%c3_344, %c0_345, %c68_346] : memref<4x2x324xf32, #tpu.memory_space<vmem>>, vector<1x2x256xf32>
    %1496 = vector.shape_cast %1495 : vector<1x2x256xf32> to vector<2x256xf32>
    %c297 = arith.constant 297 : index
    %1497 = memref.load %arg2[%c297] : memref<300xf32, #tpu.memory_space<smem>>
    %1498 = vector.broadcast %1497 : f32 to vector<2x256xf32>
    %1499 = arith.mulf %1498, %1496 : vector<2x256xf32>
    %1500 = arith.addf %1486, %1499 : vector<2x256xf32>
    %c298 = arith.constant 298 : index
    %1501 = memref.load %arg2[%c298] : memref<300xf32, #tpu.memory_space<smem>>
    %1502 = vector.broadcast %1501 : f32 to vector<2x256xf32>
    %1503 = arith.mulf %1502, %1496 : vector<2x256xf32>
    %1504 = arith.addf %1490, %1503 : vector<2x256xf32>
    %c299 = arith.constant 299 : index
    %1505 = memref.load %arg2[%c299] : memref<300xf32, #tpu.memory_space<smem>>
    %1506 = vector.broadcast %1505 : f32 to vector<2x256xf32>
    %1507 = arith.mulf %1506, %1496 : vector<2x256xf32>
    %1508 = arith.addf %1494, %1507 : vector<2x256xf32>
    %1509 = arith.mulf %66, %1500 : vector<2x256xf32>
    %1510 = arith.addf %1221, %1509 : vector<2x256xf32>
    %1511 = arith.mulf %66, %1504 : vector<2x256xf32>
    %1512 = arith.addf %1223, %1511 : vector<2x256xf32>
    %1513 = arith.mulf %66, %1508 : vector<2x256xf32>
    %1514 = arith.addf %1225, %1513 : vector<2x256xf32>
    %1515 = tpu.concatenate %1510, %1512, %1514 in 1 : vector<2x256xf32>, vector<2x256xf32>, vector<2x256xf32> -> vector<2x768xf32>
    %c0_347 = arith.constant 0 : index
    %c0_348 = arith.constant 0 : index
    %1516 = vector.load %arg4[%c0_347, %c0_348] : memref<2x768xf32, #tpu.memory_space<vmem>>, vector<2x768xf32>
    tpu.vector_store %arg4[%c0_347, %c0_348], %1515 {strides = array<i32>} : memref<2x768xf32, #tpu.memory_space<vmem>>, vector<2x768xf32>,
    return
  }
  func.func @transform_0(%arg0: i32) -> (i32, i32, i32) {
    %c0_i32 = arith.constant 0 : i32
    %c0_i32_0 = arith.constant 0 : i32
    %c0_i32_1 = arith.constant 0 : i32
    return %c0_i32, %arg0, %c0_i32_0 : i32, i32, i32
  }
  func.func @transform_1(%arg0: i32) -> i32 {
    %c0_i32 = arith.constant 0 : i32
    %c0_i32_0 = arith.constant 0 : i32
    return %c0_i32 : i32
  }
  func.func @transform_2(%arg0: i32) -> i32 {
    %c0_i32 = arith.constant 0 : i32
    %c0_i32_0 = arith.constant 0 : i32
    return %c0_i32 : i32
  }
  func.func @transform_3(%arg0: i32) -> (i32, i32) {
    %c0_i32 = arith.constant 0 : i32
    %c0_i32_0 = arith.constant 0 : i32
    return %arg0, %c0_i32 : i32, i32
  }
}

</mosaic_0001>

<llo_original>
// kernel: tpu_custom_call.1
$region0: #{tpu_custom_call.1}
  #allocation0 [shape = 'u32[]', space=smem, size = 0x4, offset = 0x4, fixed_abs, tag = 'smem constant byte address 0x4 - core index']
  #allocation1 [shape = 'u32[144,128]{1,0:T(1,128)}', space=vmem, size = 0x12000, scoped, tag = 'internal scratch']
  #allocation2 [shape = 'f32[4,2,324]{2,1,0:T(2,128)}', space=vmem, size = 0x3000, scoped, tag = 'scratch operand']
  %s0 = inlined_call_operand.hbm [shape: f32[4,2,256], index: 0, kind: input, shape index: {}]
  %s1 = inlined_call_operand.hbm [shape: f32[300], index: 1, kind: input, shape index: {}]
  %s2 = inlined_call_operand.vmem [shape: f32[3], index: 2, kind: input, shape index: {}]
  %s3 = inlined_call_operand.hbm [shape: f32[2,768], index: 3, kind: output, shape index: {}]
  %s4 = sld [smem:[#allocation0]]
  $region34: #{tpu_custom_call.1} parent=0
    _
  %s6 = ssub.s32 1, %s4
  %s7 = scalar_select 0, %s6, %s4
  $region1: #{tpu_custom_call.1} parent=0
    #allocation3 [shape = 'u8[8192]{0}', space=vmem, size = 0x2000, scoped, tag = 'input window, operand 0, single buffered']
    #allocation4 [shape = 's32[1]{0}', space=sflag, size = 0x4, scoped, tag = 'scoped memory for tpu_custom_call.1']
    #allocation5 [shape = 's32[1]{0}', space=sflag, size = 0x4, scoped, tag = 'scoped memory for tpu_custom_call.1']
    #allocation6 [shape = 's32[1]{0}', space=sflag, size = 0x4, scoped, tag = 'scoped memory for tpu_custom_call.1']
    #allocation7 [shape = 's32[1]{0}', space=sflag, size = 0x4, scoped, tag = 'scoped memory for tpu_custom_call.1']
    #allocation8 [shape = 'u8[1536]{0}', space=smem, size = 0x600, scoped, tag = 'input window, operand 1, single buffered']
    #allocation9 [shape = 'u8[512]{0}', space=smem, size = 0x200, scoped, tag = 'input window, operand 2, single buffered']
    #allocation10 [shape = 'u8[6144]{0}', space=vmem, size = 0x1800, scoped, tag = 'output window, operand 0, single buffered']
    %8 = vsyncpa [#allocation4], 0
    %9 = vsyncpa [#allocation6], 0
    %10 = vsyncpa [#allocation7], 0
    %11 = vsyncpa [#allocation5], 0
    // Predicated region
    $region2: #{tpu_custom_call.1} parent=1 // pred_check
      _
    $region3: #{tpu_custom_call.1} parent=1 // pred_check_branch
      %13 = sbr.rel (0) target = $region5
    $region4: #{tpu_custom_call.1} parent=1 // pred_region
      %s15 = ssub.s32 256, 256
      %16 = vsyncadd [#allocation4], %s15
      %s17 = sshll.u32 [#allocation3], 4
      %s18 = int_to_ptr.vmem [resolvable:$true] %s17
      %23 = dma.hbm_to_vmem [thread:$0]  %s0, 256, %s18, [#allocation4], 64, 64, 4
    $region5: #{tpu_custom_call.1} parent=1 // pred_fallthru
      _
    // Predicated region
    $region6: #{tpu_custom_call.1} parent=1 // pred_check
      _
    $region7: #{tpu_custom_call.1} parent=1 // pred_check_branch
      %25 = sbr.rel (0) target = $region9
    $region8: #{tpu_custom_call.1} parent=1 // pred_region
      %s27 = ssub.s32 48, 48
      %28 = vsyncadd [#allocation6], %s27
      %31 = dma.hbm_to_smem %s1, 48, [#allocation8], [#allocation6]
    $region9: #{tpu_custom_call.1} parent=1 // pred_fallthru
      _
    // Predicated region
    $region10: #{tpu_custom_call.1} parent=1 // pred_check
      _
    $region11: #{tpu_custom_call.1} parent=1 // pred_check_branch
      %33 = sbr.rel (0) target = $region13
    $region12: #{tpu_custom_call.1} parent=1 // pred_region
      %s35 = ssub.s32 16, 16
      %36 = vsyncadd [#allocation7], %s35
      %s38 = sshll.u32 %s2, 4
      %s39 = int_to_ptr.vmem [resolvable:$true] %s38
      %41 = dma.vmem_to_smem %s39, 16, [#allocation9], [#allocation7]
    $region13: #{tpu_custom_call.1} parent=1 // pred_fallthru
      _
    // Predicated region
    $region14: #{tpu_custom_call.1} parent=1 // pred_check
      _
    $region15: #{tpu_custom_call.1} parent=1 // pred_check_branch
      %43 = sbr.rel (0) target = $region17
    $region16: #{tpu_custom_call.1} parent=1 // pred_region
      %44 = dma.done [#allocation4], 256
    $region17: #{tpu_custom_call.1} parent=1 // pred_fallthru
      _
    // Predicated region
    $region18: #{tpu_custom_call.1} parent=1 // pred_check
      _
    $region19: #{tpu_custom_call.1} parent=1 // pred_check_branch
      %46 = sbr.rel (0) target = $region21
    $region20: #{tpu_custom_call.1} parent=1 // pred_region
      %47 = dma.done [#allocation6], 48
    $region21: #{tpu_custom_call.1} parent=1 // pred_fallthru
      _
    // Predicated region
    $region22: #{tpu_custom_call.1} parent=1 // pred_check
      _
    $region23: #{tpu_custom_call.1} parent=1 // pred_check_branch
      %49 = sbr.rel (0) target = $region25
    $region24: #{tpu_custom_call.1} parent=1 // pred_region
      %50 = dma.done [#allocation7], 16
    $region25: #{tpu_custom_call.1} parent=1 // pred_fallthru
      _
    %51 = sfence
    %vm52 = vcmask 271360
    %53 = vst.msk [vmem:[#allocation2] sm:$0x3] %vm52, 0.0
    %54 = vst.msk [vmem:[#allocation2 + $0x6] sm:$0x3] %vm52, 0.0
    %55 = vst.msk [vmem:[#allocation2 + $0xc] sm:$0x3] %vm52, 0.0
    %56 = vst.msk [vmem:[#allocation2 + $0x12] sm:$0x3] %vm52, 0.0
    %vm57 = vcmask 550160
    %58 = vst.msk [vmem:[#allocation2 + $0x4] sm:$0x3] %vm57, 0.0
    %59 = vst.msk [vmem:[#allocation2 + $0xa] sm:$0x3] %vm57, 0.0
    %60 = vst.msk [vmem:[#allocation2 + $0x10] sm:$0x3] %vm57, 0.0
    %61 = vst.msk [vmem:[#allocation2 + $0x16] sm:$0x3] %vm57, 0.0
    %v62 = vld [vmem:[#allocation3] sm:$0xf]
    %v63 = vld [vmem:[#allocation3 + $0x4] sm:$0xf]
    %v64 = vld [vmem:[#allocation3 + $0x8] sm:$0xf]
    %v65 = vld [vmem:[#allocation3 + $0xc] sm:$0xf]
    %70 = vrot.lane.b32.xlu0 %v62, 34
    %v71 = vpop.permute.xlu0 %70
    %72 = vrot.lane.b32.xlu0 %v63, 34
    %v73 = vpop.permute.xlu0 %72
    %74 = vrot.lane.b32.xlu0 %v64, 34
    %v75 = vpop.permute.xlu0 %74
    %76 = vrot.lane.b32.xlu0 %v65, 34
    %v77 = vpop.permute.xlu0 %76
    %v78 = vrot.slane %v71, 6
    %v79 = vrot.slane %v73, 6
    %v80 = vrot.slane %v75, 6
    %v81 = vrot.slane %v77, 6
    %vm82 = vcmask 277504
    %v83 = vsel %vm82, %v78, %v71
    %v84 = vsel %vm82, %v79, %v73
    %v85 = vsel %vm82, %v80, %v75
    %v86 = vsel %vm82, %v81, %v77
    %vm91 = vcmask 1041680
    %vm92 = vcmask 1043458
    %vm93 = vmor %vm92, %vm91
    %vm94 = vcmask 275460
    %vm95 = vmor %vm94, %vm93
    %96 = vst.msk [vmem:[#allocation2] sm:$0x3f] %vm95, %v83
    %97 = vst.msk [vmem:[#allocation2 + $0x6] sm:$0x3f] %vm95, %v84
    %98 = vst.msk [vmem:[#allocation2 + $0xc] sm:$0x3f] %vm95, %v85
    %99 = vst.msk [vmem:[#allocation2 + $0x12] sm:$0x3f] %vm95, %v86
    %v100 = vlaneseq
    %v101 = vand.u32 %v100, 127
    %v102 = vadd.s32 %v101, 128
    %vm103 = vcmp.lt.s32.totalorder %v101, 0
    %v104 = vsub.s32 0, %v101
    %v105 = vsel %vm103, %v104, %v101
    %v106 = vshrl.u32 %v105, 4
    %v107 = vand.u32 %v105, 15
    %v108 = vsub.s32 0, %v107
    %v109 = vsel %vm103, %v108, %v107
    %vm110 = vcmp.lt.s32.totalorder %v102, 0
    %v111 = vsub.s32 0, %v102
    %v112 = vsel %vm110, %v111, %v102
    %v113 = vshrl.u32 %v112, 4
    %v114 = vand.u32 %v112, 15
    %v115 = vsub.s32 0, %v114
    %v116 = vsel %vm110, %v115, %v114
    %vm117 = vcmp.ne.s32.totalorder %v109, 0
    %vm118 = vcmp.ne.s32.totalorder %v116, 0
    %vm119 = vcmp.lt.s32.totalorder %v109, 0
    %vm120 = vcmp.lt.s32.totalorder %v116, 0
    %vm121 = vmand %vm119, %vm117
    %vm122 = vmand %vm120, %vm118
    %v123 = vadd.s32 %v109, 16
    %v124 = vadd.s32 %v116, 16
    %v125 = vsel %vm121, %v123, %v109
    %v126 = vsel %vm122, %v124, %v116
    %v127 = vadd.s32 %v125, 4294967294
    %v128 = vadd.s32 %v126, 4294967294
    %vm129 = vcmp.ge.s32.totalorder %v127, 0
    %vm130 = vcmp.ge.s32.totalorder %v128, 0
    %vm131 = vcmp.lt.s32.totalorder %v127, 16
    %vm132 = vcmp.lt.s32.totalorder %v128, 16
    %vm133 = vmand %vm129, %vm131
    %vm134 = vmand %vm130, %vm132
    %v135 = vsel %vm133, 1, 0
    %v136 = vsel %vm134, 1, 0
    %v137 = vcvt.s32.f32 %v135
    %v138 = vcvt.s32.f32 %v136
    %v139 = vadd.s32 %v125, 4294967295
    %v140 = vadd.s32 %v126, 4294967295
    %vm141 = vcmp.ge.s32.totalorder %v139, 0
    %vm142 = vcmp.ge.s32.totalorder %v140, 0
    %vm143 = vcmp.lt.s32.totalorder %v139, 16
    %vm144 = vcmp.lt.s32.totalorder %v140, 16
    %vm145 = vmand %vm141, %vm143
    %vm146 = vmand %vm142, %vm144
    %v147 = vsel %vm145, 1, 0
    %v148 = vsel %vm146, 1, 0
    %v149 = vcvt.s32.f32 %v147
    %v150 = vcvt.s32.f32 %v148
    %v151 = vadd.s32 %v125, 1
    %v152 = vadd.s32 %v126, 1
    %vm153 = vcmp.ge.s32.totalorder %v151, 0
    %vm154 = vcmp.ge.s32.totalorder %v152, 0
    %vm155 = vcmp.lt.s32.totalorder %v151, 16
    %vm156 = vcmp.lt.s32.totalorder %v152, 16
    %vm157 = vmand %vm153, %vm155
    %vm158 = vmand %vm154, %vm156
    %v159 = vsel %vm157, 1, 0
    %v160 = vsel %vm158, 1, 0
    %v161 = vcvt.s32.f32 %v159
    %v162 = vcvt.s32.f32 %v160
    %v163 = vadd.s32 %v125, 2
    %v164 = vadd.s32 %v126, 2
    %vm165 = vcmp.ge.s32.totalorder %v163, 0
    %vm166 = vcmp.ge.s32.totalorder %v164, 0
    %vm167 = vcmp.lt.s32.totalorder %v163, 16
    %vm168 = vcmp.lt.s32.totalorder %v164, 16
    %vm169 = vmand %vm165, %vm167
    %vm170 = vmand %vm166, %vm168
    %v171 = vsel %vm169, 1, 0
    %v172 = vsel %vm170, 1, 0
    %v173 = vcvt.s32.f32 %v171
    %v174 = vcvt.s32.f32 %v172
    %s175 = sld [smem:[#allocation9]]
    %v176 = vstv %s175
    %s177 = sld [smem:[#allocation9 + $0x1]]
    %v178 = vstv %s177
    %s179 = sld [smem:[#allocation9 + $0x2]]
    %v180 = vstv %s179
    %v181 = vld [vmem:[#allocation2] sm:$0xf]
    %s182 = sld [smem:[#allocation8]]
    %v183 = vstv %s182
    %v184 = vmul.f32 %v183, %v181
    %v185 = vadd.f32 %v184, 0.0
    %s186 = sld [smem:[#allocation8 + $0x1]]
    %v187 = vstv %s186
    %v188 = vmul.f32 %v187, %v181
    %v189 = vadd.f32 %v188, 0.0
    %s190 = sld [smem:[#allocation8 + $0x2]]
    %v191 = vstv %s190
    %v192 = vmul.f32 %v191, %v181
    %v193 = vadd.f32 %v192, 0.0
    %s194 = scalar_lea.vmem [#allocation2], 6
    %v195 = vld [vmem:[%s194] sm:$0xf]
    %s196 = sld [smem:[#allocation8 + $0x3]]
    %v197 = vstv %s196
    %v198 = vmul.f32 %v197, %v195
    %v199 = vadd.f32 %v185, %v198
    %s200 = sld [smem:[#allocation8 + $0x4]]
    %v201 = vstv %s200
    %v202 = vmul.f32 %v201, %v195
    %v203 = vadd.f32 %v189, %v202
    %s204 = sld [smem:[#allocation8 + $0x5]]
    %v205 = vstv %s204
    %v206 = vmul.f32 %v205, %v195
    %v207 = vadd.f32 %v193, %v206
    %s208 = scalar_lea.vmem [#allocation2], 12
    %v209 = vld [vmem:[%s208] sm:$0xf]
    %s210 = sld [smem:[#allocation8 + $0x6]]
    %v211 = vstv %s210
    %v212 = vmul.f32 %v211, %v209
    %v213 = vadd.f32 %v199, %v212
    %s214 = sld [smem:[#allocation8 + $0x7]]
    %v215 = vstv %s214
    %v216 = vmul.f32 %v215, %v209
    %v217 = vadd.f32 %v203, %v216
    %s218 = sld [smem:[#allocation8 + $0x8]]
    %v219 = vstv %s218
    %v220 = vmul.f32 %v219, %v209
    %v221 = vadd.f32 %v207, %v220
    %s222 = scalar_lea.vmem [#allocation2], 18
    %v223 = vld [vmem:[%s222] sm:$0xf]
    %s224 = sld [smem:[#allocation8 + $0x9]]
    %v225 = vstv %s224
    %v226 = vmul.f32 %v225, %v223
    %v227 = vadd.f32 %v213, %v226
    %s228 = sld [smem:[#allocation8 + $0xa]]
    %v229 = vstv %s228
    %v230 = vmul.f32 %v229, %v223
    %v231 = vadd.f32 %v217, %v230
    %s232 = sld [smem:[#allocation8 + $0xb]]
    %v233 = vstv %s232
    %v234 = vmul.f32 %v233, %v223
    %v235 = vadd.f32 %v221, %v234
    %v236 = vld [vmem:[#allocation2] sm:$0x3f]
    %s237 = sld [smem:[#allocation8 + $0x3c]]
    %v238 = vstv %s237
    %v239 = vmul.f32 %v238, %v236
    %241 = vrot.lane.b32.xlu0 %v239, 112
    %v242 = vpop.permute.xlu0 %241
    %v243 = vrot.slane %v242, 2
    %vm244 = vcmask 916480
    %v245 = vsel %vm244, %v242, %v243
    %v247 = vadd.f32 %v227, %v245
    %s248 = sld [smem:[#allocation8 + $0x3d]]
    %v249 = vstv %s248
    %v250 = vmul.f32 %v249, %v236
    %252 = vrot.lane.b32.xlu0 %v250, 112
    %v253 = vpop.permute.xlu0 %252
    %v254 = vrot.slane %v253, 2
    %v255 = vsel %vm244, %v253, %v254
    %v257 = vadd.f32 %v231, %v255
    %s258 = sld [smem:[#allocation8 + $0x3e]]
    %v259 = vstv %s258
    %v260 = vmul.f32 %v259, %v236
    %262 = vrot.lane.b32.xlu0 %v260, 112
    %v263 = vpop.permute.xlu0 %262
    %v264 = vrot.slane %v263, 2
    %v265 = vsel %vm244, %v263, %v264
    %v267 = vadd.f32 %v235, %v265
    %v268 = vld [vmem:[%s194] sm:$0x3f]
    %s269 = sld [smem:[#allocation8 + $0x3f]]
    %v270 = vstv %s269
    %v271 = vmul.f32 %v270, %v268
    %273 = vrot.lane.b32.xlu0 %v271, 112
    %v274 = vpop.permute.xlu0 %273
    %v275 = vrot.slane %v274, 2
    %v276 = vsel %vm244, %v274, %v275
    %v278 = vadd.f32 %v247, %v276
    %s279 = sld [smem:[#allocation8 + $0x40]]
    %v280 = vstv %s279
    %v281 = vmul.f32 %v280, %v268
    %283 = vrot.lane.b32.xlu0 %v281, 112
    %v284 = vpop.permute.xlu0 %283
    %v285 = vrot.slane %v284, 2
    %v286 = vsel %vm244, %v284, %v285
    %v288 = vadd.f32 %v257, %v286
    %s289 = sld [smem:[#allocation8 + $0x41]]
    %v290 = vstv %s289
    %v291 = vmul.f32 %v290, %v268
    %293 = vrot.lane.b32.xlu0 %v291, 112
    %v294 = vpop.permute.xlu0 %293
    %v295 = vrot.slane %v294, 2
    %v296 = vsel %vm244, %v294, %v295
    %v298 = vadd.f32 %v267, %v296
    %v299 = vld [vmem:[%s208] sm:$0x3f]
    %s300 = sld [smem:[#allocation8 + $0x42]]
    %v301 = vstv %s300
    %v302 = vmul.f32 %v301, %v299
    %304 = vrot.lane.b32.xlu0 %v302, 112
    %v305 = vpop.permute.xlu0 %304
    %v306 = vrot.slane %v305, 2
    %v307 = vsel %vm244, %v305, %v306
    %v309 = vadd.f32 %v278, %v307
    %s310 = sld [smem:[#allocation8 + $0x43]]
    %v311 = vstv %s310
    %v312 = vmul.f32 %v311, %v299
    %314 = vrot.lane.b32.xlu0 %v312, 112
    %v315 = vpop.permute.xlu0 %314
    %v316 = vrot.slane %v315, 2
    %v317 = vsel %vm244, %v315, %v316
    %v319 = vadd.f32 %v288, %v317
    %s320 = sld [smem:[#allocation8 + $0x44]]
    %v321 = vstv %s320
    %v322 = vmul.f32 %v321, %v299
    %324 = vrot.lane.b32.xlu0 %v322, 112
    %v325 = vpop.permute.xlu0 %324
    %v326 = vrot.slane %v325, 2
    %v327 = vsel %vm244, %v325, %v326
    %v329 = vadd.f32 %v298, %v327
    %v330 = vld [vmem:[%s222] sm:$0x3f]
    %s331 = sld [smem:[#allocation8 + $0x45]]
    %v332 = vstv %s331
    %v333 = vmul.f32 %v332, %v330
    %335 = vrot.lane.b32.xlu0 %v333, 112
    %v336 = vpop.permute.xlu0 %335
    %v337 = vrot.slane %v336, 2
    %v338 = vsel %vm244, %v336, %v337
    %v340 = vadd.f32 %v309, %v338
    %s341 = sld [smem:[#allocation8 + $0x46]]
    %v342 = vstv %s341
    %v343 = vmul.f32 %v342, %v330
    %345 = vrot.lane.b32.xlu0 %v343, 112
    %v346 = vpop.permute.xlu0 %345
    %v347 = vrot.slane %v346, 2
    %v348 = vsel %vm244, %v346, %v347
    %v350 = vadd.f32 %v319, %v348
    %s351 = sld [smem:[#allocation8 + $0x47]]
    %v352 = vstv %s351
    %v353 = vmul.f32 %v352, %v330
    %355 = vrot.lane.b32.xlu0 %v353, 112
    %v356 = vpop.permute.xlu0 %355
    %v357 = vrot.slane %v356, 2
    %v358 = vsel %vm244, %v356, %v357
    %v360 = vadd.f32 %v329, %v358
    %s361 = sld [smem:[#allocation8 + $0x78]]
    %v362 = vstv %s361
    %v363 = vmul.f32 %v362, %v236
    %365 = vrot.lane.b32.xlu0 %v363, 96
    %v366 = vpop.permute.xlu0 %365
    %v367 = vrot.slane %v366, 2
    %vm368 = vcmask 785408
    %v369 = vsel %vm368, %v366, %v367
    %v371 = vadd.f32 %v340, %v369
    %s372 = sld [smem:[#allocation8 + $0x79]]
    %v373 = vstv %s372
    %v374 = vmul.f32 %v373, %v236
    %376 = vrot.lane.b32.xlu0 %v374, 96
    %v377 = vpop.permute.xlu0 %376
    %v378 = vrot.slane %v377, 2
    %v379 = vsel %vm368, %v377, %v378
    %v381 = vadd.f32 %v350, %v379
    %s382 = sld [smem:[#allocation8 + $0x7a]]
    %v383 = vstv %s382
    %v384 = vmul.f32 %v383, %v236
    %386 = vrot.lane.b32.xlu0 %v384, 96
    %v387 = vpop.permute.xlu0 %386
    %v388 = vrot.slane %v387, 2
    %v389 = vsel %vm368, %v387, %v388
    %v391 = vadd.f32 %v360, %v389
    %s392 = sld [smem:[#allocation8 + $0x7b]]
    %v393 = vstv %s392
    %v394 = vmul.f32 %v393, %v268
    %396 = vrot.lane.b32.xlu0 %v394, 96
    %v397 = vpop.permute.xlu0 %396
    %v398 = vrot.slane %v397, 2
    %v399 = vsel %vm368, %v397, %v398
    %v401 = vadd.f32 %v371, %v399
    %s402 = sld [smem:[#allocation8 + $0x7c]]
    %v403 = vstv %s402
    %v404 = vmul.f32 %v403, %v268
    %406 = vrot.lane.b32.xlu0 %v404, 96
    %v407 = vpop.permute.xlu0 %406
    %v408 = vrot.slane %v407, 2
    %v409 = vsel %vm368, %v407, %v408
    %v411 = vadd.f32 %v381, %v409
    %s412 = sld [smem:[#allocation8 + $0x7d]]
    %v413 = vstv %s412
    %v414 = vmul.f32 %v413, %v268
    %416 = vrot.lane.b32.xlu0 %v414, 96
    %v417 = vpop.permute.xlu0 %416
    %v418 = vrot.slane %v417, 2
    %v419 = vsel %vm368, %v417, %v418
    %v421 = vadd.f32 %v391, %v419
    %s422 = sld [smem:[#allocation8 + $0x7e]]
    %v423 = vstv %s422
    %v424 = vmul.f32 %v423, %v299
    %426 = vrot.lane.b32.xlu0 %v424, 96
    %v427 = vpop.permute.xlu0 %426
    %v428 = vrot.slane %v427, 2
    %v429 = vsel %vm368, %v427, %v428
    %v431 = vadd.f32 %v401, %v429
    %s432 = sld [smem:[#allocation8 + $0x7f]]
    %v433 = vstv %s432
    %v434 = vmul.f32 %v433, %v299
    %436 = vrot.lane.b32.xlu0 %v434, 96
    %v437 = vpop.permute.xlu0 %436
    %v438 = vrot.slane %v437, 2
    %v439 = vsel %vm368, %v437, %v438
    %v441 = vadd.f32 %v411, %v439
    %s442 = sld [smem:[#allocation8 + $0x80]]
    %v443 = vstv %s442
    %v444 = vmul.f32 %v443, %v299
    %446 = vrot.lane.b32.xlu0 %v444, 96
    %v447 = vpop.permute.xlu0 %446
    %v448 = vrot.slane %v447, 2
    %v449 = vsel %vm368, %v447, %v448
    %v451 = vadd.f32 %v421, %v449
    %s452 = sld [smem:[#allocation8 + $0x81]]
    %v453 = vstv %s452
    %v454 = vmul.f32 %v453, %v330
    %456 = vrot.lane.b32.xlu0 %v454, 96
    %v457 = vpop.permute.xlu0 %456
    %v458 = vrot.slane %v457, 2
    %v459 = vsel %vm368, %v457, %v458
    %v461 = vadd.f32 %v431, %v459
    %s462 = sld [smem:[#allocation8 + $0x82]]
    %v463 = vstv %s462
    %v464 = vmul.f32 %v463, %v330
    %466 = vrot.lane.b32.xlu0 %v464, 96
    %v467 = vpop.permute.xlu0 %466
    %v468 = vrot.slane %v467, 2
    %v469 = vsel %vm368, %v467, %v468
    %v471 = vadd.f32 %v441, %v469
    %s472 = sld [smem:[#allocation8 + $0x83]]
    %v473 = vstv %s472
    %v474 = vmul.f32 %v473, %v330
    %476 = vrot.lane.b32.xlu0 %v474, 96
    %v477 = vpop.permute.xlu0 %476
    %v478 = vrot.slane %v477, 2
    %v479 = vsel %vm368, %v477, %v478
    %v481 = vadd.f32 %v451, %v479
    %s482 = sld [smem:[#allocation8 + $0xb4]]
    %v483 = vstv %s482
    %v484 = vmul.f32 %v483, %v236
    %486 = vrot.lane.b32.xlu0 %v484, 80
    %v487 = vpop.permute.xlu0 %486
    %v488 = vrot.slane %v487, 2
    %vm489 = vcmask 654336
    %v490 = vsel %vm489, %v487, %v488
    %v492 = vadd.f32 %v461, %v490
    %s493 = sld [smem:[#allocation8 + $0xb5]]
    %v494 = vstv %s493
    %v495 = vmul.f32 %v494, %v236
    %497 = vrot.lane.b32.xlu0 %v495, 80
    %v498 = vpop.permute.xlu0 %497
    %v499 = vrot.slane %v498, 2
    %v500 = vsel %vm489, %v498, %v499
    %v502 = vadd.f32 %v471, %v500
    %s503 = sld [smem:[#allocation8 + $0xb6]]
    %v504 = vstv %s503
    %v505 = vmul.f32 %v504, %v236
    %507 = vrot.lane.b32.xlu0 %v505, 80
    %v508 = vpop.permute.xlu0 %507
    %v509 = vrot.slane %v508, 2
    %v510 = vsel %vm489, %v508, %v509
    %v512 = vadd.f32 %v481, %v510
    %s513 = sld [smem:[#allocation8 + $0xb7]]
    %v514 = vstv %s513
    %v515 = vmul.f32 %v514, %v268
    %517 = vrot.lane.b32.xlu0 %v515, 80
    %v518 = vpop.permute.xlu0 %517
    %v519 = vrot.slane %v518, 2
    %v520 = vsel %vm489, %v518, %v519
    %v522 = vadd.f32 %v492, %v520
    %s523 = sld [smem:[#allocation8 + $0xb8]]
    %v524 = vstv %s523
    %v525 = vmul.f32 %v524, %v268
    %527 = vrot.lane.b32.xlu0 %v525, 80
    %v528 = vpop.permute.xlu0 %527
    %v529 = vrot.slane %v528, 2
    %v530 = vsel %vm489, %v528, %v529
    %v532 = vadd.f32 %v502, %v530
    %s533 = sld [smem:[#allocation8 + $0xb9]]
    %v534 = vstv %s533
    %v535 = vmul.f32 %v534, %v268
    %537 = vrot.lane.b32.xlu0 %v535, 80
    %v538 = vpop.permute.xlu0 %537
    %v539 = vrot.slane %v538, 2
    %v540 = vsel %vm489, %v538, %v539
    %v542 = vadd.f32 %v512, %v540
    %s543 = sld [smem:[#allocation8 + $0xba]]
    %v544 = vstv %s543
    %v545 = vmul.f32 %v544, %v299
    %547 = vrot.lane.b32.xlu0 %v545, 80
    %v548 = vpop.permute.xlu0 %547
    %v549 = vrot.slane %v548, 2
    %v550 = vsel %vm489, %v548, %v549
    %v552 = vadd.f32 %v522, %v550
    %s553 = sld [smem:[#allocation8 + $0xbb]]
    %v554 = vstv %s553
    %v555 = vmul.f32 %v554, %v299
    %557 = vrot.lane.b32.xlu0 %v555, 80
    %v558 = vpop.permute.xlu0 %557
    %v559 = vrot.slane %v558, 2
    %v560 = vsel %vm489, %v558, %v559
    %v562 = vadd.f32 %v532, %v560
    %s563 = sld [smem:[#allocation8 + $0xbc]]
    %v564 = vstv %s563
    %v565 = vmul.f32 %v564, %v299
    %567 = vrot.lane.b32.xlu0 %v565, 80
    %v568 = vpop.permute.xlu0 %567
    %v569 = vrot.slane %v568, 2
    %v570 = vsel %vm489, %v568, %v569
    %v572 = vadd.f32 %v542, %v570
    %s573 = sld [smem:[#allocation8 + $0xbd]]
    %v574 = vstv %s573
    %v575 = vmul.f32 %v574, %v330
    %577 = vrot.lane.b32.xlu0 %v575, 80
    %v578 = vpop.permute.xlu0 %577
    %v579 = vrot.slane %v578, 2
    %v580 = vsel %vm489, %v578, %v579
    %v582 = vadd.f32 %v552, %v580
    %s583 = sld [smem:[#allocation8 + $0xbe]]
    %v584 = vstv %s583
    %v585 = vmul.f32 %v584, %v330
    %587 = vrot.lane.b32.xlu0 %v585, 80
    %v588 = vpop.permute.xlu0 %587
    %v589 = vrot.slane %v588, 2
    %v590 = vsel %vm489, %v588, %v589
    %v592 = vadd.f32 %v562, %v590
    %s593 = sld [smem:[#allocation8 + $0xbf]]
    %v594 = vstv %s593
    %v595 = vmul.f32 %v594, %v330
    %597 = vrot.lane.b32.xlu0 %v595, 80
    %v598 = vpop.permute.xlu0 %597
    %v599 = vrot.slane %v598, 2
    %v600 = vsel %vm489, %v598, %v599
    %v602 = vadd.f32 %v572, %v600
    %s603 = sld [smem:[#allocation8 + $0xf0]]
    %v604 = vstv %s603
    %v605 = vmul.f32 %v604, %v236
    %607 = vrot.lane.b32.xlu0 %v605, 64
    %v608 = vpop.permute.xlu0 %607
    %v609 = vrot.slane %v608, 2
    %vm610 = vcmask 523264
    %v611 = vsel %vm610, %v608, %v609
    %v613 = vadd.f32 %v582, %v611
    %s614 = sld [smem:[#allocation8 + $0xf1]]
    %v615 = vstv %s614
    %v616 = vmul.f32 %v615, %v236
    %618 = vrot.lane.b32.xlu0 %v616, 64
    %v619 = vpop.permute.xlu0 %618
    %v620 = vrot.slane %v619, 2
    %v621 = vsel %vm610, %v619, %v620
    %v623 = vadd.f32 %v592, %v621
    %s624 = sld [smem:[#allocation8 + $0xf2]]
    %v625 = vstv %s624
    %v626 = vmul.f32 %v625, %v236
    %628 = vrot.lane.b32.xlu0 %v626, 64
    %v629 = vpop.permute.xlu0 %628
    %v630 = vrot.slane %v629, 2
    %v631 = vsel %vm610, %v629, %v630
    %v633 = vadd.f32 %v602, %v631
    %s634 = sld [smem:[#allocation8 + $0xf3]]
    %v635 = vstv %s634
    %v636 = vmul.f32 %v635, %v268
    %638 = vrot.lane.b32.xlu0 %v636, 64
    %v639 = vpop.permute.xlu0 %638
    %v640 = vrot.slane %v639, 2
    %v641 = vsel %vm610, %v639, %v640
    %v643 = vadd.f32 %v613, %v641
    %s644 = sld [smem:[#allocation8 + $0xf4]]
    %v645 = vstv %s644
    %v646 = vmul.f32 %v645, %v268
    %648 = vrot.lane.b32.xlu0 %v646, 64
    %v649 = vpop.permute.xlu0 %648
    %v650 = vrot.slane %v649, 2
    %v651 = vsel %vm610, %v649, %v650
    %v653 = vadd.f32 %v623, %v651
    %s654 = sld [smem:[#allocation8 + $0xf5]]
    %v655 = vstv %s654
    %v656 = vmul.f32 %v655, %v268
    %658 = vrot.lane.b32.xlu0 %v656, 64
    %v659 = vpop.permute.xlu0 %658
    %v660 = vrot.slane %v659, 2
    %v661 = vsel %vm610, %v659, %v660
    %v663 = vadd.f32 %v633, %v661
    %s664 = sld [smem:[#allocation8 + $0xf6]]
    %v665 = vstv %s664
    %v666 = vmul.f32 %v665, %v299
    %668 = vrot.lane.b32.xlu0 %v666, 64
    %v669 = vpop.permute.xlu0 %668
    %v670 = vrot.slane %v669, 2
    %v671 = vsel %vm610, %v669, %v670
    %v673 = vadd.f32 %v643, %v671
    %s674 = sld [smem:[#allocation8 + $0xf7]]
    %v675 = vstv %s674
    %v676 = vmul.f32 %v675, %v299
    %678 = vrot.lane.b32.xlu0 %v676, 64
    %v679 = vpop.permute.xlu0 %678
    %v680 = vrot.slane %v679, 2
    %v681 = vsel %vm610, %v679, %v680
    %v683 = vadd.f32 %v653, %v681
    %s684 = sld [smem:[#allocation8 + $0xf8]]
    %v685 = vstv %s684
    %v686 = vmul.f32 %v685, %v299
    %688 = vrot.lane.b32.xlu0 %v686, 64
    %v689 = vpop.permute.xlu0 %688
    %v690 = vrot.slane %v689, 2
    %v691 = vsel %vm610, %v689, %v690
    %v693 = vadd.f32 %v663, %v691
    %s694 = sld [smem:[#allocation8 + $0xf9]]
    %v695 = vstv %s694
    %v696 = vmul.f32 %v695, %v330
    %698 = vrot.lane.b32.xlu0 %v696, 64
    %v699 = vpop.permute.xlu0 %698
    %v700 = vrot.slane %v699, 2
    %v701 = vsel %vm610, %v699, %v700
    %v703 = vadd.f32 %v673, %v701
    %s704 = sld [smem:[#allocation8 + $0xfa]]
    %v705 = vstv %s704
    %v706 = vmul.f32 %v705, %v330
    %708 = vrot.lane.b32.xlu0 %v706, 64
    %v709 = vpop.permute.xlu0 %708
    %v710 = vrot.slane %v709, 2
    %v711 = vsel %vm610, %v709, %v710
    %v713 = vadd.f32 %v683, %v711
    %s714 = sld [smem:[#allocation8 + $0xfb]]
    %v715 = vstv %s714
    %v716 = vmul.f32 %v715, %v330
    %718 = vrot.lane.b32.xlu0 %v716, 64
    %v719 = vpop.permute.xlu0 %718
    %v720 = vrot.slane %v719, 2
    %v721 = vsel %vm610, %v719, %v720
    %v723 = vadd.f32 %v693, %v721
    %v726 = vunpack.c.l.s4 1983009808
    %v727 = vunpack.c.0.s8 %v726
    %v728 = vlaneseq
    %v729 = vshrl.u32 %v728, 7
    %v730 = vsub.s32 %v727, %v729
    %v731 = vrot.slane %v703, %v730
    %v732 = vcombine.high %v731, %v731
    %v735 = vmul.f32 %v137, %v731
    %v736 = vmul.f32 %v138, %v732
    %v737 = vadd.f32 %v176, %v735
    %v738 = vadd.f32 %v176, %v736
    %v741 = vunpack.c.l.s4 1983009808
    %v742 = vunpack.c.0.s8 %v741
    %v743 = vlaneseq
    %v744 = vshrl.u32 %v743, 7
    %v745 = vsub.s32 %v742, %v744
    %v746 = vrot.slane %v713, %v745
    %v747 = vcombine.high %v746, %v746
    %v750 = vmul.f32 %v137, %v746
    %v751 = vmul.f32 %v138, %v747
    %v752 = vadd.f32 %v178, %v750
    %v753 = vadd.f32 %v178, %v751
    %v756 = vunpack.c.l.s4 1983009808
    %v757 = vunpack.c.0.s8 %v756
    %v758 = vlaneseq
    %v759 = vshrl.u32 %v758, 7
    %v760 = vsub.s32 %v757, %v759
    %v761 = vrot.slane %v723, %v760
    %v762 = vcombine.high %v761, %v761
    %v765 = vmul.f32 %v137, %v761
    %v766 = vmul.f32 %v138, %v762
    %v767 = vadd.f32 %v180, %v765
    %v768 = vadd.f32 %v180, %v766
    %v769 = vld [vmem:[#allocation2] sm:$0x3f]
    %s770 = sld [smem:[#allocation8 + $0xc]]
    %v771 = vstv %s770
    %v772 = vmul.f32 %v771, %v769
    %v773 = vadd.f32 %v772, 0.0
    %s774 = sld [smem:[#allocation8 + $0xd]]
    %v775 = vstv %s774
    %v776 = vmul.f32 %v775, %v769
    %v777 = vadd.f32 %v776, 0.0
    %s778 = sld [smem:[#allocation8 + $0xe]]
    %v779 = vstv %s778
    %v780 = vmul.f32 %v779, %v769
    %v781 = vadd.f32 %v780, 0.0
    %v782 = vld [vmem:[%s194] sm:$0x3f]
    %s783 = sld [smem:[#allocation8 + $0xf]]
    %v784 = vstv %s783
    %v785 = vmul.f32 %v784, %v782
    %v786 = vadd.f32 %v773, %v785
    %s787 = sld [smem:[#allocation8 + $0x10]]
    %v788 = vstv %s787
    %v789 = vmul.f32 %v788, %v782
    %v790 = vadd.f32 %v777, %v789
    %s791 = sld [smem:[#allocation8 + $0x11]]
    %v792 = vstv %s791
    %v793 = vmul.f32 %v792, %v782
    %v794 = vadd.f32 %v781, %v793
    %v795 = vld [vmem:[%s208] sm:$0x3f]
    %s796 = sld [smem:[#allocation8 + $0x12]]
    %v797 = vstv %s796
    %v798 = vmul.f32 %v797, %v795
    %v799 = vadd.f32 %v786, %v798
    %s800 = sld [smem:[#allocation8 + $0x13]]
    %v801 = vstv %s800
    %v802 = vmul.f32 %v801, %v795
    %v803 = vadd.f32 %v790, %v802
    %s804 = sld [smem:[#allocation8 + $0x14]]
    %v805 = vstv %s804
    %v806 = vmul.f32 %v805, %v795
    %v807 = vadd.f32 %v794, %v806
    %v808 = vld [vmem:[%s222] sm:$0x3f]
    %s809 = sld [smem:[#allocation8 + $0x15]]
    %v810 = vstv %s809
    %v811 = vmul.f32 %v810, %v808
    %v812 = vadd.f32 %v799, %v811
    %s813 = sld [smem:[#allocation8 + $0x16]]
    %v814 = vstv %s813
    %v815 = vmul.f32 %v814, %v808
    %v816 = vadd.f32 %v803, %v815
    %s817 = sld [smem:[#allocation8 + $0x17]]
    %v818 = vstv %s817
    %v819 = vmul.f32 %v818, %v808
    %v820 = vadd.f32 %v807, %v819
    %s821 = sld [smem:[#allocation8 + $0x48]]
    %v822 = vstv %s821
    %v823 = vmul.f32 %v822, %v769
    %825 = vrot.lane.b32.xlu0 %v823, 112
    %v826 = vpop.permute.xlu0 %825
    %v827 = vrot.slane %v826, 2
    %v828 = vsel %vm244, %v826, %v827
    %v830 = vadd.f32 %v812, %v828
    %s831 = sld [smem:[#allocation8 + $0x49]]
    %v832 = vstv %s831
    %v833 = vmul.f32 %v832, %v769
    %835 = vrot.lane.b32.xlu0 %v833, 112
    %v836 = vpop.permute.xlu0 %835
    %v837 = vrot.slane %v836, 2
    %v838 = vsel %vm244, %v836, %v837
    %v840 = vadd.f32 %v816, %v838
    %s841 = sld [smem:[#allocation8 + $0x4a]]
    %v842 = vstv %s841
    %v843 = vmul.f32 %v842, %v769
    %845 = vrot.lane.b32.xlu0 %v843, 112
    %v846 = vpop.permute.xlu0 %845
    %v847 = vrot.slane %v846, 2
    %v848 = vsel %vm244, %v846, %v847
    %v850 = vadd.f32 %v820, %v848
    %s851 = sld [smem:[#allocation8 + $0x4b]]
    %v852 = vstv %s851
    %v853 = vmul.f32 %v852, %v782
    %855 = vrot.lane.b32.xlu0 %v853, 112
    %v856 = vpop.permute.xlu0 %855
    %v857 = vrot.slane %v856, 2
    %v858 = vsel %vm244, %v856, %v857
    %v860 = vadd.f32 %v830, %v858
    %s861 = sld [smem:[#allocation8 + $0x4c]]
    %v862 = vstv %s861
    %v863 = vmul.f32 %v862, %v782
    %865 = vrot.lane.b32.xlu0 %v863, 112
    %v866 = vpop.permute.xlu0 %865
    %v867 = vrot.slane %v866, 2
    %v868 = vsel %vm244, %v866, %v867
    %v870 = vadd.f32 %v840, %v868
    %s871 = sld [smem:[#allocation8 + $0x4d]]
    %v872 = vstv %s871
    %v873 = vmul.f32 %v872, %v782
    %875 = vrot.lane.b32.xlu0 %v873, 112
    %v876 = vpop.permute.xlu0 %875
    %v877 = vrot.slane %v876, 2
    %v878 = vsel %vm244, %v876, %v877
    %v880 = vadd.f32 %v850, %v878
    %s881 = sld [smem:[#allocation8 + $0x4e]]
    %v882 = vstv %s881
    %v883 = vmul.f32 %v882, %v795
    %885 = vrot.lane.b32.xlu0 %v883, 112
    %v886 = vpop.permute.xlu0 %885
    %v887 = vrot.slane %v886, 2
    %v888 = vsel %vm244, %v886, %v887
    %v890 = vadd.f32 %v860, %v888
    %s891 = sld [smem:[#allocation8 + $0x4f]]
    %v892 = vstv %s891
    %v893 = vmul.f32 %v892, %v795
    %895 = vrot.lane.b32.xlu0 %v893, 112
    %v896 = vpop.permute.xlu0 %895
    %v897 = vrot.slane %v896, 2
    %v898 = vsel %vm244, %v896, %v897
    %v900 = vadd.f32 %v870, %v898
    %s901 = sld [smem:[#allocation8 + $0x50]]
    %v902 = vstv %s901
    %v903 = vmul.f32 %v902, %v795
    %905 = vrot.lane.b32.xlu0 %v903, 112
    %v906 = vpop.permute.xlu0 %905
    %v907 = vrot.slane %v906, 2
    %v908 = vsel %vm244, %v906, %v907
    %v910 = vadd.f32 %v880, %v908
    %s911 = sld [smem:[#allocation8 + $0x51]]
    %v912 = vstv %s911
    %v913 = vmul.f32 %v912, %v808
    %915 = vrot.lane.b32.xlu0 %v913, 112
    %v916 = vpop.permute.xlu0 %915
    %v917 = vrot.slane %v916, 2
    %v918 = vsel %vm244, %v916, %v917
    %v920 = vadd.f32 %v890, %v918
    %s921 = sld [smem:[#allocation8 + $0x52]]
    %v922 = vstv %s921
    %v923 = vmul.f32 %v922, %v808
    %925 = vrot.lane.b32.xlu0 %v923, 112
    %v926 = vpop.permute.xlu0 %925
    %v927 = vrot.slane %v926, 2
    %v928 = vsel %vm244, %v926, %v927
    %v930 = vadd.f32 %v900, %v928
    %s931 = sld [smem:[#allocation8 + $0x53]]
    %v932 = vstv %s931
    %v933 = vmul.f32 %v932, %v808
    %935 = vrot.lane.b32.xlu0 %v933, 112
    %v936 = vpop.permute.xlu0 %935
    %v937 = vrot.slane %v936, 2
    %v938 = vsel %vm244, %v936, %v937
    %v940 = vadd.f32 %v910, %v938
    %s941 = sld [smem:[#allocation8 + $0x84]]
    %v942 = vstv %s941
    %v943 = vmul.f32 %v942, %v769
    %945 = vrot.lane.b32.xlu0 %v943, 96
    %v946 = vpop.permute.xlu0 %945
    %v947 = vrot.slane %v946, 2
    %v948 = vsel %vm368, %v946, %v947
    %v950 = vadd.f32 %v920, %v948
    %s951 = sld [smem:[#allocation8 + $0x85]]
    %v952 = vstv %s951
    %v953 = vmul.f32 %v952, %v769
    %955 = vrot.lane.b32.xlu0 %v953, 96
    %v956 = vpop.permute.xlu0 %955
    %v957 = vrot.slane %v956, 2
    %v958 = vsel %vm368, %v956, %v957
    %v960 = vadd.f32 %v930, %v958
    %s961 = sld [smem:[#allocation8 + $0x86]]
    %v962 = vstv %s961
    %v963 = vmul.f32 %v962, %v769
    %965 = vrot.lane.b32.xlu0 %v963, 96
    %v966 = vpop.permute.xlu0 %965
    %v967 = vrot.slane %v966, 2
    %v968 = vsel %vm368, %v966, %v967
    %v970 = vadd.f32 %v940, %v968
    %s971 = sld [smem:[#allocation8 + $0x87]]
    %v972 = vstv %s971
    %v973 = vmul.f32 %v972, %v782
    %975 = vrot.lane.b32.xlu0 %v973, 96
    %v976 = vpop.permute.xlu0 %975
    %v977 = vrot.slane %v976, 2
    %v978 = vsel %vm368, %v976, %v977
    %v980 = vadd.f32 %v950, %v978
    %s981 = sld [smem:[#allocation8 + $0x88]]
    %v982 = vstv %s981
    %v983 = vmul.f32 %v982, %v782
    %985 = vrot.lane.b32.xlu0 %v983, 96
    %v986 = vpop.permute.xlu0 %985
    %v987 = vrot.slane %v986, 2
    %v988 = vsel %vm368, %v986, %v987
    %v990 = vadd.f32 %v960, %v988
    %s991 = sld [smem:[#allocation8 + $0x89]]
    %v992 = vstv %s991
    %v993 = vmul.f32 %v992, %v782
    %995 = vrot.lane.b32.xlu0 %v993, 96
    %v996 = vpop.permute.xlu0 %995
    %v997 = vrot.slane %v996, 2
    %v998 = vsel %vm368, %v996, %v997
    %v1000 = vadd.f32 %v970, %v998
    %s1001 = sld [smem:[#allocation8 + $0x8a]]
    %v1002 = vstv %s1001
    %v1003 = vmul.f32 %v1002, %v795
    %1005 = vrot.lane.b32.xlu0 %v1003, 96
    %v1006 = vpop.permute.xlu0 %1005
    %v1007 = vrot.slane %v1006, 2
    %v1008 = vsel %vm368, %v1006, %v1007
    %v1010 = vadd.f32 %v980, %v1008
    %s1011 = sld [smem:[#allocation8 + $0x8b]]
    %v1012 = vstv %s1011
    %v1013 = vmul.f32 %v1012, %v795
    %1015 = vrot.lane.b32.xlu0 %v1013, 96
    %v1016 = vpop.permute.xlu0 %1015
    %v1017 = vrot.slane %v1016, 2
    %v1018 = vsel %vm368, %v1016, %v1017
    %v1020 = vadd.f32 %v990, %v1018
    %s1021 = sld [smem:[#allocation8 + $0x8c]]
    %v1022 = vstv %s1021
    %v1023 = vmul.f32 %v1022, %v795
    %1025 = vrot.lane.b32.xlu0 %v1023, 96
    %v1026 = vpop.permute.xlu0 %1025
    %v1027 = vrot.slane %v1026, 2
    %v1028 = vsel %vm368, %v1026, %v1027
    %v1030 = vadd.f32 %v1000, %v1028
    %s1031 = sld [smem:[#allocation8 + $0x8d]]
    %v1032 = vstv %s1031
    %v1033 = vmul.f32 %v1032, %v808
    %1035 = vrot.lane.b32.xlu0 %v1033, 96
    %v1036 = vpop.permute.xlu0 %1035
    %v1037 = vrot.slane %v1036, 2
    %v1038 = vsel %vm368, %v1036, %v1037
    %v1040 = vadd.f32 %v1010, %v1038
    %s1041 = sld [smem:[#allocation8 + $0x8e]]
    %v1042 = vstv %s1041
    %v1043 = vmul.f32 %v1042, %v808
    %1045 = vrot.lane.b32.xlu0 %v1043, 96
    %v1046 = vpop.permute.xlu0 %1045
    %v1047 = vrot.slane %v1046, 2
    %v1048 = vsel %vm368, %v1046, %v1047
    %v1050 = vadd.f32 %v1020, %v1048
    %s1051 = sld [smem:[#allocation8 + $0x8f]]
    %v1052 = vstv %s1051
    %v1053 = vmul.f32 %v1052, %v808
    %1055 = vrot.lane.b32.xlu0 %v1053, 96
    %v1056 = vpop.permute.xlu0 %1055
    %v1057 = vrot.slane %v1056, 2
    %v1058 = vsel %vm368, %v1056, %v1057
    %v1060 = vadd.f32 %v1030, %v1058
    %s1061 = sld [smem:[#allocation8 + $0xc0]]
    %v1062 = vstv %s1061
    %v1063 = vmul.f32 %v1062, %v769
    %1065 = vrot.lane.b32.xlu0 %v1063, 80
    %v1066 = vpop.permute.xlu0 %1065
    %v1067 = vrot.slane %v1066, 2
    %v1068 = vsel %vm489, %v1066, %v1067
    %v1070 = vadd.f32 %v1040, %v1068
    %s1071 = sld [smem:[#allocation8 + $0xc1]]
    %v1072 = vstv %s1071
    %v1073 = vmul.f32 %v1072, %v769
    %1075 = vrot.lane.b32.xlu0 %v1073, 80
    %v1076 = vpop.permute.xlu0 %1075
    %v1077 = vrot.slane %v1076, 2
    %v1078 = vsel %vm489, %v1076, %v1077
    %v1080 = vadd.f32 %v1050, %v1078
    %s1081 = sld [smem:[#allocation8 + $0xc2]]
    %v1082 = vstv %s1081
    %v1083 = vmul.f32 %v1082, %v769
    %1085 = vrot.lane.b32.xlu0 %v1083, 80
    %v1086 = vpop.permute.xlu0 %1085
    %v1087 = vrot.slane %v1086, 2
    %v1088 = vsel %vm489, %v1086, %v1087
    %v1090 = vadd.f32 %v1060, %v1088
    %s1091 = sld [smem:[#allocation8 + $0xc3]]
    %v1092 = vstv %s1091
    %v1093 = vmul.f32 %v1092, %v782
    %1095 = vrot.lane.b32.xlu0 %v1093, 80
    %v1096 = vpop.permute.xlu0 %1095
    %v1097 = vrot.slane %v1096, 2
    %v1098 = vsel %vm489, %v1096, %v1097
    %v1100 = vadd.f32 %v1070, %v1098
    %s1101 = sld [smem:[#allocation8 + $0xc4]]
    %v1102 = vstv %s1101
    %v1103 = vmul.f32 %v1102, %v782
    %1105 = vrot.lane.b32.xlu0 %v1103, 80
    %v1106 = vpop.permute.xlu0 %1105
    %v1107 = vrot.slane %v1106, 2
    %v1108 = vsel %vm489, %v1106, %v1107
    %v1110 = vadd.f32 %v1080, %v1108
    %s1111 = sld [smem:[#allocation8 + $0xc5]]
    %v1112 = vstv %s1111
    %v1113 = vmul.f32 %v1112, %v782
    %1115 = vrot.lane.b32.xlu0 %v1113, 80
    %v1116 = vpop.permute.xlu0 %1115
    %v1117 = vrot.slane %v1116, 2
    %v1118 = vsel %vm489, %v1116, %v1117
    %v1120 = vadd.f32 %v1090, %v1118
    %s1121 = sld [smem:[#allocation8 + $0xc6]]
    %v1122 = vstv %s1121
    %v1123 = vmul.f32 %v1122, %v795
    %1125 = vrot.lane.b32.xlu0 %v1123, 80
    %v1126 = vpop.permute.xlu0 %1125
    %v1127 = vrot.slane %v1126, 2
    %v1128 = vsel %vm489, %v1126, %v1127
    %v1130 = vadd.f32 %v1100, %v1128
    %s1131 = sld [smem:[#allocation8 + $0xc7]]
    %v1132 = vstv %s1131
    %v1133 = vmul.f32 %v1132, %v795
    %1135 = vrot.lane.b32.xlu0 %v1133, 80
    %v1136 = vpop.permute.xlu0 %1135
    %v1137 = vrot.slane %v1136, 2
    %v1138 = vsel %vm489, %v1136, %v1137
    %v1140 = vadd.f32 %v1110, %v1138
    %s1141 = sld [smem:[#allocation8 + $0xc8]]
    %v1142 = vstv %s1141
    %v1143 = vmul.f32 %v1142, %v795
    %1145 = vrot.lane.b32.xlu0 %v1143, 80
    %v1146 = vpop.permute.xlu0 %1145
    %v1147 = vrot.slane %v1146, 2
    %v1148 = vsel %vm489, %v1146, %v1147
    %v1150 = vadd.f32 %v1120, %v1148
    %s1151 = sld [smem:[#allocation8 + $0xc9]]
    %v1152 = vstv %s1151
    %v1153 = vmul.f32 %v1152, %v808
    %1155 = vrot.lane.b32.xlu0 %v1153, 80
    %v1156 = vpop.permute.xlu0 %1155
    %v1157 = vrot.slane %v1156, 2
    %v1158 = vsel %vm489, %v1156, %v1157
    %v1160 = vadd.f32 %v1130, %v1158
    %s1161 = sld [smem:[#allocation8 + $0xca]]
    %v1162 = vstv %s1161
    %v1163 = vmul.f32 %v1162, %v808
    %1165 = vrot.lane.b32.xlu0 %v1163, 80
    %v1166 = vpop.permute.xlu0 %1165
    %v1167 = vrot.slane %v1166, 2
    %v1168 = vsel %vm489, %v1166, %v1167
    %v1170 = vadd.f32 %v1140, %v1168
    %s1171 = sld [smem:[#allocation8 + $0xcb]]
    %v1172 = vstv %s1171
    %v1173 = vmul.f32 %v1172, %v808
    %1175 = vrot.lane.b32.xlu0 %v1173, 80
    %v1176 = vpop.permute.xlu0 %1175
    %v1177 = vrot.slane %v1176, 2
    %v1178 = vsel %vm489, %v1176, %v1177
    %v1180 = vadd.f32 %v1150, %v1178
    %s1181 = sld [smem:[#allocation8 + $0xfc]]
    %v1182 = vstv %s1181
    %v1183 = vmul.f32 %v1182, %v769
    %1185 = vrot.lane.b32.xlu0 %v1183, 64
    %v1186 = vpop.permute.xlu0 %1185
    %v1187 = vrot.slane %v1186, 2
    %v1188 = vsel %vm610, %v1186, %v1187
    %v1190 = vadd.f32 %v1160, %v1188
    %s1191 = sld [smem:[#allocation8 + $0xfd]]
    %v1192 = vstv %s1191
    %v1193 = vmul.f32 %v1192, %v769
    %1195 = vrot.lane.b32.xlu0 %v1193, 64
    %v1196 = vpop.permute.xlu0 %1195
    %v1197 = vrot.slane %v1196, 2
    %v1198 = vsel %vm610, %v1196, %v1197
    %v1200 = vadd.f32 %v1170, %v1198
    %s1201 = sld [smem:[#allocation8 + $0xfe]]
    %v1202 = vstv %s1201
    %v1203 = vmul.f32 %v1202, %v769
    %1205 = vrot.lane.b32.xlu0 %v1203, 64
    %v1206 = vpop.permute.xlu0 %1205
    %v1207 = vrot.slane %v1206, 2
    %v1208 = vsel %vm610, %v1206, %v1207
    %v1210 = vadd.f32 %v1180, %v1208
    %s1211 = sld [smem:[#allocation8 + $0xff]]
    %v1212 = vstv %s1211
    %v1213 = vmul.f32 %v1212, %v782
    %1215 = vrot.lane.b32.xlu0 %v1213, 64
    %v1216 = vpop.permute.xlu0 %1215
    %v1217 = vrot.slane %v1216, 2
    %v1218 = vsel %vm610, %v1216, %v1217
    %v1220 = vadd.f32 %v1190, %v1218
    %s1221 = sld [smem:[#allocation8 + $0x100]]
    %v1222 = vstv %s1221
    %v1223 = vmul.f32 %v1222, %v782
    %1225 = vrot.lane.b32.xlu0 %v1223, 64
    %v1226 = vpop.permute.xlu0 %1225
    %v1227 = vrot.slane %v1226, 2
    %v1228 = vsel %vm610, %v1226, %v1227
    %v1230 = vadd.f32 %v1200, %v1228
    %s1231 = sld [smem:[#allocation8 + $0x101]]
    %v1232 = vstv %s1231
    %v1233 = vmul.f32 %v1232, %v782
    %1235 = vrot.lane.b32.xlu0 %v1233, 64
    %v1236 = vpop.permute.xlu0 %1235
    %v1237 = vrot.slane %v1236, 2
    %v1238 = vsel %vm610, %v1236, %v1237
    %v1240 = vadd.f32 %v1210, %v1238
    %s1241 = sld [smem:[#allocation8 + $0x102]]
    %v1242 = vstv %s1241
    %v1243 = vmul.f32 %v1242, %v795
    %1245 = vrot.lane.b32.xlu0 %v1243, 64
    %v1246 = vpop.permute.xlu0 %1245
    %v1247 = vrot.slane %v1246, 2
    %v1248 = vsel %vm610, %v1246, %v1247
    %v1250 = vadd.f32 %v1220, %v1248
    %s1251 = sld [smem:[#allocation8 + $0x103]]
    %v1252 = vstv %s1251
    %v1253 = vmul.f32 %v1252, %v795
    %1255 = vrot.lane.b32.xlu0 %v1253, 64
    %v1256 = vpop.permute.xlu0 %1255
    %v1257 = vrot.slane %v1256, 2
    %v1258 = vsel %vm610, %v1256, %v1257
    %v1260 = vadd.f32 %v1230, %v1258
    %s1261 = sld [smem:[#allocation8 + $0x104]]
    %v1262 = vstv %s1261
    %v1263 = vmul.f32 %v1262, %v795
    %1265 = vrot.lane.b32.xlu0 %v1263, 64
    %v1266 = vpop.permute.xlu0 %1265
    %v1267 = vrot.slane %v1266, 2
    %v1268 = vsel %vm610, %v1266, %v1267
    %v1270 = vadd.f32 %v1240, %v1268
    %s1271 = sld [smem:[#allocation8 + $0x105]]
    %v1272 = vstv %s1271
    %v1273 = vmul.f32 %v1272, %v808
    %1275 = vrot.lane.b32.xlu0 %v1273, 64
    %v1276 = vpop.permute.xlu0 %1275
    %v1277 = vrot.slane %v1276, 2
    %v1278 = vsel %vm610, %v1276, %v1277
    %v1280 = vadd.f32 %v1250, %v1278
    %s1281 = sld [smem:[#allocation8 + $0x106]]
    %v1282 = vstv %s1281
    %v1283 = vmul.f32 %v1282, %v808
    %1285 = vrot.lane.b32.xlu0 %v1283, 64
    %v1286 = vpop.permute.xlu0 %1285
    %v1287 = vrot.slane %v1286, 2
    %v1288 = vsel %vm610, %v1286, %v1287
    %v1290 = vadd.f32 %v1260, %v1288
    %s1291 = sld [smem:[#allocation8 + $0x107]]
    %v1292 = vstv %s1291
    %v1293 = vmul.f32 %v1292, %v808
    %1295 = vrot.lane.b32.xlu0 %v1293, 64
    %v1296 = vpop.permute.xlu0 %1295
    %v1297 = vrot.slane %v1296, 2
    %v1298 = vsel %vm610, %v1296, %v1297
    %v1300 = vadd.f32 %v1270, %v1298
    %v1302 = vcombine.high %v1280, %v1280
    %v1304 = vunpack.c.l.s4 1983009808
    %v1305 = vunpack.c.0.s8 %v1304
    %v1306 = vlaneseq
    %v1307 = vshrl.u32 %v1306, 7
    %v1308 = vsub.s32 %v1305, %v1307
    %v1309 = vrot.slane %v1280, %v1308
    %v1311 = vunpack.c.l.s4 1983009808
    %v1312 = vunpack.c.0.s8 %v1311
    %v1313 = vlaneseq
    %v1314 = vshrl.u32 %v1313, 7
    %v1315 = vsub.s32 %v1312, %v1314
    %v1316 = vrot.slane %v1302, %v1315
    %v1317 = vcombine.high %v1309, %v1309
    %1318 = vrot.lane.b32.xlu0 %v1309, 127
    %v1319 = vpop.permute.xlu0 %1318
    %1320 = vrot.lane.b32.xlu0 %v1317, 127
    %v1321 = vpop.permute.xlu0 %1320
    %1322 = vrot.lane.b32.xlu0 %v1316, 127
    %v1323 = vpop.permute.xlu0 %1322
    %vm1324 = vcmask 1039360
    %v1325 = vsel %vm1324, %v1319, %v1321
    %v1326 = vsel %vm1324, %v1321, %v1323
    %v1329 = vmul.f32 %v149, %v1325
    %v1330 = vmul.f32 %v150, %v1326
    %v1331 = vadd.f32 %v737, %v1329
    %v1332 = vadd.f32 %v738, %v1330
    %v1334 = vcombine.high %v1290, %v1290
    %v1336 = vunpack.c.l.s4 1983009808
    %v1337 = vunpack.c.0.s8 %v1336
    %v1338 = vlaneseq
    %v1339 = vshrl.u32 %v1338, 7
    %v1340 = vsub.s32 %v1337, %v1339
    %v1341 = vrot.slane %v1290, %v1340
    %v1343 = vunpack.c.l.s4 1983009808
    %v1344 = vunpack.c.0.s8 %v1343
    %v1345 = vlaneseq
    %v1346 = vshrl.u32 %v1345, 7
    %v1347 = vsub.s32 %v1344, %v1346
    %v1348 = vrot.slane %v1334, %v1347
    %v1349 = vcombine.high %v1341, %v1341
    %1350 = vrot.lane.b32.xlu0 %v1341, 127
    %v1351 = vpop.permute.xlu0 %1350
    %1352 = vrot.lane.b32.xlu0 %v1349, 127
    %v1353 = vpop.permute.xlu0 %1352
    %1354 = vrot.lane.b32.xlu0 %v1348, 127
    %v1355 = vpop.permute.xlu0 %1354
    %v1356 = vsel %vm1324, %v1351, %v1353
    %v1357 = vsel %vm1324, %v1353, %v1355
    %v1360 = vmul.f32 %v149, %v1356
    %v1361 = vmul.f32 %v150, %v1357
    %v1362 = vadd.f32 %v752, %v1360
    %v1363 = vadd.f32 %v753, %v1361
    %v1365 = vcombine.high %v1300, %v1300
    %v1367 = vunpack.c.l.s4 1983009808
    %v1368 = vunpack.c.0.s8 %v1367
    %v1369 = vlaneseq
    %v1370 = vshrl.u32 %v1369, 7
    %v1371 = vsub.s32 %v1368, %v1370
    %v1372 = vrot.slane %v1300, %v1371
    %v1374 = vunpack.c.l.s4 1983009808
    %v1375 = vunpack.c.0.s8 %v1374
    %v1376 = vlaneseq
    %v1377 = vshrl.u32 %v1376, 7
    %v1378 = vsub.s32 %v1375, %v1377
    %v1379 = vrot.slane %v1365, %v1378
    %v1380 = vcombine.high %v1372, %v1372
    %1381 = vrot.lane.b32.xlu0 %v1372, 127
    %v1382 = vpop.permute.xlu0 %1381
    %1383 = vrot.lane.b32.xlu0 %v1380, 127
    %v1384 = vpop.permute.xlu0 %1383
    %1385 = vrot.lane.b32.xlu0 %v1379, 127
    %v1386 = vpop.permute.xlu0 %1385
    %v1387 = vsel %vm1324, %v1382, %v1384
    %v1388 = vsel %vm1324, %v1384, %v1386
    %v1391 = vmul.f32 %v149, %v1387
    %v1392 = vmul.f32 %v150, %v1388
    %v1393 = vadd.f32 %v767, %v1391
    %v1394 = vadd.f32 %v768, %v1392
    %v1395 = vld [vmem:[#allocation2] sm:$0x3f]
    %s1396 = sld [smem:[#allocation8 + $0x18]]
    %v1397 = vstv %s1396
    %v1398 = vmul.f32 %v1397, %v1395
    %v1399 = vadd.f32 %v1398, 0.0
    %s1400 = sld [smem:[#allocation8 + $0x19]]
    %v1401 = vstv %s1400
    %v1402 = vmul.f32 %v1401, %v1395
    %v1403 = vadd.f32 %v1402, 0.0
    %s1404 = sld [smem:[#allocation8 + $0x1a]]
    %v1405 = vstv %s1404
    %v1406 = vmul.f32 %v1405, %v1395
    %v1407 = vadd.f32 %v1406, 0.0
    %v1408 = vld [vmem:[%s194] sm:$0x3f]
    %s1409 = sld [smem:[#allocation8 + $0x1b]]
    %v1410 = vstv %s1409
    %v1411 = vmul.f32 %v1410, %v1408
    %v1412 = vadd.f32 %v1399, %v1411
    %s1413 = sld [smem:[#allocation8 + $0x1c]]
    %v1414 = vstv %s1413
    %v1415 = vmul.f32 %v1414, %v1408
    %v1416 = vadd.f32 %v1403, %v1415
    %s1417 = sld [smem:[#allocation8 + $0x1d]]
    %v1418 = vstv %s1417
    %v1419 = vmul.f32 %v1418, %v1408
    %v1420 = vadd.f32 %v1407, %v1419
    %v1421 = vld [vmem:[%s208] sm:$0x3f]
    %s1422 = sld [smem:[#allocation8 + $0x1e]]
    %v1423 = vstv %s1422
    %v1424 = vmul.f32 %v1423, %v1421
    %v1425 = vadd.f32 %v1412, %v1424
    %s1426 = sld [smem:[#allocation8 + $0x1f]]
    %v1427 = vstv %s1426
    %v1428 = vmul.f32 %v1427, %v1421
    %v1429 = vadd.f32 %v1416, %v1428
    %s1430 = sld [smem:[#allocation8 + $0x20]]
    %v1431 = vstv %s1430
    %v1432 = vmul.f32 %v1431, %v1421
    %v1433 = vadd.f32 %v1420, %v1432
    %v1434 = vld [vmem:[%s222] sm:$0x3f]
    %s1435 = sld [smem:[#allocation8 + $0x21]]
    %v1436 = vstv %s1435
    %v1437 = vmul.f32 %v1436, %v1434
    %v1438 = vadd.f32 %v1425, %v1437
    %s1439 = sld [smem:[#allocation8 + $0x22]]
    %v1440 = vstv %s1439
    %v1441 = vmul.f32 %v1440, %v1434
    %v1442 = vadd.f32 %v1429, %v1441
    %s1443 = sld [smem:[#allocation8 + $0x23]]
    %v1444 = vstv %s1443
    %v1445 = vmul.f32 %v1444, %v1434
    %v1446 = vadd.f32 %v1433, %v1445
    %s1447 = sld [smem:[#allocation8 + $0x54]]
    %v1448 = vstv %s1447
    %v1449 = vmul.f32 %v1448, %v1395
    %1451 = vrot.lane.b32.xlu0 %v1449, 112
    %v1452 = vpop.permute.xlu0 %1451
    %v1453 = vrot.slane %v1452, 2
    %v1454 = vsel %vm244, %v1452, %v1453
    %v1456 = vadd.f32 %v1438, %v1454
    %s1457 = sld [smem:[#allocation8 + $0x55]]
    %v1458 = vstv %s1457
    %v1459 = vmul.f32 %v1458, %v1395
    %1461 = vrot.lane.b32.xlu0 %v1459, 112
    %v1462 = vpop.permute.xlu0 %1461
    %v1463 = vrot.slane %v1462, 2
    %v1464 = vsel %vm244, %v1462, %v1463
    %v1466 = vadd.f32 %v1442, %v1464
    %s1467 = sld [smem:[#allocation8 + $0x56]]
    %v1468 = vstv %s1467
    %v1469 = vmul.f32 %v1468, %v1395
    %1471 = vrot.lane.b32.xlu0 %v1469, 112
    %v1472 = vpop.permute.xlu0 %1471
    %v1473 = vrot.slane %v1472, 2
    %v1474 = vsel %vm244, %v1472, %v1473
    %v1476 = vadd.f32 %v1446, %v1474
    %s1477 = sld [smem:[#allocation8 + $0x57]]
    %v1478 = vstv %s1477
    %v1479 = vmul.f32 %v1478, %v1408
    %1481 = vrot.lane.b32.xlu0 %v1479, 112
    %v1482 = vpop.permute.xlu0 %1481
    %v1483 = vrot.slane %v1482, 2
    %v1484 = vsel %vm244, %v1482, %v1483
    %v1486 = vadd.f32 %v1456, %v1484
    %s1487 = sld [smem:[#allocation8 + $0x58]]
    %v1488 = vstv %s1487
    %v1489 = vmul.f32 %v1488, %v1408
    %1491 = vrot.lane.b32.xlu0 %v1489, 112
    %v1492 = vpop.permute.xlu0 %1491
    %v1493 = vrot.slane %v1492, 2
    %v1494 = vsel %vm244, %v1492, %v1493
    %v1496 = vadd.f32 %v1466, %v1494
    %s1497 = sld [smem:[#allocation8 + $0x59]]
    %v1498 = vstv %s1497
    %v1499 = vmul.f32 %v1498, %v1408
    %1501 = vrot.lane.b32.xlu0 %v1499, 112
    %v1502 = vpop.permute.xlu0 %1501
    %v1503 = vrot.slane %v1502, 2
    %v1504 = vsel %vm244, %v1502, %v1503
    %v1506 = vadd.f32 %v1476, %v1504
    %s1507 = sld [smem:[#allocation8 + $0x5a]]
    %v1508 = vstv %s1507
    %v1509 = vmul.f32 %v1508, %v1421
    %1511 = vrot.lane.b32.xlu0 %v1509, 112
    %v1512 = vpop.permute.xlu0 %1511
    %v1513 = vrot.slane %v1512, 2
    %v1514 = vsel %vm244, %v1512, %v1513
    %v1516 = vadd.f32 %v1486, %v1514
    %s1517 = sld [smem:[#allocation8 + $0x5b]]
    %v1518 = vstv %s1517
    %v1519 = vmul.f32 %v1518, %v1421
    %1521 = vrot.lane.b32.xlu0 %v1519, 112
    %v1522 = vpop.permute.xlu0 %1521
    %v1523 = vrot.slane %v1522, 2
    %v1524 = vsel %vm244, %v1522, %v1523
    %v1526 = vadd.f32 %v1496, %v1524
    %s1527 = sld [smem:[#allocation8 + $0x5c]]
    %v1528 = vstv %s1527
    %v1529 = vmul.f32 %v1528, %v1421
    %1531 = vrot.lane.b32.xlu0 %v1529, 112
    %v1532 = vpop.permute.xlu0 %1531
    %v1533 = vrot.slane %v1532, 2
    %v1534 = vsel %vm244, %v1532, %v1533
    %v1536 = vadd.f32 %v1506, %v1534
    %s1537 = sld [smem:[#allocation8 + $0x5d]]
    %v1538 = vstv %s1537
    %v1539 = vmul.f32 %v1538, %v1434
    %1541 = vrot.lane.b32.xlu0 %v1539, 112
    %v1542 = vpop.permute.xlu0 %1541
    %v1543 = vrot.slane %v1542, 2
    %v1544 = vsel %vm244, %v1542, %v1543
    %v1546 = vadd.f32 %v1516, %v1544
    %s1547 = sld [smem:[#allocation8 + $0x5e]]
    %v1548 = vstv %s1547
    %v1549 = vmul.f32 %v1548, %v1434
    %1551 = vrot.lane.b32.xlu0 %v1549, 112
    %v1552 = vpop.permute.xlu0 %1551
    %v1553 = vrot.slane %v1552, 2
    %v1554 = vsel %vm244, %v1552, %v1553
    %v1556 = vadd.f32 %v1526, %v1554
    %s1557 = sld [smem:[#allocation8 + $0x5f]]
    %v1558 = vstv %s1557
    %v1559 = vmul.f32 %v1558, %v1434
    %1561 = vrot.lane.b32.xlu0 %v1559, 112
    %v1562 = vpop.permute.xlu0 %1561
    %v1563 = vrot.slane %v1562, 2
    %v1564 = vsel %vm244, %v1562, %v1563
    %v1566 = vadd.f32 %v1536, %v1564
    %s1567 = sld [smem:[#allocation8 + $0x90]]
    %v1568 = vstv %s1567
    %v1569 = vmul.f32 %v1568, %v1395
    %1571 = vrot.lane.b32.xlu0 %v1569, 96
    %v1572 = vpop.permute.xlu0 %1571
    %v1573 = vrot.slane %v1572, 2
    %v1574 = vsel %vm368, %v1572, %v1573
    %v1576 = vadd.f32 %v1546, %v1574
    %s1577 = sld [smem:[#allocation8 + $0x91]]
    %v1578 = vstv %s1577
    %v1579 = vmul.f32 %v1578, %v1395
    %1581 = vrot.lane.b32.xlu0 %v1579, 96
    %v1582 = vpop.permute.xlu0 %1581
    %v1583 = vrot.slane %v1582, 2
    %v1584 = vsel %vm368, %v1582, %v1583
    %v1586 = vadd.f32 %v1556, %v1584
    %s1587 = sld [smem:[#allocation8 + $0x92]]
    %v1588 = vstv %s1587
    %v1589 = vmul.f32 %v1588, %v1395
    %1591 = vrot.lane.b32.xlu0 %v1589, 96
    %v1592 = vpop.permute.xlu0 %1591
    %v1593 = vrot.slane %v1592, 2
    %v1594 = vsel %vm368, %v1592, %v1593
    %v1596 = vadd.f32 %v1566, %v1594
    %s1597 = sld [smem:[#allocation8 + $0x93]]
    %v1598 = vstv %s1597
    %v1599 = vmul.f32 %v1598, %v1408
    %1601 = vrot.lane.b32.xlu0 %v1599, 96
    %v1602 = vpop.permute.xlu0 %1601
    %v1603 = vrot.slane %v1602, 2
    %v1604 = vsel %vm368, %v1602, %v1603
    %v1606 = vadd.f32 %v1576, %v1604
    %s1607 = sld [smem:[#allocation8 + $0x94]]
    %v1608 = vstv %s1607
    %v1609 = vmul.f32 %v1608, %v1408
    %1611 = vrot.lane.b32.xlu0 %v1609, 96
    %v1612 = vpop.permute.xlu0 %1611
    %v1613 = vrot.slane %v1612, 2
    %v1614 = vsel %vm368, %v1612, %v1613
    %v1616 = vadd.f32 %v1586, %v1614
    %s1617 = sld [smem:[#allocation8 + $0x95]]
    %v1618 = vstv %s1617
    %v1619 = vmul.f32 %v1618, %v1408
    %1621 = vrot.lane.b32.xlu0 %v1619, 96
    %v1622 = vpop.permute.xlu0 %1621
    %v1623 = vrot.slane %v1622, 2
    %v1624 = vsel %vm368, %v1622, %v1623
    %v1626 = vadd.f32 %v1596, %v1624
    %s1627 = sld [smem:[#allocation8 + $0x96]]
    %v1628 = vstv %s1627
    %v1629 = vmul.f32 %v1628, %v1421
    %1631 = vrot.lane.b32.xlu0 %v1629, 96
    %v1632 = vpop.permute.xlu0 %1631
    %v1633 = vrot.slane %v1632, 2
    %v1634 = vsel %vm368, %v1632, %v1633
    %v1636 = vadd.f32 %v1606, %v1634
    %s1637 = sld [smem:[#allocation8 + $0x97]]
    %v1638 = vstv %s1637
    %v1639 = vmul.f32 %v1638, %v1421
    %1641 = vrot.lane.b32.xlu0 %v1639, 96
    %v1642 = vpop.permute.xlu0 %1641
    %v1643 = vrot.slane %v1642, 2
    %v1644 = vsel %vm368, %v1642, %v1643
    %v1646 = vadd.f32 %v1616, %v1644
    %s1647 = sld [smem:[#allocation8 + $0x98]]
    %v1648 = vstv %s1647
    %v1649 = vmul.f32 %v1648, %v1421
    %1651 = vrot.lane.b32.xlu0 %v1649, 96
    %v1652 = vpop.permute.xlu0 %1651
    %v1653 = vrot.slane %v1652, 2
    %v1654 = vsel %vm368, %v1652, %v1653
    %v1656 = vadd.f32 %v1626, %v1654
    %s1657 = sld [smem:[#allocation8 + $0x99]]
    %v1658 = vstv %s1657
    %v1659 = vmul.f32 %v1658, %v1434
    %1661 = vrot.lane.b32.xlu0 %v1659, 96
    %v1662 = vpop.permute.xlu0 %1661
    %v1663 = vrot.slane %v1662, 2
    %v1664 = vsel %vm368, %v1662, %v1663
    %v1666 = vadd.f32 %v1636, %v1664
    %s1667 = sld [smem:[#allocation8 + $0x9a]]
    %v1668 = vstv %s1667
    %v1669 = vmul.f32 %v1668, %v1434
    %1671 = vrot.lane.b32.xlu0 %v1669, 96
    %v1672 = vpop.permute.xlu0 %1671
    %v1673 = vrot.slane %v1672, 2
    %v1674 = vsel %vm368, %v1672, %v1673
    %v1676 = vadd.f32 %v1646, %v1674
    %s1677 = sld [smem:[#allocation8 + $0x9b]]
    %v1678 = vstv %s1677
    %v1679 = vmul.f32 %v1678, %v1434
    %1681 = vrot.lane.b32.xlu0 %v1679, 96
    %v1682 = vpop.permute.xlu0 %1681
    %v1683 = vrot.slane %v1682, 2
    %v1684 = vsel %vm368, %v1682, %v1683
    %v1686 = vadd.f32 %v1656, %v1684
    %s1687 = sld [smem:[#allocation8 + $0xcc]]
    %v1688 = vstv %s1687
    %v1689 = vmul.f32 %v1688, %v1395
    %1691 = vrot.lane.b32.xlu0 %v1689, 80
    %v1692 = vpop.permute.xlu0 %1691
    %v1693 = vrot.slane %v1692, 2
    %v1694 = vsel %vm489, %v1692, %v1693
    %v1696 = vadd.f32 %v1666, %v1694
    %s1697 = sld [smem:[#allocation8 + $0xcd]]
    %v1698 = vstv %s1697
    %v1699 = vmul.f32 %v1698, %v1395
    %1701 = vrot.lane.b32.xlu0 %v1699, 80
    %v1702 = vpop.permute.xlu0 %1701
    %v1703 = vrot.slane %v1702, 2
    %v1704 = vsel %vm489, %v1702, %v1703
    %v1706 = vadd.f32 %v1676, %v1704
    %s1707 = sld [smem:[#allocation8 + $0xce]]
    %v1708 = vstv %s1707
    %v1709 = vmul.f32 %v1708, %v1395
    %1711 = vrot.lane.b32.xlu0 %v1709, 80
    %v1712 = vpop.permute.xlu0 %1711
    %v1713 = vrot.slane %v1712, 2
    %v1714 = vsel %vm489, %v1712, %v1713
    %v1716 = vadd.f32 %v1686, %v1714
    %s1717 = sld [smem:[#allocation8 + $0xcf]]
    %v1718 = vstv %s1717
    %v1719 = vmul.f32 %v1718, %v1408
    %1721 = vrot.lane.b32.xlu0 %v1719, 80
    %v1722 = vpop.permute.xlu0 %1721
    %v1723 = vrot.slane %v1722, 2
    %v1724 = vsel %vm489, %v1722, %v1723
    %v1726 = vadd.f32 %v1696, %v1724
    %s1727 = sld [smem:[#allocation8 + $0xd0]]
    %v1728 = vstv %s1727
    %v1729 = vmul.f32 %v1728, %v1408
    %1731 = vrot.lane.b32.xlu0 %v1729, 80
    %v1732 = vpop.permute.xlu0 %1731
    %v1733 = vrot.slane %v1732, 2
    %v1734 = vsel %vm489, %v1732, %v1733
    %v1736 = vadd.f32 %v1706, %v1734
    %s1737 = sld [smem:[#allocation8 + $0xd1]]
    %v1738 = vstv %s1737
    %v1739 = vmul.f32 %v1738, %v1408
    %1741 = vrot.lane.b32.xlu0 %v1739, 80
    %v1742 = vpop.permute.xlu0 %1741
    %v1743 = vrot.slane %v1742, 2
    %v1744 = vsel %vm489, %v1742, %v1743
    %v1746 = vadd.f32 %v1716, %v1744
    %s1747 = sld [smem:[#allocation8 + $0xd2]]
    %v1748 = vstv %s1747
    %v1749 = vmul.f32 %v1748, %v1421
    %1751 = vrot.lane.b32.xlu0 %v1749, 80
    %v1752 = vpop.permute.xlu0 %1751
    %v1753 = vrot.slane %v1752, 2
    %v1754 = vsel %vm489, %v1752, %v1753
    %v1756 = vadd.f32 %v1726, %v1754
    %s1757 = sld [smem:[#allocation8 + $0xd3]]
    %v1758 = vstv %s1757
    %v1759 = vmul.f32 %v1758, %v1421
    %1761 = vrot.lane.b32.xlu0 %v1759, 80
    %v1762 = vpop.permute.xlu0 %1761
    %v1763 = vrot.slane %v1762, 2
    %v1764 = vsel %vm489, %v1762, %v1763
    %v1766 = vadd.f32 %v1736, %v1764
    %s1767 = sld [smem:[#allocation8 + $0xd4]]
    %v1768 = vstv %s1767
    %v1769 = vmul.f32 %v1768, %v1421
    %1771 = vrot.lane.b32.xlu0 %v1769, 80
    %v1772 = vpop.permute.xlu0 %1771
    %v1773 = vrot.slane %v1772, 2
    %v1774 = vsel %vm489, %v1772, %v1773
    %v1776 = vadd.f32 %v1746, %v1774
    %s1777 = sld [smem:[#allocation8 + $0xd5]]
    %v1778 = vstv %s1777
    %v1779 = vmul.f32 %v1778, %v1434
    %1781 = vrot.lane.b32.xlu0 %v1779, 80
    %v1782 = vpop.permute.xlu0 %1781
    %v1783 = vrot.slane %v1782, 2
    %v1784 = vsel %vm489, %v1782, %v1783
    %v1786 = vadd.f32 %v1756, %v1784
    %s1787 = sld [smem:[#allocation8 + $0xd6]]
    %v1788 = vstv %s1787
    %v1789 = vmul.f32 %v1788, %v1434
    %1791 = vrot.lane.b32.xlu0 %v1789, 80
    %v1792 = vpop.permute.xlu0 %1791
    %v1793 = vrot.slane %v1792, 2
    %v1794 = vsel %vm489, %v1792, %v1793
    %v1796 = vadd.f32 %v1766, %v1794
    %s1797 = sld [smem:[#allocation8 + $0xd7]]
    %v1798 = vstv %s1797
    %v1799 = vmul.f32 %v1798, %v1434
    %1801 = vrot.lane.b32.xlu0 %v1799, 80
    %v1802 = vpop.permute.xlu0 %1801
    %v1803 = vrot.slane %v1802, 2
    %v1804 = vsel %vm489, %v1802, %v1803
    %v1806 = vadd.f32 %v1776, %v1804
    %s1807 = sld [smem:[#allocation8 + $0x108]]
    %v1808 = vstv %s1807
    %v1809 = vmul.f32 %v1808, %v1395
    %1811 = vrot.lane.b32.xlu0 %v1809, 64
    %v1812 = vpop.permute.xlu0 %1811
    %v1813 = vrot.slane %v1812, 2
    %v1814 = vsel %vm610, %v1812, %v1813
    %v1816 = vadd.f32 %v1786, %v1814
    %s1817 = sld [smem:[#allocation8 + $0x109]]
    %v1818 = vstv %s1817
    %v1819 = vmul.f32 %v1818, %v1395
    %1821 = vrot.lane.b32.xlu0 %v1819, 64
    %v1822 = vpop.permute.xlu0 %1821
    %v1823 = vrot.slane %v1822, 2
    %v1824 = vsel %vm610, %v1822, %v1823
    %v1826 = vadd.f32 %v1796, %v1824
    %s1827 = sld [smem:[#allocation8 + $0x10a]]
    %v1828 = vstv %s1827
    %v1829 = vmul.f32 %v1828, %v1395
    %1831 = vrot.lane.b32.xlu0 %v1829, 64
    %v1832 = vpop.permute.xlu0 %1831
    %v1833 = vrot.slane %v1832, 2
    %v1834 = vsel %vm610, %v1832, %v1833
    %v1836 = vadd.f32 %v1806, %v1834
    %s1837 = sld [smem:[#allocation8 + $0x10b]]
    %v1838 = vstv %s1837
    %v1839 = vmul.f32 %v1838, %v1408
    %1841 = vrot.lane.b32.xlu0 %v1839, 64
    %v1842 = vpop.permute.xlu0 %1841
    %v1843 = vrot.slane %v1842, 2
    %v1844 = vsel %vm610, %v1842, %v1843
    %v1846 = vadd.f32 %v1816, %v1844
    %s1847 = sld [smem:[#allocation8 + $0x10c]]
    %v1848 = vstv %s1847
    %v1849 = vmul.f32 %v1848, %v1408
    %1851 = vrot.lane.b32.xlu0 %v1849, 64
    %v1852 = vpop.permute.xlu0 %1851
    %v1853 = vrot.slane %v1852, 2
    %v1854 = vsel %vm610, %v1852, %v1853
    %v1856 = vadd.f32 %v1826, %v1854
    %s1857 = sld [smem:[#allocation8 + $0x10d]]
    %v1858 = vstv %s1857
    %v1859 = vmul.f32 %v1858, %v1408
    %1861 = vrot.lane.b32.xlu0 %v1859, 64
    %v1862 = vpop.permute.xlu0 %1861
    %v1863 = vrot.slane %v1862, 2
    %v1864 = vsel %vm610, %v1862, %v1863
    %v1866 = vadd.f32 %v1836, %v1864
    %s1867 = sld [smem:[#allocation8 + $0x10e]]
    %v1868 = vstv %s1867
    %v1869 = vmul.f32 %v1868, %v1421
    %1871 = vrot.lane.b32.xlu0 %v1869, 64
    %v1872 = vpop.permute.xlu0 %1871
    %v1873 = vrot.slane %v1872, 2
    %v1874 = vsel %vm610, %v1872, %v1873
    %v1876 = vadd.f32 %v1846, %v1874
    %s1877 = sld [smem:[#allocation8 + $0x10f]]
    %v1878 = vstv %s1877
    %v1879 = vmul.f32 %v1878, %v1421
    %1881 = vrot.lane.b32.xlu0 %v1879, 64
    %v1882 = vpop.permute.xlu0 %1881
    %v1883 = vrot.slane %v1882, 2
    %v1884 = vsel %vm610, %v1882, %v1883
    %v1886 = vadd.f32 %v1856, %v1884
    %s1887 = sld [smem:[#allocation8 + $0x110]]
    %v1888 = vstv %s1887
    %v1889 = vmul.f32 %v1888, %v1421
    %1891 = vrot.lane.b32.xlu0 %v1889, 64
    %v1892 = vpop.permute.xlu0 %1891
    %v1893 = vrot.slane %v1892, 2
    %v1894 = vsel %vm610, %v1892, %v1893
    %v1896 = vadd.f32 %v1866, %v1894
    %s1897 = sld [smem:[#allocation8 + $0x111]]
    %v1898 = vstv %s1897
    %v1899 = vmul.f32 %v1898, %v1434
    %1901 = vrot.lane.b32.xlu0 %v1899, 64
    %v1902 = vpop.permute.xlu0 %1901
    %v1903 = vrot.slane %v1902, 2
    %v1904 = vsel %vm610, %v1902, %v1903
    %v1906 = vadd.f32 %v1876, %v1904
    %s1907 = sld [smem:[#allocation8 + $0x112]]
    %v1908 = vstv %s1907
    %v1909 = vmul.f32 %v1908, %v1434
    %1911 = vrot.lane.b32.xlu0 %v1909, 64
    %v1912 = vpop.permute.xlu0 %1911
    %v1913 = vrot.slane %v1912, 2
    %v1914 = vsel %vm610, %v1912, %v1913
    %v1916 = vadd.f32 %v1886, %v1914
    %s1917 = sld [smem:[#allocation8 + $0x113]]
    %v1918 = vstv %s1917
    %v1919 = vmul.f32 %v1918, %v1434
    %1921 = vrot.lane.b32.xlu0 %v1919, 64
    %v1922 = vpop.permute.xlu0 %1921
    %v1923 = vrot.slane %v1922, 2
    %v1924 = vsel %vm610, %v1922, %v1923
    %v1926 = vadd.f32 %v1896, %v1924
    %v1928 = vcombine.high %v1906, %v1906
    %v1930 = vunpack.c.l.s4 1983009808
    %v1931 = vunpack.c.0.s8 %v1930
    %v1932 = vlaneseq
    %v1933 = vshrl.u32 %v1932, 7
    %v1934 = vsub.s32 %v1931, %v1933
    %v1935 = vrot.slane %v1906, %v1934
    %v1937 = vunpack.c.l.s4 1983009808
    %v1938 = vunpack.c.0.s8 %v1937
    %v1939 = vlaneseq
    %v1940 = vshrl.u32 %v1939, 7
    %v1941 = vsub.s32 %v1938, %v1940
    %v1942 = vrot.slane %v1928, %v1941
    %v1943 = vcombine.high %v1935, %v1935
    %1944 = vrot.lane.b32.xlu0 %v1935, 126
    %v1945 = vpop.permute.xlu0 %1944
    %1946 = vrot.lane.b32.xlu0 %v1943, 126
    %v1947 = vpop.permute.xlu0 %1946
    %1948 = vrot.lane.b32.xlu0 %v1942, 126
    %v1949 = vpop.permute.xlu0 %1948
    %vm1950 = vcmask 1031168
    %v1951 = vsel %vm1950, %v1945, %v1947
    %v1952 = vsel %vm1950, %v1947, %v1949
    %v1955 = vadd.f32 %v1331, %v1951
    %v1956 = vadd.f32 %v1332, %v1952
    %v1958 = vcombine.high %v1916, %v1916
    %v1960 = vunpack.c.l.s4 1983009808
    %v1961 = vunpack.c.0.s8 %v1960
    %v1962 = vlaneseq
    %v1963 = vshrl.u32 %v1962, 7
    %v1964 = vsub.s32 %v1961, %v1963
    %v1965 = vrot.slane %v1916, %v1964
    %v1967 = vunpack.c.l.s4 1983009808
    %v1968 = vunpack.c.0.s8 %v1967
    %v1969 = vlaneseq
    %v1970 = vshrl.u32 %v1969, 7
    %v1971 = vsub.s32 %v1968, %v1970
    %v1972 = vrot.slane %v1958, %v1971
    %v1973 = vcombine.high %v1965, %v1965
    %1974 = vrot.lane.b32.xlu0 %v1965, 126
    %v1975 = vpop.permute.xlu0 %1974
    %1976 = vrot.lane.b32.xlu0 %v1973, 126
    %v1977 = vpop.permute.xlu0 %1976
    %1978 = vrot.lane.b32.xlu0 %v1972, 126
    %v1979 = vpop.permute.xlu0 %1978
    %v1980 = vsel %vm1950, %v1975, %v1977
    %v1981 = vsel %vm1950, %v1977, %v1979
    %v1984 = vadd.f32 %v1362, %v1980
    %v1985 = vadd.f32 %v1363, %v1981
    %v1987 = vcombine.high %v1926, %v1926
    %v1989 = vunpack.c.l.s4 1983009808
    %v1990 = vunpack.c.0.s8 %v1989
    %v1991 = vlaneseq
    %v1992 = vshrl.u32 %v1991, 7
    %v1993 = vsub.s32 %v1990, %v1992
    %v1994 = vrot.slane %v1926, %v1993
    %v1996 = vunpack.c.l.s4 1983009808
    %v1997 = vunpack.c.0.s8 %v1996
    %v1998 = vlaneseq
    %v1999 = vshrl.u32 %v1998, 7
    %v2000 = vsub.s32 %v1997, %v1999
    %v2001 = vrot.slane %v1987, %v2000
    %v2002 = vcombine.high %v1994, %v1994
    %2003 = vrot.lane.b32.xlu0 %v1994, 126
    %v2004 = vpop.permute.xlu0 %2003
    %2005 = vrot.lane.b32.xlu0 %v2002, 126
    %v2006 = vpop.permute.xlu0 %2005
    %2007 = vrot.lane.b32.xlu0 %v2001, 126
    %v2008 = vpop.permute.xlu0 %2007
    %v2009 = vsel %vm1950, %v2004, %v2006
    %v2010 = vsel %vm1950, %v2006, %v2008
    %v2013 = vadd.f32 %v1393, %v2009
    %v2014 = vadd.f32 %v1394, %v2010
    %v2015 = vld [vmem:[#allocation2] sm:$0x3f]
    %s2016 = sld [smem:[#allocation8 + $0x24]]
    %v2017 = vstv %s2016
    %v2018 = vmul.f32 %v2017, %v2015
    %v2019 = vadd.f32 %v2018, 0.0
    %s2020 = sld [smem:[#allocation8 + $0x25]]
    %v2021 = vstv %s2020
    %v2022 = vmul.f32 %v2021, %v2015
    %v2023 = vadd.f32 %v2022, 0.0
    %s2024 = sld [smem:[#allocation8 + $0x26]]
    %v2025 = vstv %s2024
    %v2026 = vmul.f32 %v2025, %v2015
    %v2027 = vadd.f32 %v2026, 0.0
    %v2028 = vld [vmem:[%s194] sm:$0x3f]
    %s2029 = sld [smem:[#allocation8 + $0x27]]
    %v2030 = vstv %s2029
    %v2031 = vmul.f32 %v2030, %v2028
    %v2032 = vadd.f32 %v2019, %v2031
    %s2033 = sld [smem:[#allocation8 + $0x28]]
    %v2034 = vstv %s2033
    %v2035 = vmul.f32 %v2034, %v2028
    %v2036 = vadd.f32 %v2023, %v2035
    %s2037 = sld [smem:[#allocation8 + $0x29]]
    %v2038 = vstv %s2037
    %v2039 = vmul.f32 %v2038, %v2028
    %v2040 = vadd.f32 %v2027, %v2039
    %v2041 = vld [vmem:[%s208] sm:$0x3f]
    %s2042 = sld [smem:[#allocation8 + $0x2a]]
    %v2043 = vstv %s2042
    %v2044 = vmul.f32 %v2043, %v2041
    %v2045 = vadd.f32 %v2032, %v2044
    %s2046 = sld [smem:[#allocation8 + $0x2b]]
    %v2047 = vstv %s2046
    %v2048 = vmul.f32 %v2047, %v2041
    %v2049 = vadd.f32 %v2036, %v2048
    %s2050 = sld [smem:[#allocation8 + $0x2c]]
    %v2051 = vstv %s2050
    %v2052 = vmul.f32 %v2051, %v2041
    %v2053 = vadd.f32 %v2040, %v2052
    %v2054 = vld [vmem:[%s222] sm:$0x3f]
    %s2055 = sld [smem:[#allocation8 + $0x2d]]
    %v2056 = vstv %s2055
    %v2057 = vmul.f32 %v2056, %v2054
    %v2058 = vadd.f32 %v2045, %v2057
    %s2059 = sld [smem:[#allocation8 + $0x2e]]
    %v2060 = vstv %s2059
    %v2061 = vmul.f32 %v2060, %v2054
    %v2062 = vadd.f32 %v2049, %v2061
    %s2063 = sld [smem:[#allocation8 + $0x2f]]
    %v2064 = vstv %s2063
    %v2065 = vmul.f32 %v2064, %v2054
    %v2066 = vadd.f32 %v2053, %v2065
    %s2067 = sld [smem:[#allocation8 + $0x60]]
    %v2068 = vstv %s2067
    %v2069 = vmul.f32 %v2068, %v2015
    %2071 = vrot.lane.b32.xlu0 %v2069, 112
    %v2072 = vpop.permute.xlu0 %2071
    %v2073 = vrot.slane %v2072, 2
    %v2074 = vsel %vm244, %v2072, %v2073
    %v2076 = vadd.f32 %v2058, %v2074
    %s2077 = sld [smem:[#allocation8 + $0x61]]
    %v2078 = vstv %s2077
    %v2079 = vmul.f32 %v2078, %v2015
    %2081 = vrot.lane.b32.xlu0 %v2079, 112
    %v2082 = vpop.permute.xlu0 %2081
    %v2083 = vrot.slane %v2082, 2
    %v2084 = vsel %vm244, %v2082, %v2083
    %v2086 = vadd.f32 %v2062, %v2084
    %s2087 = sld [smem:[#allocation8 + $0x62]]
    %v2088 = vstv %s2087
    %v2089 = vmul.f32 %v2088, %v2015
    %2091 = vrot.lane.b32.xlu0 %v2089, 112
    %v2092 = vpop.permute.xlu0 %2091
    %v2093 = vrot.slane %v2092, 2
    %v2094 = vsel %vm244, %v2092, %v2093
    %v2096 = vadd.f32 %v2066, %v2094
    %s2097 = sld [smem:[#allocation8 + $0x63]]
    %v2098 = vstv %s2097
    %v2099 = vmul.f32 %v2098, %v2028
    %2101 = vrot.lane.b32.xlu0 %v2099, 112
    %v2102 = vpop.permute.xlu0 %2101
    %v2103 = vrot.slane %v2102, 2
    %v2104 = vsel %vm244, %v2102, %v2103
    %v2106 = vadd.f32 %v2076, %v2104
    %s2107 = sld [smem:[#allocation8 + $0x64]]
    %v2108 = vstv %s2107
    %v2109 = vmul.f32 %v2108, %v2028
    %2111 = vrot.lane.b32.xlu0 %v2109, 112
    %v2112 = vpop.permute.xlu0 %2111
    %v2113 = vrot.slane %v2112, 2
    %v2114 = vsel %vm244, %v2112, %v2113
    %v2116 = vadd.f32 %v2086, %v2114
    %s2117 = sld [smem:[#allocation8 + $0x65]]
    %v2118 = vstv %s2117
    %v2119 = vmul.f32 %v2118, %v2028
    %2121 = vrot.lane.b32.xlu0 %v2119, 112
    %v2122 = vpop.permute.xlu0 %2121
    %v2123 = vrot.slane %v2122, 2
    %v2124 = vsel %vm244, %v2122, %v2123
    %v2126 = vadd.f32 %v2096, %v2124
    %s2127 = sld [smem:[#allocation8 + $0x66]]
    %v2128 = vstv %s2127
    %v2129 = vmul.f32 %v2128, %v2041
    %2131 = vrot.lane.b32.xlu0 %v2129, 112
    %v2132 = vpop.permute.xlu0 %2131
    %v2133 = vrot.slane %v2132, 2
    %v2134 = vsel %vm244, %v2132, %v2133
    %v2136 = vadd.f32 %v2106, %v2134
    %s2137 = sld [smem:[#allocation8 + $0x67]]
    %v2138 = vstv %s2137
    %v2139 = vmul.f32 %v2138, %v2041
    %2141 = vrot.lane.b32.xlu0 %v2139, 112
    %v2142 = vpop.permute.xlu0 %2141
    %v2143 = vrot.slane %v2142, 2
    %v2144 = vsel %vm244, %v2142, %v2143
    %v2146 = vadd.f32 %v2116, %v2144
    %s2147 = sld [smem:[#allocation8 + $0x68]]
    %v2148 = vstv %s2147
    %v2149 = vmul.f32 %v2148, %v2041
    %2151 = vrot.lane.b32.xlu0 %v2149, 112
    %v2152 = vpop.permute.xlu0 %2151
    %v2153 = vrot.slane %v2152, 2
    %v2154 = vsel %vm244, %v2152, %v2153
    %v2156 = vadd.f32 %v2126, %v2154
    %s2157 = sld [smem:[#allocation8 + $0x69]]
    %v2158 = vstv %s2157
    %v2159 = vmul.f32 %v2158, %v2054
    %2161 = vrot.lane.b32.xlu0 %v2159, 112
    %v2162 = vpop.permute.xlu0 %2161
    %v2163 = vrot.slane %v2162, 2
    %v2164 = vsel %vm244, %v2162, %v2163
    %v2166 = vadd.f32 %v2136, %v2164
    %s2167 = sld [smem:[#allocation8 + $0x6a]]
    %v2168 = vstv %s2167
    %v2169 = vmul.f32 %v2168, %v2054
    %2171 = vrot.lane.b32.xlu0 %v2169, 112
    %v2172 = vpop.permute.xlu0 %2171
    %v2173 = vrot.slane %v2172, 2
    %v2174 = vsel %vm244, %v2172, %v2173
    %v2176 = vadd.f32 %v2146, %v2174
    %s2177 = sld [smem:[#allocation8 + $0x6b]]
    %v2178 = vstv %s2177
    %v2179 = vmul.f32 %v2178, %v2054
    %2181 = vrot.lane.b32.xlu0 %v2179, 112
    %v2182 = vpop.permute.xlu0 %2181
    %v2183 = vrot.slane %v2182, 2
    %v2184 = vsel %vm244, %v2182, %v2183
    %v2186 = vadd.f32 %v2156, %v2184
    %s2187 = sld [smem:[#allocation8 + $0x9c]]
    %v2188 = vstv %s2187
    %v2189 = vmul.f32 %v2188, %v2015
    %2191 = vrot.lane.b32.xlu0 %v2189, 96
    %v2192 = vpop.permute.xlu0 %2191
    %v2193 = vrot.slane %v2192, 2
    %v2194 = vsel %vm368, %v2192, %v2193
    %v2196 = vadd.f32 %v2166, %v2194
    %s2197 = sld [smem:[#allocation8 + $0x9d]]
    %v2198 = vstv %s2197
    %v2199 = vmul.f32 %v2198, %v2015
    %2201 = vrot.lane.b32.xlu0 %v2199, 96
    %v2202 = vpop.permute.xlu0 %2201
    %v2203 = vrot.slane %v2202, 2
    %v2204 = vsel %vm368, %v2202, %v2203
    %v2206 = vadd.f32 %v2176, %v2204
    %s2207 = sld [smem:[#allocation8 + $0x9e]]
    %v2208 = vstv %s2207
    %v2209 = vmul.f32 %v2208, %v2015
    %2211 = vrot.lane.b32.xlu0 %v2209, 96
    %v2212 = vpop.permute.xlu0 %2211
    %v2213 = vrot.slane %v2212, 2
    %v2214 = vsel %vm368, %v2212, %v2213
    %v2216 = vadd.f32 %v2186, %v2214
    %s2217 = sld [smem:[#allocation8 + $0x9f]]
    %v2218 = vstv %s2217
    %v2219 = vmul.f32 %v2218, %v2028
    %2221 = vrot.lane.b32.xlu0 %v2219, 96
    %v2222 = vpop.permute.xlu0 %2221
    %v2223 = vrot.slane %v2222, 2
    %v2224 = vsel %vm368, %v2222, %v2223
    %v2226 = vadd.f32 %v2196, %v2224
    %s2227 = sld [smem:[#allocation8 + $0xa0]]
    %v2228 = vstv %s2227
    %v2229 = vmul.f32 %v2228, %v2028
    %2231 = vrot.lane.b32.xlu0 %v2229, 96
    %v2232 = vpop.permute.xlu0 %2231
    %v2233 = vrot.slane %v2232, 2
    %v2234 = vsel %vm368, %v2232, %v2233
    %v2236 = vadd.f32 %v2206, %v2234
    %s2237 = sld [smem:[#allocation8 + $0xa1]]
    %v2238 = vstv %s2237
    %v2239 = vmul.f32 %v2238, %v2028
    %2241 = vrot.lane.b32.xlu0 %v2239, 96
    %v2242 = vpop.permute.xlu0 %2241
    %v2243 = vrot.slane %v2242, 2
    %v2244 = vsel %vm368, %v2242, %v2243
    %v2246 = vadd.f32 %v2216, %v2244
    %s2247 = sld [smem:[#allocation8 + $0xa2]]
    %v2248 = vstv %s2247
    %v2249 = vmul.f32 %v2248, %v2041
    %2251 = vrot.lane.b32.xlu0 %v2249, 96
    %v2252 = vpop.permute.xlu0 %2251
    %v2253 = vrot.slane %v2252, 2
    %v2254 = vsel %vm368, %v2252, %v2253
    %v2256 = vadd.f32 %v2226, %v2254
    %s2257 = sld [smem:[#allocation8 + $0xa3]]
    %v2258 = vstv %s2257
    %v2259 = vmul.f32 %v2258, %v2041
    %2261 = vrot.lane.b32.xlu0 %v2259, 96
    %v2262 = vpop.permute.xlu0 %2261
    %v2263 = vrot.slane %v2262, 2
    %v2264 = vsel %vm368, %v2262, %v2263
    %v2266 = vadd.f32 %v2236, %v2264
    %s2267 = sld [smem:[#allocation8 + $0xa4]]
    %v2268 = vstv %s2267
    %v2269 = vmul.f32 %v2268, %v2041
    %2271 = vrot.lane.b32.xlu0 %v2269, 96
    %v2272 = vpop.permute.xlu0 %2271
    %v2273 = vrot.slane %v2272, 2
    %v2274 = vsel %vm368, %v2272, %v2273
    %v2276 = vadd.f32 %v2246, %v2274
    %s2277 = sld [smem:[#allocation8 + $0xa5]]
    %v2278 = vstv %s2277
    %v2279 = vmul.f32 %v2278, %v2054
    %2281 = vrot.lane.b32.xlu0 %v2279, 96
    %v2282 = vpop.permute.xlu0 %2281
    %v2283 = vrot.slane %v2282, 2
    %v2284 = vsel %vm368, %v2282, %v2283
    %v2286 = vadd.f32 %v2256, %v2284
    %s2287 = sld [smem:[#allocation8 + $0xa6]]
    %v2288 = vstv %s2287
    %v2289 = vmul.f32 %v2288, %v2054
    %2291 = vrot.lane.b32.xlu0 %v2289, 96
    %v2292 = vpop.permute.xlu0 %2291
    %v2293 = vrot.slane %v2292, 2
    %v2294 = vsel %vm368, %v2292, %v2293
    %v2296 = vadd.f32 %v2266, %v2294
    %s2297 = sld [smem:[#allocation8 + $0xa7]]
    %v2298 = vstv %s2297
    %v2299 = vmul.f32 %v2298, %v2054
    %2301 = vrot.lane.b32.xlu0 %v2299, 96
    %v2302 = vpop.permute.xlu0 %2301
    %v2303 = vrot.slane %v2302, 2
    %v2304 = vsel %vm368, %v2302, %v2303
    %v2306 = vadd.f32 %v2276, %v2304
    %s2307 = sld [smem:[#allocation8 + $0xd8]]
    %v2308 = vstv %s2307
    %v2309 = vmul.f32 %v2308, %v2015
    %2311 = vrot.lane.b32.xlu0 %v2309, 80
    %v2312 = vpop.permute.xlu0 %2311
    %v2313 = vrot.slane %v2312, 2
    %v2314 = vsel %vm489, %v2312, %v2313
    %v2316 = vadd.f32 %v2286, %v2314
    %s2317 = sld [smem:[#allocation8 + $0xd9]]
    %v2318 = vstv %s2317
    %v2319 = vmul.f32 %v2318, %v2015
    %2321 = vrot.lane.b32.xlu0 %v2319, 80
    %v2322 = vpop.permute.xlu0 %2321
    %v2323 = vrot.slane %v2322, 2
    %v2324 = vsel %vm489, %v2322, %v2323
    %v2326 = vadd.f32 %v2296, %v2324
    %s2327 = sld [smem:[#allocation8 + $0xda]]
    %v2328 = vstv %s2327
    %v2329 = vmul.f32 %v2328, %v2015
    %2331 = vrot.lane.b32.xlu0 %v2329, 80
    %v2332 = vpop.permute.xlu0 %2331
    %v2333 = vrot.slane %v2332, 2
    %v2334 = vsel %vm489, %v2332, %v2333
    %v2336 = vadd.f32 %v2306, %v2334
    %s2337 = sld [smem:[#allocation8 + $0xdb]]
    %v2338 = vstv %s2337
    %v2339 = vmul.f32 %v2338, %v2028
    %2341 = vrot.lane.b32.xlu0 %v2339, 80
    %v2342 = vpop.permute.xlu0 %2341
    %v2343 = vrot.slane %v2342, 2
    %v2344 = vsel %vm489, %v2342, %v2343
    %v2346 = vadd.f32 %v2316, %v2344
    %s2347 = sld [smem:[#allocation8 + $0xdc]]
    %v2348 = vstv %s2347
    %v2349 = vmul.f32 %v2348, %v2028
    %2351 = vrot.lane.b32.xlu0 %v2349, 80
    %v2352 = vpop.permute.xlu0 %2351
    %v2353 = vrot.slane %v2352, 2
    %v2354 = vsel %vm489, %v2352, %v2353
    %v2356 = vadd.f32 %v2326, %v2354
    %s2357 = sld [smem:[#allocation8 + $0xdd]]
    %v2358 = vstv %s2357
    %v2359 = vmul.f32 %v2358, %v2028
    %2361 = vrot.lane.b32.xlu0 %v2359, 80
    %v2362 = vpop.permute.xlu0 %2361
    %v2363 = vrot.slane %v2362, 2
    %v2364 = vsel %vm489, %v2362, %v2363
    %v2366 = vadd.f32 %v2336, %v2364
    %s2367 = sld [smem:[#allocation8 + $0xde]]
    %v2368 = vstv %s2367
    %v2369 = vmul.f32 %v2368, %v2041
    %2371 = vrot.lane.b32.xlu0 %v2369, 80
    %v2372 = vpop.permute.xlu0 %2371
    %v2373 = vrot.slane %v2372, 2
    %v2374 = vsel %vm489, %v2372, %v2373
    %v2376 = vadd.f32 %v2346, %v2374
    %s2377 = sld [smem:[#allocation8 + $0xdf]]
    %v2378 = vstv %s2377
    %v2379 = vmul.f32 %v2378, %v2041
    %2381 = vrot.lane.b32.xlu0 %v2379, 80
    %v2382 = vpop.permute.xlu0 %2381
    %v2383 = vrot.slane %v2382, 2
    %v2384 = vsel %vm489, %v2382, %v2383
    %v2386 = vadd.f32 %v2356, %v2384
    %s2387 = sld [smem:[#allocation8 + $0xe0]]
    %v2388 = vstv %s2387
    %v2389 = vmul.f32 %v2388, %v2041
    %2391 = vrot.lane.b32.xlu0 %v2389, 80
    %v2392 = vpop.permute.xlu0 %2391
    %v2393 = vrot.slane %v2392, 2
    %v2394 = vsel %vm489, %v2392, %v2393
    %v2396 = vadd.f32 %v2366, %v2394
    %s2397 = sld [smem:[#allocation8 + $0xe1]]
    %v2398 = vstv %s2397
    %v2399 = vmul.f32 %v2398, %v2054
    %2401 = vrot.lane.b32.xlu0 %v2399, 80
    %v2402 = vpop.permute.xlu0 %2401
    %v2403 = vrot.slane %v2402, 2
    %v2404 = vsel %vm489, %v2402, %v2403
    %v2406 = vadd.f32 %v2376, %v2404
    %s2407 = sld [smem:[#allocation8 + $0xe2]]
    %v2408 = vstv %s2407
    %v2409 = vmul.f32 %v2408, %v2054
    %2411 = vrot.lane.b32.xlu0 %v2409, 80
    %v2412 = vpop.permute.xlu0 %2411
    %v2413 = vrot.slane %v2412, 2
    %v2414 = vsel %vm489, %v2412, %v2413
    %v2416 = vadd.f32 %v2386, %v2414
    %s2417 = sld [smem:[#allocation8 + $0xe3]]
    %v2418 = vstv %s2417
    %v2419 = vmul.f32 %v2418, %v2054
    %2421 = vrot.lane.b32.xlu0 %v2419, 80
    %v2422 = vpop.permute.xlu0 %2421
    %v2423 = vrot.slane %v2422, 2
    %v2424 = vsel %vm489, %v2422, %v2423
    %v2426 = vadd.f32 %v2396, %v2424
    %s2427 = sld [smem:[#allocation8 + $0x114]]
    %v2428 = vstv %s2427
    %v2429 = vmul.f32 %v2428, %v2015
    %2431 = vrot.lane.b32.xlu0 %v2429, 64
    %v2432 = vpop.permute.xlu0 %2431
    %v2433 = vrot.slane %v2432, 2
    %v2434 = vsel %vm610, %v2432, %v2433
    %v2436 = vadd.f32 %v2406, %v2434
    %s2437 = sld [smem:[#allocation8 + $0x115]]
    %v2438 = vstv %s2437
    %v2439 = vmul.f32 %v2438, %v2015
    %2441 = vrot.lane.b32.xlu0 %v2439, 64
    %v2442 = vpop.permute.xlu0 %2441
    %v2443 = vrot.slane %v2442, 2
    %v2444 = vsel %vm610, %v2442, %v2443
    %v2446 = vadd.f32 %v2416, %v2444
    %s2447 = sld [smem:[#allocation8 + $0x116]]
    %v2448 = vstv %s2447
    %v2449 = vmul.f32 %v2448, %v2015
    %2451 = vrot.lane.b32.xlu0 %v2449, 64
    %v2452 = vpop.permute.xlu0 %2451
    %v2453 = vrot.slane %v2452, 2
    %v2454 = vsel %vm610, %v2452, %v2453
    %v2456 = vadd.f32 %v2426, %v2454
    %s2457 = sld [smem:[#allocation8 + $0x117]]
    %v2458 = vstv %s2457
    %v2459 = vmul.f32 %v2458, %v2028
    %2461 = vrot.lane.b32.xlu0 %v2459, 64
    %v2462 = vpop.permute.xlu0 %2461
    %v2463 = vrot.slane %v2462, 2
    %v2464 = vsel %vm610, %v2462, %v2463
    %v2466 = vadd.f32 %v2436, %v2464
    %s2467 = sld [smem:[#allocation8 + $0x118]]
    %v2468 = vstv %s2467
    %v2469 = vmul.f32 %v2468, %v2028
    %2471 = vrot.lane.b32.xlu0 %v2469, 64
    %v2472 = vpop.permute.xlu0 %2471
    %v2473 = vrot.slane %v2472, 2
    %v2474 = vsel %vm610, %v2472, %v2473
    %v2476 = vadd.f32 %v2446, %v2474
    %s2477 = sld [smem:[#allocation8 + $0x119]]
    %v2478 = vstv %s2477
    %v2479 = vmul.f32 %v2478, %v2028
    %2481 = vrot.lane.b32.xlu0 %v2479, 64
    %v2482 = vpop.permute.xlu0 %2481
    %v2483 = vrot.slane %v2482, 2
    %v2484 = vsel %vm610, %v2482, %v2483
    %v2486 = vadd.f32 %v2456, %v2484
    %s2487 = sld [smem:[#allocation8 + $0x11a]]
    %v2488 = vstv %s2487
    %v2489 = vmul.f32 %v2488, %v2041
    %2491 = vrot.lane.b32.xlu0 %v2489, 64
    %v2492 = vpop.permute.xlu0 %2491
    %v2493 = vrot.slane %v2492, 2
    %v2494 = vsel %vm610, %v2492, %v2493
    %v2496 = vadd.f32 %v2466, %v2494
    %s2497 = sld [smem:[#allocation8 + $0x11b]]
    %v2498 = vstv %s2497
    %v2499 = vmul.f32 %v2498, %v2041
    %2501 = vrot.lane.b32.xlu0 %v2499, 64
    %v2502 = vpop.permute.xlu0 %2501
    %v2503 = vrot.slane %v2502, 2
    %v2504 = vsel %vm610, %v2502, %v2503
    %v2506 = vadd.f32 %v2476, %v2504
    %s2507 = sld [smem:[#allocation8 + $0x11c]]
    %v2508 = vstv %s2507
    %v2509 = vmul.f32 %v2508, %v2041
    %2511 = vrot.lane.b32.xlu0 %v2509, 64
    %v2512 = vpop.permute.xlu0 %2511
    %v2513 = vrot.slane %v2512, 2
    %v2514 = vsel %vm610, %v2512, %v2513
    %v2516 = vadd.f32 %v2486, %v2514
    %s2517 = sld [smem:[#allocation8 + $0x11d]]
    %v2518 = vstv %s2517
    %v2519 = vmul.f32 %v2518, %v2054
    %2521 = vrot.lane.b32.xlu0 %v2519, 64
    %v2522 = vpop.permute.xlu0 %2521
    %v2523 = vrot.slane %v2522, 2
    %v2524 = vsel %vm610, %v2522, %v2523
    %v2526 = vadd.f32 %v2496, %v2524
    %s2527 = sld [smem:[#allocation8 + $0x11e]]
    %v2528 = vstv %s2527
    %v2529 = vmul.f32 %v2528, %v2054
    %2531 = vrot.lane.b32.xlu0 %v2529, 64
    %v2532 = vpop.permute.xlu0 %2531
    %v2533 = vrot.slane %v2532, 2
    %v2534 = vsel %vm610, %v2532, %v2533
    %v2536 = vadd.f32 %v2506, %v2534
    %s2537 = sld [smem:[#allocation8 + $0x11f]]
    %v2538 = vstv %s2537
    %v2539 = vmul.f32 %v2538, %v2054
    %2541 = vrot.lane.b32.xlu0 %v2539, 64
    %v2542 = vpop.permute.xlu0 %2541
    %v2543 = vrot.slane %v2542, 2
    %v2544 = vsel %vm610, %v2542, %v2543
    %v2546 = vadd.f32 %v2516, %v2544
    %v2548 = vcombine.high %v2526, %v2526
    %v2550 = vunpack.c.l.s4 1983009808
    %v2551 = vunpack.c.0.s8 %v2550
    %v2552 = vlaneseq
    %v2553 = vshrl.u32 %v2552, 7
    %v2554 = vsub.s32 %v2551, %v2553
    %v2555 = vrot.slane %v2526, %v2554
    %v2557 = vunpack.c.l.s4 1983009808
    %v2558 = vunpack.c.0.s8 %v2557
    %v2559 = vlaneseq
    %v2560 = vshrl.u32 %v2559, 7
    %v2561 = vsub.s32 %v2558, %v2560
    %v2562 = vrot.slane %v2548, %v2561
    %v2563 = vcombine.high %v2555, %v2555
    %2564 = vrot.lane.b32.xlu0 %v2555, 125
    %v2565 = vpop.permute.xlu0 %2564
    %2566 = vrot.lane.b32.xlu0 %v2563, 125
    %v2567 = vpop.permute.xlu0 %2566
    %2568 = vrot.lane.b32.xlu0 %v2562, 125
    %v2569 = vpop.permute.xlu0 %2568
    %vm2570 = vcmask 1022976
    %v2571 = vsel %vm2570, %v2565, %v2567
    %v2572 = vsel %vm2570, %v2567, %v2569
    %v2575 = vmul.f32 %v161, %v2571
    %v2576 = vmul.f32 %v162, %v2572
    %v2577 = vadd.f32 %v1955, %v2575
    %v2578 = vadd.f32 %v1956, %v2576
    %v2580 = vcombine.high %v2536, %v2536
    %v2582 = vunpack.c.l.s4 1983009808
    %v2583 = vunpack.c.0.s8 %v2582
    %v2584 = vlaneseq
    %v2585 = vshrl.u32 %v2584, 7
    %v2586 = vsub.s32 %v2583, %v2585
    %v2587 = vrot.slane %v2536, %v2586
    %v2589 = vunpack.c.l.s4 1983009808
    %v2590 = vunpack.c.0.s8 %v2589
    %v2591 = vlaneseq
    %v2592 = vshrl.u32 %v2591, 7
    %v2593 = vsub.s32 %v2590, %v2592
    %v2594 = vrot.slane %v2580, %v2593
    %v2595 = vcombine.high %v2587, %v2587
    %2596 = vrot.lane.b32.xlu0 %v2587, 125
    %v2597 = vpop.permute.xlu0 %2596
    %2598 = vrot.lane.b32.xlu0 %v2595, 125
    %v2599 = vpop.permute.xlu0 %2598
    %2600 = vrot.lane.b32.xlu0 %v2594, 125
    %v2601 = vpop.permute.xlu0 %2600
    %v2602 = vsel %vm2570, %v2597, %v2599
    %v2603 = vsel %vm2570, %v2599, %v2601
    %v2606 = vmul.f32 %v161, %v2602
    %v2607 = vmul.f32 %v162, %v2603
    %v2608 = vadd.f32 %v1984, %v2606
    %v2609 = vadd.f32 %v1985, %v2607
    %v2611 = vcombine.high %v2546, %v2546
    %v2613 = vunpack.c.l.s4 1983009808
    %v2614 = vunpack.c.0.s8 %v2613
    %v2615 = vlaneseq
    %v2616 = vshrl.u32 %v2615, 7
    %v2617 = vsub.s32 %v2614, %v2616
    %v2618 = vrot.slane %v2546, %v2617
    %v2620 = vunpack.c.l.s4 1983009808
    %v2621 = vunpack.c.0.s8 %v2620
    %v2622 = vlaneseq
    %v2623 = vshrl.u32 %v2622, 7
    %v2624 = vsub.s32 %v2621, %v2623
    %v2625 = vrot.slane %v2611, %v2624
    %v2626 = vcombine.high %v2618, %v2618
    %2627 = vrot.lane.b32.xlu0 %v2618, 125
    %v2628 = vpop.permute.xlu0 %2627
    %2629 = vrot.lane.b32.xlu0 %v2626, 125
    %v2630 = vpop.permute.xlu0 %2629
    %2631 = vrot.lane.b32.xlu0 %v2625, 125
    %v2632 = vpop.permute.xlu0 %2631
    %v2633 = vsel %vm2570, %v2628, %v2630
    %v2634 = vsel %vm2570, %v2630, %v2632
    %v2637 = vmul.f32 %v161, %v2633
    %v2638 = vmul.f32 %v162, %v2634
    %v2639 = vadd.f32 %v2013, %v2637
    %v2640 = vadd.f32 %v2014, %v2638
    %v2641 = vld [vmem:[#allocation2] sm:$0x3f]
    %s2642 = sld [smem:[#allocation8 + $0x30]]
    %v2643 = vstv %s2642
    %v2644 = vmul.f32 %v2643, %v2641
    %v2645 = vadd.f32 %v2644, 0.0
    %s2646 = sld [smem:[#allocation8 + $0x31]]
    %v2647 = vstv %s2646
    %v2648 = vmul.f32 %v2647, %v2641
    %v2649 = vadd.f32 %v2648, 0.0
    %s2650 = sld [smem:[#allocation8 + $0x32]]
    %v2651 = vstv %s2650
    %v2652 = vmul.f32 %v2651, %v2641
    %v2653 = vadd.f32 %v2652, 0.0
    %v2654 = vld [vmem:[%s194] sm:$0x3f]
    %s2655 = sld [smem:[#allocation8 + $0x33]]
    %v2656 = vstv %s2655
    %v2657 = vmul.f32 %v2656, %v2654
    %v2658 = vadd.f32 %v2645, %v2657
    %s2659 = sld [smem:[#allocation8 + $0x34]]
    %v2660 = vstv %s2659
    %v2661 = vmul.f32 %v2660, %v2654
    %v2662 = vadd.f32 %v2649, %v2661
    %s2663 = sld [smem:[#allocation8 + $0x35]]
    %v2664 = vstv %s2663
    %v2665 = vmul.f32 %v2664, %v2654
    %v2666 = vadd.f32 %v2653, %v2665
    %v2667 = vld [vmem:[%s208] sm:$0x3f]
    %s2668 = sld [smem:[#allocation8 + $0x36]]
    %v2669 = vstv %s2668
    %v2670 = vmul.f32 %v2669, %v2667
    %v2671 = vadd.f32 %v2658, %v2670
    %s2672 = sld [smem:[#allocation8 + $0x37]]
    %v2673 = vstv %s2672
    %v2674 = vmul.f32 %v2673, %v2667
    %v2675 = vadd.f32 %v2662, %v2674
    %s2676 = sld [smem:[#allocation8 + $0x38]]
    %v2677 = vstv %s2676
    %v2678 = vmul.f32 %v2677, %v2667
    %v2679 = vadd.f32 %v2666, %v2678
    %v2680 = vld [vmem:[%s222] sm:$0x3f]
    %s2681 = sld [smem:[#allocation8 + $0x39]]
    %v2682 = vstv %s2681
    %v2683 = vmul.f32 %v2682, %v2680
    %v2684 = vadd.f32 %v2671, %v2683
    %s2685 = sld [smem:[#allocation8 + $0x3a]]
    %v2686 = vstv %s2685
    %v2687 = vmul.f32 %v2686, %v2680
    %v2688 = vadd.f32 %v2675, %v2687
    %s2689 = sld [smem:[#allocation8 + $0x3b]]
    %v2690 = vstv %s2689
    %v2691 = vmul.f32 %v2690, %v2680
    %v2692 = vadd.f32 %v2679, %v2691
    %s2693 = sld [smem:[#allocation8 + $0x6c]]
    %v2694 = vstv %s2693
    %v2695 = vmul.f32 %v2694, %v2641
    %2697 = vrot.lane.b32.xlu0 %v2695, 112
    %v2698 = vpop.permute.xlu0 %2697
    %v2699 = vrot.slane %v2698, 2
    %v2700 = vsel %vm244, %v2698, %v2699
    %v2702 = vadd.f32 %v2684, %v2700
    %s2703 = sld [smem:[#allocation8 + $0x6d]]
    %v2704 = vstv %s2703
    %v2705 = vmul.f32 %v2704, %v2641
    %2707 = vrot.lane.b32.xlu0 %v2705, 112
    %v2708 = vpop.permute.xlu0 %2707
    %v2709 = vrot.slane %v2708, 2
    %v2710 = vsel %vm244, %v2708, %v2709
    %v2712 = vadd.f32 %v2688, %v2710
    %s2713 = sld [smem:[#allocation8 + $0x6e]]
    %v2714 = vstv %s2713
    %v2715 = vmul.f32 %v2714, %v2641
    %2717 = vrot.lane.b32.xlu0 %v2715, 112
    %v2718 = vpop.permute.xlu0 %2717
    %v2719 = vrot.slane %v2718, 2
    %v2720 = vsel %vm244, %v2718, %v2719
    %v2722 = vadd.f32 %v2692, %v2720
    %s2723 = sld [smem:[#allocation8 + $0x6f]]
    %v2724 = vstv %s2723
    %v2725 = vmul.f32 %v2724, %v2654
    %2727 = vrot.lane.b32.xlu0 %v2725, 112
    %v2728 = vpop.permute.xlu0 %2727
    %v2729 = vrot.slane %v2728, 2
    %v2730 = vsel %vm244, %v2728, %v2729
    %v2732 = vadd.f32 %v2702, %v2730
    %s2733 = sld [smem:[#allocation8 + $0x70]]
    %v2734 = vstv %s2733
    %v2735 = vmul.f32 %v2734, %v2654
    %2737 = vrot.lane.b32.xlu0 %v2735, 112
    %v2738 = vpop.permute.xlu0 %2737
    %v2739 = vrot.slane %v2738, 2
    %v2740 = vsel %vm244, %v2738, %v2739
    %v2742 = vadd.f32 %v2712, %v2740
    %s2743 = sld [smem:[#allocation8 + $0x71]]
    %v2744 = vstv %s2743
    %v2745 = vmul.f32 %v2744, %v2654
    %2747 = vrot.lane.b32.xlu0 %v2745, 112
    %v2748 = vpop.permute.xlu0 %2747
    %v2749 = vrot.slane %v2748, 2
    %v2750 = vsel %vm244, %v2748, %v2749
    %v2752 = vadd.f32 %v2722, %v2750
    %s2753 = sld [smem:[#allocation8 + $0x72]]
    %v2754 = vstv %s2753
    %v2755 = vmul.f32 %v2754, %v2667
    %2757 = vrot.lane.b32.xlu0 %v2755, 112
    %v2758 = vpop.permute.xlu0 %2757
    %v2759 = vrot.slane %v2758, 2
    %v2760 = vsel %vm244, %v2758, %v2759
    %v2762 = vadd.f32 %v2732, %v2760
    %s2763 = sld [smem:[#allocation8 + $0x73]]
    %v2764 = vstv %s2763
    %v2765 = vmul.f32 %v2764, %v2667
    %2767 = vrot.lane.b32.xlu0 %v2765, 112
    %v2768 = vpop.permute.xlu0 %2767
    %v2769 = vrot.slane %v2768, 2
    %v2770 = vsel %vm244, %v2768, %v2769
    %v2772 = vadd.f32 %v2742, %v2770
    %s2773 = sld [smem:[#allocation8 + $0x74]]
    %v2774 = vstv %s2773
    %v2775 = vmul.f32 %v2774, %v2667
    %2777 = vrot.lane.b32.xlu0 %v2775, 112
    %v2778 = vpop.permute.xlu0 %2777
    %v2779 = vrot.slane %v2778, 2
    %v2780 = vsel %vm244, %v2778, %v2779
    %v2782 = vadd.f32 %v2752, %v2780
    %s2783 = sld [smem:[#allocation8 + $0x75]]
    %v2784 = vstv %s2783
    %v2785 = vmul.f32 %v2784, %v2680
    %2787 = vrot.lane.b32.xlu0 %v2785, 112
    %v2788 = vpop.permute.xlu0 %2787
    %v2789 = vrot.slane %v2788, 2
    %v2790 = vsel %vm244, %v2788, %v2789
    %v2792 = vadd.f32 %v2762, %v2790
    %s2793 = sld [smem:[#allocation8 + $0x76]]
    %v2794 = vstv %s2793
    %v2795 = vmul.f32 %v2794, %v2680
    %2797 = vrot.lane.b32.xlu0 %v2795, 112
    %v2798 = vpop.permute.xlu0 %2797
    %v2799 = vrot.slane %v2798, 2
    %v2800 = vsel %vm244, %v2798, %v2799
    %v2802 = vadd.f32 %v2772, %v2800
    %s2803 = sld [smem:[#allocation8 + $0x77]]
    %v2804 = vstv %s2803
    %v2805 = vmul.f32 %v2804, %v2680
    %2807 = vrot.lane.b32.xlu0 %v2805, 112
    %v2808 = vpop.permute.xlu0 %2807
    %v2809 = vrot.slane %v2808, 2
    %v2810 = vsel %vm244, %v2808, %v2809
    %v2812 = vadd.f32 %v2782, %v2810
    %s2813 = sld [smem:[#allocation8 + $0xa8]]
    %v2814 = vstv %s2813
    %v2815 = vmul.f32 %v2814, %v2641
    %2817 = vrot.lane.b32.xlu0 %v2815, 96
    %v2818 = vpop.permute.xlu0 %2817
    %v2819 = vrot.slane %v2818, 2
    %v2820 = vsel %vm368, %v2818, %v2819
    %v2822 = vadd.f32 %v2792, %v2820
    %s2823 = sld [smem:[#allocation8 + $0xa9]]
    %v2824 = vstv %s2823
    %v2825 = vmul.f32 %v2824, %v2641
    %2827 = vrot.lane.b32.xlu0 %v2825, 96
    %v2828 = vpop.permute.xlu0 %2827
    %v2829 = vrot.slane %v2828, 2
    %v2830 = vsel %vm368, %v2828, %v2829
    %v2832 = vadd.f32 %v2802, %v2830
    %s2833 = sld [smem:[#allocation8 + $0xaa]]
    %v2834 = vstv %s2833
    %v2835 = vmul.f32 %v2834, %v2641
    %2837 = vrot.lane.b32.xlu0 %v2835, 96
    %v2838 = vpop.permute.xlu0 %2837
    %v2839 = vrot.slane %v2838, 2
    %v2840 = vsel %vm368, %v2838, %v2839
    %v2842 = vadd.f32 %v2812, %v2840
    %s2843 = sld [smem:[#allocation8 + $0xab]]
    %v2844 = vstv %s2843
    %v2845 = vmul.f32 %v2844, %v2654
    %2847 = vrot.lane.b32.xlu0 %v2845, 96
    %v2848 = vpop.permute.xlu0 %2847
    %v2849 = vrot.slane %v2848, 2
    %v2850 = vsel %vm368, %v2848, %v2849
    %v2852 = vadd.f32 %v2822, %v2850
    %s2853 = sld [smem:[#allocation8 + $0xac]]
    %v2854 = vstv %s2853
    %v2855 = vmul.f32 %v2854, %v2654
    %2857 = vrot.lane.b32.xlu0 %v2855, 96
    %v2858 = vpop.permute.xlu0 %2857
    %v2859 = vrot.slane %v2858, 2
    %v2860 = vsel %vm368, %v2858, %v2859
    %v2862 = vadd.f32 %v2832, %v2860
    %s2863 = sld [smem:[#allocation8 + $0xad]]
    %v2864 = vstv %s2863
    %v2865 = vmul.f32 %v2864, %v2654
    %2867 = vrot.lane.b32.xlu0 %v2865, 96
    %v2868 = vpop.permute.xlu0 %2867
    %v2869 = vrot.slane %v2868, 2
    %v2870 = vsel %vm368, %v2868, %v2869
    %v2872 = vadd.f32 %v2842, %v2870
    %s2873 = sld [smem:[#allocation8 + $0xae]]
    %v2874 = vstv %s2873
    %v2875 = vmul.f32 %v2874, %v2667
    %2877 = vrot.lane.b32.xlu0 %v2875, 96
    %v2878 = vpop.permute.xlu0 %2877
    %v2879 = vrot.slane %v2878, 2
    %v2880 = vsel %vm368, %v2878, %v2879
    %v2882 = vadd.f32 %v2852, %v2880
    %s2883 = sld [smem:[#allocation8 + $0xaf]]
    %v2884 = vstv %s2883
    %v2885 = vmul.f32 %v2884, %v2667
    %2887 = vrot.lane.b32.xlu0 %v2885, 96
    %v2888 = vpop.permute.xlu0 %2887
    %v2889 = vrot.slane %v2888, 2
    %v2890 = vsel %vm368, %v2888, %v2889
    %v2892 = vadd.f32 %v2862, %v2890
    %s2893 = sld [smem:[#allocation8 + $0xb0]]
    %v2894 = vstv %s2893
    %v2895 = vmul.f32 %v2894, %v2667
    %2897 = vrot.lane.b32.xlu0 %v2895, 96
    %v2898 = vpop.permute.xlu0 %2897
    %v2899 = vrot.slane %v2898, 2
    %v2900 = vsel %vm368, %v2898, %v2899
    %v2902 = vadd.f32 %v2872, %v2900
    %s2903 = sld [smem:[#allocation8 + $0xb1]]
    %v2904 = vstv %s2903
    %v2905 = vmul.f32 %v2904, %v2680
    %2907 = vrot.lane.b32.xlu0 %v2905, 96
    %v2908 = vpop.permute.xlu0 %2907
    %v2909 = vrot.slane %v2908, 2
    %v2910 = vsel %vm368, %v2908, %v2909
    %v2912 = vadd.f32 %v2882, %v2910
    %s2913 = sld [smem:[#allocation8 + $0xb2]]
    %v2914 = vstv %s2913
    %v2915 = vmul.f32 %v2914, %v2680
    %2917 = vrot.lane.b32.xlu0 %v2915, 96
    %v2918 = vpop.permute.xlu0 %2917
    %v2919 = vrot.slane %v2918, 2
    %v2920 = vsel %vm368, %v2918, %v2919
    %v2922 = vadd.f32 %v2892, %v2920
    %s2923 = sld [smem:[#allocation8 + $0xb3]]
    %v2924 = vstv %s2923
    %v2925 = vmul.f32 %v2924, %v2680
    %2927 = vrot.lane.b32.xlu0 %v2925, 96
    %v2928 = vpop.permute.xlu0 %2927
    %v2929 = vrot.slane %v2928, 2
    %v2930 = vsel %vm368, %v2928, %v2929
    %v2932 = vadd.f32 %v2902, %v2930
    %s2933 = sld [smem:[#allocation8 + $0xe4]]
    %v2934 = vstv %s2933
    %v2935 = vmul.f32 %v2934, %v2641
    %2937 = vrot.lane.b32.xlu0 %v2935, 80
    %v2938 = vpop.permute.xlu0 %2937
    %v2939 = vrot.slane %v2938, 2
    %v2940 = vsel %vm489, %v2938, %v2939
    %v2942 = vadd.f32 %v2912, %v2940
    %s2943 = sld [smem:[#allocation8 + $0xe5]]
    %v2944 = vstv %s2943
    %v2945 = vmul.f32 %v2944, %v2641
    %2947 = vrot.lane.b32.xlu0 %v2945, 80
    %v2948 = vpop.permute.xlu0 %2947
    %v2949 = vrot.slane %v2948, 2
    %v2950 = vsel %vm489, %v2948, %v2949
    %v2952 = vadd.f32 %v2922, %v2950
    %s2953 = sld [smem:[#allocation8 + $0xe6]]
    %v2954 = vstv %s2953
    %v2955 = vmul.f32 %v2954, %v2641
    %2957 = vrot.lane.b32.xlu0 %v2955, 80
    %v2958 = vpop.permute.xlu0 %2957
    %v2959 = vrot.slane %v2958, 2
    %v2960 = vsel %vm489, %v2958, %v2959
    %v2962 = vadd.f32 %v2932, %v2960
    %s2963 = sld [smem:[#allocation8 + $0xe7]]
    %v2964 = vstv %s2963
    %v2965 = vmul.f32 %v2964, %v2654
    %2967 = vrot.lane.b32.xlu0 %v2965, 80
    %v2968 = vpop.permute.xlu0 %2967
    %v2969 = vrot.slane %v2968, 2
    %v2970 = vsel %vm489, %v2968, %v2969
    %v2972 = vadd.f32 %v2942, %v2970
    %s2973 = sld [smem:[#allocation8 + $0xe8]]
    %v2974 = vstv %s2973
    %v2975 = vmul.f32 %v2974, %v2654
    %2977 = vrot.lane.b32.xlu0 %v2975, 80
    %v2978 = vpop.permute.xlu0 %2977
    %v2979 = vrot.slane %v2978, 2
    %v2980 = vsel %vm489, %v2978, %v2979
    %v2982 = vadd.f32 %v2952, %v2980
    %s2983 = sld [smem:[#allocation8 + $0xe9]]
    %v2984 = vstv %s2983
    %v2985 = vmul.f32 %v2984, %v2654
    %2987 = vrot.lane.b32.xlu0 %v2985, 80
    %v2988 = vpop.permute.xlu0 %2987
    %v2989 = vrot.slane %v2988, 2
    %v2990 = vsel %vm489, %v2988, %v2989
    %v2992 = vadd.f32 %v2962, %v2990
    %s2993 = sld [smem:[#allocation8 + $0xea]]
    %v2994 = vstv %s2993
    %v2995 = vmul.f32 %v2994, %v2667
    %2997 = vrot.lane.b32.xlu0 %v2995, 80
    %v2998 = vpop.permute.xlu0 %2997
    %v2999 = vrot.slane %v2998, 2
    %v3000 = vsel %vm489, %v2998, %v2999
    %v3002 = vadd.f32 %v2972, %v3000
    %s3003 = sld [smem:[#allocation8 + $0xeb]]
    %v3004 = vstv %s3003
    %v3005 = vmul.f32 %v3004, %v2667
    %3007 = vrot.lane.b32.xlu0 %v3005, 80
    %v3008 = vpop.permute.xlu0 %3007
    %v3009 = vrot.slane %v3008, 2
    %v3010 = vsel %vm489, %v3008, %v3009
    %v3012 = vadd.f32 %v2982, %v3010
    %s3013 = sld [smem:[#allocation8 + $0xec]]
    %v3014 = vstv %s3013
    %v3015 = vmul.f32 %v3014, %v2667
    %3017 = vrot.lane.b32.xlu0 %v3015, 80
    %v3018 = vpop.permute.xlu0 %3017
    %v3019 = vrot.slane %v3018, 2
    %v3020 = vsel %vm489, %v3018, %v3019
    %v3022 = vadd.f32 %v2992, %v3020
    %s3023 = sld [smem:[#allocation8 + $0xed]]
    %v3024 = vstv %s3023
    %v3025 = vmul.f32 %v3024, %v2680
    %3027 = vrot.lane.b32.xlu0 %v3025, 80
    %v3028 = vpop.permute.xlu0 %3027
    %v3029 = vrot.slane %v3028, 2
    %v3030 = vsel %vm489, %v3028, %v3029
    %v3032 = vadd.f32 %v3002, %v3030
    %s3033 = sld [smem:[#allocation8 + $0xee]]
    %v3034 = vstv %s3033
    %v3035 = vmul.f32 %v3034, %v2680
    %3037 = vrot.lane.b32.xlu0 %v3035, 80
    %v3038 = vpop.permute.xlu0 %3037
    %v3039 = vrot.slane %v3038, 2
    %v3040 = vsel %vm489, %v3038, %v3039
    %v3042 = vadd.f32 %v3012, %v3040
    %s3043 = sld [smem:[#allocation8 + $0xef]]
    %v3044 = vstv %s3043
    %v3045 = vmul.f32 %v3044, %v2680
    %3047 = vrot.lane.b32.xlu0 %v3045, 80
    %v3048 = vpop.permute.xlu0 %3047
    %v3049 = vrot.slane %v3048, 2
    %v3050 = vsel %vm489, %v3048, %v3049
    %v3052 = vadd.f32 %v3022, %v3050
    %s3053 = sld [smem:[#allocation8 + $0x120]]
    %v3054 = vstv %s3053
    %v3055 = vmul.f32 %v3054, %v2641
    %3057 = vrot.lane.b32.xlu0 %v3055, 64
    %v3058 = vpop.permute.xlu0 %3057
    %v3059 = vrot.slane %v3058, 2
    %v3060 = vsel %vm610, %v3058, %v3059
    %v3062 = vadd.f32 %v3032, %v3060
    %s3063 = sld [smem:[#allocation8 + $0x121]]
    %v3064 = vstv %s3063
    %v3065 = vmul.f32 %v3064, %v2641
    %3067 = vrot.lane.b32.xlu0 %v3065, 64
    %v3068 = vpop.permute.xlu0 %3067
    %v3069 = vrot.slane %v3068, 2
    %v3070 = vsel %vm610, %v3068, %v3069
    %v3072 = vadd.f32 %v3042, %v3070
    %s3073 = sld [smem:[#allocation8 + $0x122]]
    %v3074 = vstv %s3073
    %v3075 = vmul.f32 %v3074, %v2641
    %3077 = vrot.lane.b32.xlu0 %v3075, 64
    %v3078 = vpop.permute.xlu0 %3077
    %v3079 = vrot.slane %v3078, 2
    %v3080 = vsel %vm610, %v3078, %v3079
    %v3082 = vadd.f32 %v3052, %v3080
    %s3083 = sld [smem:[#allocation8 + $0x123]]
    %v3084 = vstv %s3083
    %v3085 = vmul.f32 %v3084, %v2654
    %3087 = vrot.lane.b32.xlu0 %v3085, 64
    %v3088 = vpop.permute.xlu0 %3087
    %v3089 = vrot.slane %v3088, 2
    %v3090 = vsel %vm610, %v3088, %v3089
    %v3092 = vadd.f32 %v3062, %v3090
    %s3093 = sld [smem:[#allocation8 + $0x124]]
    %v3094 = vstv %s3093
    %v3095 = vmul.f32 %v3094, %v2654
    %3097 = vrot.lane.b32.xlu0 %v3095, 64
    %v3098 = vpop.permute.xlu0 %3097
    %v3099 = vrot.slane %v3098, 2
    %v3100 = vsel %vm610, %v3098, %v3099
    %v3102 = vadd.f32 %v3072, %v3100
    %s3103 = sld [smem:[#allocation8 + $0x125]]
    %v3104 = vstv %s3103
    %v3105 = vmul.f32 %v3104, %v2654
    %3107 = vrot.lane.b32.xlu0 %v3105, 64
    %v3108 = vpop.permute.xlu0 %3107
    %v3109 = vrot.slane %v3108, 2
    %v3110 = vsel %vm610, %v3108, %v3109
    %v3112 = vadd.f32 %v3082, %v3110
    %s3113 = sld [smem:[#allocation8 + $0x126]]
    %v3114 = vstv %s3113
    %v3115 = vmul.f32 %v3114, %v2667
    %3117 = vrot.lane.b32.xlu0 %v3115, 64
    %v3118 = vpop.permute.xlu0 %3117
    %v3119 = vrot.slane %v3118, 2
    %v3120 = vsel %vm610, %v3118, %v3119
    %v3122 = vadd.f32 %v3092, %v3120
    %s3123 = sld [smem:[#allocation8 + $0x127]]
    %v3124 = vstv %s3123
    %v3125 = vmul.f32 %v3124, %v2667
    %3127 = vrot.lane.b32.xlu0 %v3125, 64
    %v3128 = vpop.permute.xlu0 %3127
    %v3129 = vrot.slane %v3128, 2
    %v3130 = vsel %vm610, %v3128, %v3129
    %v3132 = vadd.f32 %v3102, %v3130
    %s3133 = sld [smem:[#allocation8 + $0x128]]
    %v3134 = vstv %s3133
    %v3135 = vmul.f32 %v3134, %v2667
    %3137 = vrot.lane.b32.xlu0 %v3135, 64
    %v3138 = vpop.permute.xlu0 %3137
    %v3139 = vrot.slane %v3138, 2
    %v3140 = vsel %vm610, %v3138, %v3139
    %v3142 = vadd.f32 %v3112, %v3140
    %s3143 = sld [smem:[#allocation8 + $0x129]]
    %v3144 = vstv %s3143
    %v3145 = vmul.f32 %v3144, %v2680
    %3147 = vrot.lane.b32.xlu0 %v3145, 64
    %v3148 = vpop.permute.xlu0 %3147
    %v3149 = vrot.slane %v3148, 2
    %v3150 = vsel %vm610, %v3148, %v3149
    %v3152 = vadd.f32 %v3122, %v3150
    %s3153 = sld [smem:[#allocation8 + $0x12a]]
    %v3154 = vstv %s3153
    %v3155 = vmul.f32 %v3154, %v2680
    %3157 = vrot.lane.b32.xlu0 %v3155, 64
    %v3158 = vpop.permute.xlu0 %3157
    %v3159 = vrot.slane %v3158, 2
    %v3160 = vsel %vm610, %v3158, %v3159
    %v3162 = vadd.f32 %v3132, %v3160
    %s3163 = sld [smem:[#allocation8 + $0x12b]]
    %v3164 = vstv %s3163
    %v3165 = vmul.f32 %v3164, %v2680
    %3167 = vrot.lane.b32.xlu0 %v3165, 64
    %v3168 = vpop.permute.xlu0 %3167
    %v3169 = vrot.slane %v3168, 2
    %v3170 = vsel %vm610, %v3168, %v3169
    %v3172 = vadd.f32 %v3142, %v3170
    %v3174 = vcombine.high %v3152, %v3152
    %v3176 = vunpack.c.l.s4 1983009808
    %v3177 = vunpack.c.0.s8 %v3176
    %v3178 = vlaneseq
    %v3179 = vshrl.u32 %v3178, 7
    %v3180 = vsub.s32 %v3177, %v3179
    %v3181 = vrot.slane %v3152, %v3180
    %v3183 = vunpack.c.l.s4 1983009808
    %v3184 = vunpack.c.0.s8 %v3183
    %v3185 = vlaneseq
    %v3186 = vshrl.u32 %v3185, 7
    %v3187 = vsub.s32 %v3184, %v3186
    %v3188 = vrot.slane %v3174, %v3187
    %v3189 = vcombine.high %v3181, %v3181
    %3190 = vrot.lane.b32.xlu0 %v3181, 124
    %v3191 = vpop.permute.xlu0 %3190
    %3192 = vrot.lane.b32.xlu0 %v3189, 124
    %v3193 = vpop.permute.xlu0 %3192
    %3194 = vrot.lane.b32.xlu0 %v3188, 124
    %v3195 = vpop.permute.xlu0 %3194
    %vm3196 = vcmask 1014784
    %v3197 = vsel %vm3196, %v3191, %v3193
    %v3198 = vsel %vm3196, %v3193, %v3195
    %v3201 = vmul.f32 %v173, %v3197
    %v3202 = vmul.f32 %v174, %v3198
    %v3203 = vadd.f32 %v2577, %v3201
    %v3204 = vadd.f32 %v2578, %v3202
    %v3206 = vcombine.high %v3162, %v3162
    %v3208 = vunpack.c.l.s4 1983009808
    %v3209 = vunpack.c.0.s8 %v3208
    %v3210 = vlaneseq
    %v3211 = vshrl.u32 %v3210, 7
    %v3212 = vsub.s32 %v3209, %v3211
    %v3213 = vrot.slane %v3162, %v3212
    %v3215 = vunpack.c.l.s4 1983009808
    %v3216 = vunpack.c.0.s8 %v3215
    %v3217 = vlaneseq
    %v3218 = vshrl.u32 %v3217, 7
    %v3219 = vsub.s32 %v3216, %v3218
    %v3220 = vrot.slane %v3206, %v3219
    %v3221 = vcombine.high %v3213, %v3213
    %3222 = vrot.lane.b32.xlu0 %v3213, 124
    %v3223 = vpop.permute.xlu0 %3222
    %3224 = vrot.lane.b32.xlu0 %v3221, 124
    %v3225 = vpop.permute.xlu0 %3224
    %3226 = vrot.lane.b32.xlu0 %v3220, 124
    %v3227 = vpop.permute.xlu0 %3226
    %v3228 = vsel %vm3196, %v3223, %v3225
    %v3229 = vsel %vm3196, %v3225, %v3227
    %v3232 = vmul.f32 %v173, %v3228
    %v3233 = vmul.f32 %v174, %v3229
    %v3234 = vadd.f32 %v2608, %v3232
    %v3235 = vadd.f32 %v2609, %v3233
    %v3237 = vcombine.high %v3172, %v3172
    %v3239 = vunpack.c.l.s4 1983009808
    %v3240 = vunpack.c.0.s8 %v3239
    %v3241 = vlaneseq
    %v3242 = vshrl.u32 %v3241, 7
    %v3243 = vsub.s32 %v3240, %v3242
    %v3244 = vrot.slane %v3172, %v3243
    %v3246 = vunpack.c.l.s4 1983009808
    %v3247 = vunpack.c.0.s8 %v3246
    %v3248 = vlaneseq
    %v3249 = vshrl.u32 %v3248, 7
    %v3250 = vsub.s32 %v3247, %v3249
    %v3251 = vrot.slane %v3237, %v3250
    %v3252 = vcombine.high %v3244, %v3244
    %3253 = vrot.lane.b32.xlu0 %v3244, 124
    %v3254 = vpop.permute.xlu0 %3253
    %3255 = vrot.lane.b32.xlu0 %v3252, 124
    %v3256 = vpop.permute.xlu0 %3255
    %3257 = vrot.lane.b32.xlu0 %v3251, 124
    %v3258 = vpop.permute.xlu0 %3257
    %v3259 = vsel %vm3196, %v3254, %v3256
    %v3260 = vsel %vm3196, %v3256, %v3258
    %v3263 = vmul.f32 %v173, %v3259
    %v3264 = vmul.f32 %v174, %v3260
    %v3265 = vadd.f32 %v2639, %v3263
    %v3266 = vadd.f32 %v2640, %v3264
    %v3273 = vcombine.low %v3203, %v3204
    %v3274 = vcombine.low %v3234, %v3235
    %v3276 = vunpack.c.l.s4 1983009808
    %v3277 = vunpack.c.0.s8 %v3276
    %v3278 = vlaneseq
    %v3279 = vshrl.u32 %v3278, 7
    %v3280 = vsub.s32 %v3277, %v3279
    %v3281 = vrot.slane %v3273, %v3280
    %v3283 = vunpack.c.l.s4 1983009808
    %v3284 = vunpack.c.0.s8 %v3283
    %v3285 = vlaneseq
    %v3286 = vshrl.u32 %v3285, 7
    %v3287 = vsub.s32 %v3284, %v3286
    %v3288 = vrot.slane %v3274, %v3287
    %v3289 = vcombine.low %v3281, %v3288
    %v3290 = vcombine.low %v3265, %v3266
    %v3292 = vunpack.c.l.s4 1983009808
    %v3293 = vunpack.c.0.s8 %v3292
    %v3294 = vlaneseq
    %v3295 = vshrl.u32 %v3294, 7
    %v3296 = vsub.s32 %v3293, %v3295
    %v3297 = vrot.slane %v3290, %v3296
    %3300 = vst [vmem:[#allocation10] sm:$0xff] %v3289
    %3301 = vst [vmem:[#allocation10 + $0x8] sm:$0xf] %v3297
    // Predicated region
    $region26: #{tpu_custom_call.1} parent=1 // pred_check
      _
    $region27: #{tpu_custom_call.1} parent=1 // pred_check_branch
      %3303 = sbr.rel (0) target = $region29
    $region28: #{tpu_custom_call.1} parent=1 // pred_region
      %s3305 = ssub.s32 192, 192
      %3306 = vsyncadd [#allocation5], %s3305
      %s3308 = sshll.u32 [#allocation10], 4
      %s3309 = int_to_ptr.vmem [resolvable:$true] %s3308
      %3311 = dma.vmem_to_hbm [thread:$0]  %s3309, 192, %s3, [#allocation5]
    $region29: #{tpu_custom_call.1} parent=1 // pred_fallthru
      _
    // Predicated region
    $region30: #{tpu_custom_call.1} parent=1 // pred_check
      _
    $region31: #{tpu_custom_call.1} parent=1 // pred_check_branch
      %3313 = sbr.rel (0) target = $region33
    $region32: #{tpu_custom_call.1} parent=1 // pred_region
      %3314 = dma.done [#allocation5], 192
    $region33: #{tpu_custom_call.1} parent=1 // pred_fallthru
      _
    %3315 = vsyncpa [#allocation4], 1
    %3316 = vsyncpa [#allocation5], 1
    %3317 = vsyncpa [#allocation6], 1
    %3318 = vsyncpa [#allocation7], 1

</llo_original>
